<compile_context>
chip_gen: v5e
topology: v5e:2x2
jax: 0.10.0
libtpu: 0.0.40
codegen_flags: <defaults>
</compile_context>

<pallas_src>
import jax
import jax.numpy as jnp
from jax.experimental import pallas as pl
from jax.experimental.pallas import tpu as pltpu

H2 = 750
H3 = 500

LANE = 128  # TPU lane width; feature dims padded to a multiple of this.


def _round_up(n, m):
    return ((n + m - 1) // m) * m


def _pad2d(a, rows, cols, dtype):
    r, c = a.shape
    return jnp.pad(a, ((0, rows - r), (0, cols - c))).astype(dtype)


# ----------------------------------------------------------------------------
# Kernel
# ----------------------------------------------------------------------------
def mlp_kernel(x_ref,
               w1_ref, b1_ref,
               w2_ref, b2_ref,
               w3_ref, b3_ref,
               w4_ref, b4_ref,
               o_ref):
    # One batch tile per grid step; all (padded, pre-cast) weights resident in
    # VMEM. Matmul operands are in mm_dtype (bf16 on v6e/v7x); accumulation,
    # bias add and ReLU are f32. The value crossing each matmul boundary is
    # downcast eagerly to mm_dtype to minimize vreg pressure / spill traffic.
    mm_dtype = w1_ref.dtype

    x = x_ref[...].astype(mm_dtype)  # cheap VPU cast, hidden under the MXU

    h = jnp.dot(x, w1_ref[...], preferred_element_type=jnp.float32)
    h = jnp.maximum(h + b1_ref[...], 0.0).astype(mm_dtype)

    h = jnp.dot(h, w2_ref[...], preferred_element_type=jnp.float32)
    h = jnp.maximum(h + b2_ref[...], 0.0).astype(mm_dtype)

    h = jnp.dot(h, w3_ref[...], preferred_element_type=jnp.float32)
    h = jnp.maximum(h + b3_ref[...], 0.0).astype(mm_dtype)

    y = jnp.dot(h, w4_ref[...], preferred_element_type=jnp.float32) + b4_ref[...]
    o_ref[...] = y.astype(o_ref.dtype)


# ----------------------------------------------------------------------------
# One-time parameter preparation (hoisted out of the forward path)
# ----------------------------------------------------------------------------
def prepare_params(params, matmul_dtype=jnp.bfloat16):
    """Pad feature dims to lane multiples and cast weights to matmul_dtype ONCE.

    params: dict with w1..w4 stored as [in, out] and b1..b4 as [1, out].
    Returns a dict of device-resident padded arrays plus original dims.
    """
    w1, b1 = params["w1"], params["b1"]   # [D_in, H],   [1, H]
    w2, b2 = params["w2"], params["b2"]   # [H,   H2],   [1, H2]
    w3, b3 = params["w3"], params["b3"]   # [H2,  H3],   [1, H3]
    w4, b4 = params["w4"], params["b4"]   # [H3, D_out], [1, D_out]

    d_in, h = w1.shape
    d_out = w4.shape[1]

    h_p = _round_up(h, LANE)
    h2_p = _round_up(H2, LANE)      # 750 -> 768
    h3_p = _round_up(H3, LANE)      # 500 -> 512
    d_out_p = _round_up(d_out, LANE)

    return {
        # w1 keeps K = D_in unpadded (contraction dim; underfilled K is legal
        # and cheap); only its output dim is padded.
        "w1": _pad2d(w1, d_in, h_p, matmul_dtype),
        "b1": _pad2d(b1, 1, h_p, jnp.float32),
        "w2": _pad2d(w2, h_p, h2_p, matmul_dtype),
        "b2": _pad2d(b2, 1, h2_p, jnp.float32),
        "w3": _pad2d(w3, h2_p, h3_p, matmul_dtype),
        "b3": _pad2d(b3, 1, h3_p, jnp.float32),
        "w4": _pad2d(w4, h3_p, d_out_p, matmul_dtype),
        "b4": _pad2d(b4, 1, d_out_p, jnp.float32),
        "d_in": d_in,
        "d_out": d_out,
    }


def _choose_batch_tile(batch):
    """>=2 grid steps when possible (v7x megacore), <=512 rows (step amortization)."""
    b8 = _round_up(batch, 8)
    if b8 <= 16:
        return b8
    return min(512, _round_up((b8 + 1) // 2, 8))


def _vmem_limit_bytes(batch_tile, d_in, h_p, h2_p, h3_p, d_out_p, mm_itemsize):
    x_blk = 2 * batch_tile * d_in * 4                      # double-buffered f32 input tile
    o_blk = 2 * batch_tile * d_out_p * 4                   # double-buffered f32 output tile
    w = 2 * (d_in * h_p + h_p * h2_p + h2_p * h3_p + h3_p * d_out_p) * mm_itemsize
    b = 2 * (h_p + h2_p + h3_p + d_out_p) * 4
    inter = batch_tile * (h_p + h2_p + h3_p) * (4 + mm_itemsize)  # live intermediates
    total = x_blk + o_blk + w + b + inter
    return int(min(max(total + (8 << 20), 16 << 20), 64 << 20))


# ----------------------------------------------------------------------------
# Forward wrapper (hot path: no weight padding / casting here)
# ----------------------------------------------------------------------------
def two_layer_net(x, prepped, *, batch_tile=None):
    """x: [B, D_in] float32. prepped: output of prepare_params()."""
    B, D_in = x.shape
    assert D_in == prepped["d_in"], "input feature dim mismatch"

    w1_p, b1_p = prepped["w1"], prepped["b1"]
    w2_p, b2_p = prepped["w2"], prepped["b2"]
    w3_p, b3_p = prepped["w3"], prepped["b3"]
    w4_p, b4_p = prepped["w4"], prepped["b4"]
    d_out = prepped["d_out"]

    h_p = w1_p.shape[1]
    h2_p = w2_p.shape[1]
    h3_p = w3_p.shape[1]
    d_out_p = w4_p.shape[1]

    if batch_tile is None:
        batch_tile = _choose_batch_tile(B)
    assert batch_tile % 8 == 0 or batch_tile == B, \
        "batch_tile must be a multiple of 8 (or the full batch)"

    # Only batch padding (cheap, often a no-op); feature dim stays unpadded.
    b_p = _round_up(B, batch_tile)
    x_in = x if b_p == B else jnp.pad(x, ((0, b_p - B), (0, 0)))

    grid = (b_p // batch_tile,)

    def full_spec(shape):
        # Whole (grid-invariant) array per step; weights/biases fit VMEM easily.
        return pl.BlockSpec(shape, lambda i: (0,) * len(shape))

    mm_itemsize = jnp.dtype(w1_p.dtype).itemsize
    vmem_limit = _vmem_limit_bytes(batch_tile, D_in, h_p, h2_p, h3_p, d_out_p,
                                   mm_itemsize)

    out_p = pl.pallas_call(
        mlp_kernel,
        out_shape=jax.ShapeDtypeStruct((b_p, d_out_p), x.dtype),
        grid_spec=pltpu.PrefetchScalarGridSpec(
            num_scalar_prefetch=0,
            grid=grid,
            in_specs=[
                pl.BlockSpec((batch_tile, D_in), lambda i: (i, 0)),
                full_spec(w1_p.shape), full_spec(b1_p.shape),
                full_spec(w2_p.shape), full_spec(b2_p.shape),
                full_spec(w3_p.shape), full_spec(b3_p.shape),
                full_spec(w4_p.shape), full_spec(b4_p.shape),
            ],
            out_specs=pl.BlockSpec((batch_tile, d_out_p), lambda i: (i, 0)),
        ),
        compiler_params=pltpu.CompilerParams(
            dimension_semantics=("parallel",),
            vmem_limit_bytes=vmem_limit,
        ),
    )(x_in, w1_p, b1_p, w2_p, b2_p, w3_p, b3_p, w4_p, b4_p)

    # Strip the batch / output-feature padding.
    return out_p[:B, :d_out]


# ----------------------------------------------------------------------------
# Init + pure-JAX reference
# ----------------------------------------------------------------------------
def init_params(key, D_in, H, D_out):
    """Deterministic init mirroring nn.Linear's U(-1/sqrt(fan_in), 1/sqrt(fan_in)).
    Weights are stored as [in, out] (transpose of PyTorch's [out, in])."""
    dims = [(D_in, H), (H, H2), (H2, H3), (H3, D_out)]
    params = {}
    for idx, (fan_in, fan_out) in enumerate(dims, start=1):
        key, kw, kb = jax.random.split(key, 3)
        bound = 1.0 / jnp.sqrt(fan_in)
        params[f"w{idx}"] = jax.random.uniform(
            kw, (fan_in, fan_out), jnp.float32, -bound, bound)
        params[f"b{idx}"] = jax.random.uniform(
            kb, (1, fan_out), jnp.float32, -bound, bound)
    return params


def reference_forward(x, params, matmul_dtype=jnp.float32):
    """Pure-JAX reference, with the same matmul-operand precision as the kernel."""
    def linear(h, w, b):
        return jnp.dot(h.astype(matmul_dtype), w.astype(matmul_dtype),
                       preferred_element_type=jnp.float32) + b

    h = jnp.maximum(linear(x, params["w1"], params["b1"]), 0.0)
    h = jnp.maximum(linear(h, params["w2"], params["b2"]), 0.0)
    h = jnp.maximum(linear(h, params["w3"], params["b3"]), 0.0)
    return linear(h, params["w4"], params["b4"])


if __name__ == "__main__":
    # Small shapes consistent with the module: x is [batch, D_in].
    # Deliberately unaligned D_in/H/D_out to exercise the padding path.
    # B=256 -> auto batch_tile=128 -> 2 parallel grid steps (v7x megacore).
    B, D_in, H, D_out = 256, 64, 100, 32

    key = jax.random.PRNGKey(0)
    key, kx = jax.random.split(key)
    x = jax.random.normal(kx, (B, D_in), jnp.float32)
    params = init_params(key, D_in, H, D_out)

    # One-time: pad + cast weights (hoisted out of the forward hot path).
    prepped = prepare_params(params, matmul_dtype=jnp.bfloat16)

    y = two_layer_net(x, prepped)
    y = jax.block_until_ready(y)
    assert y.shape == (B, D_out)

    # Compare against a bf16-operand JAX reference; tolerance loosened since
    # MXU vs XLA accumulation order may differ slightly.
    y_ref = reference_forward(x, params, matmul_dtype=jnp.bfloat16)
    max_err = float(jnp.max(jnp.abs(y - y_ref)))
    assert max_err < 2e-2, f"mismatch vs JAX reference (max abs err {max_err})"

    print("KERNEL_OK")
</pallas_src>

<mosaic_0001>
module attributes {stable_mosaic.version = 11 : i64} {
  func.func @mlp_kernel(%arg0: i32, %arg1: memref<128x64xf32, #tpu.memory_space<vmem>>, %arg2: memref<64x128xbf16, #tpu.memory_space<vmem>>, %arg3: memref<1x128xf32, #tpu.memory_space<vmem>>, %arg4: memref<128x768xbf16, #tpu.memory_space<vmem>>, %arg5: memref<1x768xf32, #tpu.memory_space<vmem>>, %arg6: memref<768x512xbf16, #tpu.memory_space<vmem>>, %arg7: memref<1x512xf32, #tpu.memory_space<vmem>>, %arg8: memref<512x128xbf16, #tpu.memory_space<vmem>>, %arg9: memref<1x128xf32, #tpu.memory_space<vmem>>, %arg10: memref<128x128xf32, #tpu.memory_space<vmem>>) attributes {dimension_semantics = [#tpu.dimension_semantics<parallel>], iteration_bounds = array<i64: 2>, scalar_prefetch = 0 : i64, scratch_operands = 0 : i64, tpu.core_type = #tpu.core_type<tc>, window_params = [{transform_indices = @transform_0, window_bounds = array<i64: 128, 64>}, {pipeline_mode = #tpu.pipeline_mode<synchronous>, transform_indices = @transform_1, window_bounds = array<i64: 64, 128>}, {pipeline_mode = #tpu.pipeline_mode<synchronous>, transform_indices = @transform_2, window_bounds = array<i64: 1, 128>}, {pipeline_mode = #tpu.pipeline_mode<synchronous>, transform_indices = @transform_3, window_bounds = array<i64: 128, 768>}, {pipeline_mode = #tpu.pipeline_mode<synchronous>, transform_indices = @transform_4, window_bounds = array<i64: 1, 768>}, {pipeline_mode = #tpu.pipeline_mode<synchronous>, transform_indices = @transform_5, window_bounds = array<i64: 768, 512>}, {pipeline_mode = #tpu.pipeline_mode<synchronous>, transform_indices = @transform_6, window_bounds = array<i64: 1, 512>}, {pipeline_mode = #tpu.pipeline_mode<synchronous>, transform_indices = @transform_7, window_bounds = array<i64: 512, 128>}, {pipeline_mode = #tpu.pipeline_mode<synchronous>, transform_indices = @transform_8, window_bounds = array<i64: 1, 128>}, {transform_indices = @transform_9, window_bounds = array<i64: 128, 128>}]} {
    %c0 = arith.constant 0 : index
    %c0_0 = arith.constant 0 : index
    %0 = vector.load %arg1[%c0, %c0_0] : memref<128x64xf32, #tpu.memory_space<vmem>>, vector<128x64xf32>
    %1 = arith.truncf %0 : vector<128x64xf32> to vector<128x64xbf16>
    %c0_1 = arith.constant 0 : index
    %c0_2 = arith.constant 0 : index
    %2 = vector.load %arg2[%c0_1, %c0_2] : memref<64x128xbf16, #tpu.memory_space<vmem>>, vector<64x128xbf16>
    %cst = arith.constant dense<0.000000e+00> : vector<128x128xf32>
    %3 = tpu.matmul %1, %2, %cst {dimension_numbers = #tpu.dot_dimension_numbers<[1], [0], [0], [1], [0, 0, 1, 1], [], []>} : vector<128x64xbf16>, vector<64x128xbf16>, vector<128x128xf32> -> vector<128x128xf32>
    %c0_3 = arith.constant 0 : index
    %c0_4 = arith.constant 0 : index
    %4 = vector.load %arg3[%c0_3, %c0_4] : memref<1x128xf32, #tpu.memory_space<vmem>>, vector<1x128xf32>
    %5 = vector.broadcast %4 : vector<1x128xf32> to vector<128x128xf32>
    %6 = arith.addf %3, %5 : vector<128x128xf32>
    %cst_5 = arith.constant 0.000000e+00 : f32
    %7 = vector.broadcast %cst_5 : f32 to vector<128x128xf32>
    %8 = arith.maximumf %6, %7 : vector<128x128xf32>
    %9 = arith.truncf %8 : vector<128x128xf32> to vector<128x128xbf16>
    %c0_6 = arith.constant 0 : index
    %c0_7 = arith.constant 0 : index
    %10 = vector.load %arg4[%c0_6, %c0_7] : memref<128x768xbf16, #tpu.memory_space<vmem>>, vector<128x768xbf16>
    %cst_8 = arith.constant dense<0.000000e+00> : vector<128x768xf32>
    %11 = tpu.matmul %9, %10, %cst_8 {dimension_numbers = #tpu.dot_dimension_numbers<[1], [0], [0], [1], [0, 0, 1, 1], [], []>} : vector<128x128xbf16>, vector<128x768xbf16>, vector<128x768xf32> -> vector<128x768xf32>
    %c0_9 = arith.constant 0 : index
    %c0_10 = arith.constant 0 : index
    %12 = vector.load %arg5[%c0_9, %c0_10] : memref<1x768xf32, #tpu.memory_space<vmem>>, vector<1x768xf32>
    %13 = vector.broadcast %12 : vector<1x768xf32> to vector<128x768xf32>
    %14 = arith.addf %11, %13 : vector<128x768xf32>
    %cst_11 = arith.constant 0.000000e+00 : f32
    %15 = vector.broadcast %cst_11 : f32 to vector<128x768xf32>
    %16 = arith.maximumf %14, %15 : vector<128x768xf32>
    %17 = arith.truncf %16 : vector<128x768xf32> to vector<128x768xbf16>
    %c0_12 = arith.constant 0 : index
    %c0_13 = arith.constant 0 : index
    %18 = vector.load %arg6[%c0_12, %c0_13] : memref<768x512xbf16, #tpu.memory_space<vmem>>, vector<768x512xbf16>
    %cst_14 = arith.constant dense<0.000000e+00> : vector<128x512xf32>
    %19 = tpu.matmul %17, %18, %cst_14 {dimension_numbers = #tpu.dot_dimension_numbers<[1], [0], [0], [1], [0, 0, 1, 1], [], []>} : vector<128x768xbf16>, vector<768x512xbf16>, vector<128x512xf32> -> vector<128x512xf32>
    %c0_15 = arith.constant 0 : index
    %c0_16 = arith.constant 0 : index
    %20 = vector.load %arg7[%c0_15, %c0_16] : memref<1x512xf32, #tpu.memory_space<vmem>>, vector<1x512xf32>
    %21 = vector.broadcast %20 : vector<1x512xf32> to vector<128x512xf32>
    %22 = arith.addf %19, %21 : vector<128x512xf32>
    %cst_17 = arith.constant 0.000000e+00 : f32
    %23 = vector.broadcast %cst_17 : f32 to vector<128x512xf32>
    %24 = arith.maximumf %22, %23 : vector<128x512xf32>
    %25 = arith.truncf %24 : vector<128x512xf32> to vector<128x512xbf16>
    %c0_18 = arith.constant 0 : index
    %c0_19 = arith.constant 0 : index
    %26 = vector.load %arg8[%c0_18, %c0_19] : memref<512x128xbf16, #tpu.memory_space<vmem>>, vector<512x128xbf16>
    %cst_20 = arith.constant dense<0.000000e+00> : vector<128x128xf32>
    %27 = tpu.matmul %25, %26, %cst_20 {dimension_numbers = #tpu.dot_dimension_numbers<[1], [0], [0], [1], [0, 0, 1, 1], [], []>} : vector<128x512xbf16>, vector<512x128xbf16>, vector<128x128xf32> -> vector<128x128xf32>
    %c0_21 = arith.constant 0 : index
    %c0_22 = arith.constant 0 : index
    %28 = vector.load %arg9[%c0_21, %c0_22] : memref<1x128xf32, #tpu.memory_space<vmem>>, vector<1x128xf32>
    %29 = vector.broadcast %28 : vector<1x128xf32> to vector<128x128xf32>
    %30 = arith.addf %27, %29 : vector<128x128xf32>
    %c0_23 = arith.constant 0 : index
    %c0_24 = arith.constant 0 : index
    %31 = vector.load %arg10[%c0_23, %c0_24] : memref<128x128xf32, #tpu.memory_space<vmem>>, vector<128x128xf32>
    tpu.vector_store %arg10[%c0_23, %c0_24], %30 {strides = array<i32>} : memref<128x128xf32, #tpu.memory_space<vmem>>, vector<128x128xf32>,
    return
  }
  func.func @transform_0(%arg0: i32) -> (i32, i32) {
    %c0_i32 = arith.constant 0 : i32
    %c0_i32_0 = arith.constant 0 : i32
    return %arg0, %c0_i32 : i32, i32
  }
  func.func @transform_1(%arg0: i32) -> (i32, i32) {
    %c0_i32 = arith.constant 0 : i32
    %c0_i32_0 = arith.constant 0 : i32
    %c0_i32_1 = arith.constant 0 : i32
    return %c0_i32, %c0_i32_0 : i32, i32
  }
  func.func @transform_2(%arg0: i32) -> (i32, i32) {
    %c0_i32 = arith.constant 0 : i32
    %c0_i32_0 = arith.constant 0 : i32
    %c0_i32_1 = arith.constant 0 : i32
    return %c0_i32, %c0_i32_0 : i32, i32
  }
  func.func @transform_3(%arg0: i32) -> (i32, i32) {
    %c0_i32 = arith.constant 0 : i32
    %c0_i32_0 = arith.constant 0 : i32
    %c0_i32_1 = arith.constant 0 : i32
    return %c0_i32, %c0_i32_0 : i32, i32
  }
  func.func @transform_4(%arg0: i32) -> (i32, i32) {
    %c0_i32 = arith.constant 0 : i32
    %c0_i32_0 = arith.constant 0 : i32
    %c0_i32_1 = arith.constant 0 : i32
    return %c0_i32, %c0_i32_0 : i32, i32
  }
  func.func @transform_5(%arg0: i32) -> (i32, i32) {
    %c0_i32 = arith.constant 0 : i32
    %c0_i32_0 = arith.constant 0 : i32
    %c0_i32_1 = arith.constant 0 : i32
    return %c0_i32, %c0_i32_0 : i32, i32
  }
  func.func @transform_6(%arg0: i32) -> (i32, i32) {
    %c0_i32 = arith.constant 0 : i32
    %c0_i32_0 = arith.constant 0 : i32
    %c0_i32_1 = arith.constant 0 : i32
    return %c0_i32, %c0_i32_0 : i32, i32
  }
  func.func @transform_7(%arg0: i32) -> (i32, i32) {
    %c0_i32 = arith.constant 0 : i32
    %c0_i32_0 = arith.constant 0 : i32
    %c0_i32_1 = arith.constant 0 : i32
    return %c0_i32, %c0_i32_0 : i32, i32
  }
  func.func @transform_8(%arg0: i32) -> (i32, i32) {
    %c0_i32 = arith.constant 0 : i32
    %c0_i32_0 = arith.constant 0 : i32
    %c0_i32_1 = arith.constant 0 : i32
    return %c0_i32, %c0_i32_0 : i32, i32
  }
  func.func @transform_9(%arg0: i32) -> (i32, i32) {
    %c0_i32 = arith.constant 0 : i32
    %c0_i32_0 = arith.constant 0 : i32
    return %arg0, %c0_i32 : i32, i32
  }
}

</mosaic_0001>

<llo_original>
// kernel: tpu_custom_call.1
$region0: #{tpu_custom_call.1}
  #allocation0 [shape = 'u32[]', space=smem, size = 0x4, offset = 0x4, fixed_abs, tag = 'smem constant byte address 0x4 - core index']
  #allocation1 [shape = 'u32[72,128]{1,0:T(1,128)}', space=vmem, size = 0x9000, scoped, tag = 'internal scratch']
  %s0 = inlined_call_operand.vmem [shape: f32[256,64], index: 0, kind: input, shape index: {}]
  %s1 = inlined_call_operand.hbm [shape: bf16[64,128], index: 1, kind: input, shape index: {}]
  %s2 = inlined_call_operand.hbm [shape: f32[1,128], index: 2, kind: input, shape index: {}]
  %s3 = inlined_call_operand.vmem [shape: bf16[128,768], index: 3, kind: input, shape index: {}]
  %s4 = inlined_call_operand.hbm [shape: f32[1,768], index: 4, kind: input, shape index: {}]
  %s5 = inlined_call_operand.hbm [shape: bf16[768,512], index: 5, kind: input, shape index: {}]
  %s6 = inlined_call_operand.vmem [shape: f32[1,512], index: 6, kind: input, shape index: {}]
  %s7 = inlined_call_operand.hbm [shape: bf16[512,128], index: 7, kind: input, shape index: {}]
  %s8 = inlined_call_operand.hbm [shape: f32[1,128], index: 8, kind: input, shape index: {}]
  %s9 = inlined_call_operand.hbm [shape: f32[256,128], index: 9, kind: output, shape index: {}]
  %s10 = sld [smem:[#allocation0]]
  $region93: #{tpu_custom_call.1} parent=0
    _
  %s12 = ssub.s32 1, %s10
  %s13 = scalar_select 0, %s12, %s10
  $region1: #{tpu_custom_call.1} parent=0
    #allocation2 [shape = 'u8[16384]{0}', space=vmem, size = 0x4000, scoped, tag = 'input window, operand 1, single buffered']
    #allocation3 [shape = 's32[2]{0}', space=sflag, size = 0x8, scoped, tag = 'scoped memory for tpu_custom_call.1']
    #allocation4 [shape = 's32[2]{0}', space=sflag, size = 0x8, scoped, tag = 'scoped memory for tpu_custom_call.1']
    #allocation5 [shape = 'u8[512]{0}', space=vmem, size = 0x400, scoped, tag = 'input window, operand 2, single buffered']
    #allocation6 [shape = 's32[1]{0}', space=sflag, size = 0x4, scoped, tag = 'scoped memory for tpu_custom_call.1']
    #allocation7 [shape = 'u8[3072]{0}', space=vmem, size = 0xc00, scoped, tag = 'input window, operand 4, single buffered']
    #allocation8 [shape = 'u8[786432]{0}', space=vmem, size = 0xc0000, scoped, tag = 'input window, operand 5, single buffered']
    #allocation9 [shape = 's32[1]{0}', space=sflag, size = 0x4, scoped, tag = 'scoped memory for tpu_custom_call.1']
    #allocation10 [shape = 'u8[131072]{0}', space=vmem, size = 0x20000, scoped, tag = 'input window, operand 7, single buffered']
    #allocation11 [shape = 'u8[512]{0}', space=vmem, size = 0x400, scoped, tag = 'input window, operand 8, single buffered']
    #allocation12 [shape = 's32[1]{0}', space=sflag, size = 0x4, scoped, tag = 'scoped memory for tpu_custom_call.1']
    #allocation13 [shape = 'u8[131072]{0}', space=vmem, size = 0x20000, scoped, tag = 'output window, operand 0']
    %14 = vsyncpa [#allocation3], 0
    %15 = vsyncpa [#allocation6], 0
    %16 = vsyncpa [#allocation9], 0
    %17 = vsyncpa [#allocation12], 0
    %18 = vsyncpa [#allocation4], 0
    %s19 = scalar_lea.sflag [#allocation4], 1
    %20 = vsyncpa %s19, 0
    loop: start=0, step=1, limit=4
    $region2: #{tpu_custom_call.1} parent=1 // loop_pre_header
      _
    $region3: #{tpu_custom_call.1} parent=1 // loop_header
      %s22 = sphi 0, %s26
      %p23 = scmp.ge.s32.totalorder %s22, 4
      %s32 = sphi 0, %s34
      %s35 = sphi 0, %s32
      %s36 = sphi 0, %s35
      %s52 = sphi 0, %s36
      %s56 = sphi 0, %s56
      %s58 = sphi 0, %s56
      %s59 = sphi 0, %s58
      %s73 = sphi 0, %s59
      %s77 = sphi 0, %s77
      %s79 = sphi 0, %s77
      %s80 = sphi 0, %s79
      %s94 = sphi 0, %s80
      %s98 = sphi 0, %s98
      %s100 = sphi 0, %s98
      %s101 = sphi 0, %s100
      %s115 = sphi 0, %s101
      %s119 = sphi 0, %s119
      %s121 = sphi 0, %s119
      %s122 = sphi 0, %s121
      %s136 = sphi 0, %s122
      %s140 = sphi 0, %s140
      %s142 = sphi 0, %s140
      %s143 = sphi 0, %s142
      %s157 = sphi 0, %s143
      %s161 = sphi 0, %s161
      %s163 = sphi 0, %s161
      %s164 = sphi 0, %s163
      %s178 = sphi 0, %s164
      %s182 = sphi 0, %s182
      %s184 = sphi 0, %s182
      %s185 = sphi 0, %s184
      %s199 = sphi 0, %s185
      %s203 = sphi 0, %s203
      %s205 = sphi 0, %s203
      %s206 = sphi 0, %s205
      %s220 = sphi 0, %s206
      %s226 = sphi 0, %s228
      %s229 = sphi 0, %s226
      %s230 = sphi 0, %s229
      %s246 = sphi 0, %s230
    $region4: #{tpu_custom_call.1} parent=1 // loop_header_branch
      %25 = sbr.rel (%p23) target = $region8
    $region5: #{tpu_custom_call.1} parent=1 // loop_body
      %s27 = ssub.s32 %s22, 1
      %s28 = ssub.s32 %s22, 2
      %s29 = sadd.s32 %s22, 1
      %s30 = ssub.s32 %s22, %s29
      %p31 = scmp.eq.s32.totalorder %s30, 0
      %s33 = sadd.s32 %s32, 1
      %s34 = scalar_select %p31, %s32, %s33
      %p37 = pneg %p31
      %p38 = scmp.eq.s32.totalorder %s22, 1
      %p39 = por %p37, %p38
      %p40 = scmp.ne.s32.totalorder %s32, %s35
      %p41 = scmp.eq.s32.totalorder %s22, 0
      %p42 = por %p40, %p41
      %p43 = scmp.ne.s32.totalorder %s32, %s35
      %p44 = scmp.eq.s32.totalorder %s27, 1
      %p45 = por %p43, %p44
      %p46 = scmp.ne.s32.totalorder %s35, %s36
      %p47 = scmp.eq.s32.totalorder %s27, 0
      %p48 = por %p46, %p47
      %p49 = scmp.ne.s32.totalorder %s35, %s36
      %p50 = scmp.eq.s32.totalorder %s28, 1
      %p51 = por %p49, %p50
      %p53 = scmp.ne.s32.totalorder %s36, %s52
      %p54 = scmp.eq.s32.totalorder %s28, 0
      %p55 = por %p53, %p54
      %s57 = sadd.s32 %s56, 1
      %p60 = scmp.eq.s32.totalorder %s22, 1
      %p61 = scmp.ne.s32.totalorder %s56, %s58
      %p62 = scmp.eq.s32.totalorder %s22, 0
      %p63 = por %p61, %p62
      %p64 = scmp.ne.s32.totalorder %s56, %s58
      %p65 = scmp.eq.s32.totalorder %s27, 1
      %p66 = por %p64, %p65
      %p67 = scmp.ne.s32.totalorder %s58, %s59
      %p68 = scmp.eq.s32.totalorder %s27, 0
      %p69 = por %p67, %p68
      %p70 = scmp.ne.s32.totalorder %s58, %s59
      %p71 = scmp.eq.s32.totalorder %s28, 1
      %p72 = por %p70, %p71
      %p74 = scmp.ne.s32.totalorder %s59, %s73
      %p75 = scmp.eq.s32.totalorder %s28, 0
      %p76 = por %p74, %p75
      %s78 = sadd.s32 %s77, 1
      %p81 = scmp.eq.s32.totalorder %s22, 1
      %p82 = scmp.ne.s32.totalorder %s77, %s79
      %p83 = scmp.eq.s32.totalorder %s22, 0
      %p84 = por %p82, %p83
      %p85 = scmp.ne.s32.totalorder %s77, %s79
      %p86 = scmp.eq.s32.totalorder %s27, 1
      %p87 = por %p85, %p86
      %p88 = scmp.ne.s32.totalorder %s79, %s80
      %p89 = scmp.eq.s32.totalorder %s27, 0
      %p90 = por %p88, %p89
      %p91 = scmp.ne.s32.totalorder %s79, %s80
      %p92 = scmp.eq.s32.totalorder %s28, 1
      %p93 = por %p91, %p92
      %p95 = scmp.ne.s32.totalorder %s80, %s94
      %p96 = scmp.eq.s32.totalorder %s28, 0
      %p97 = por %p95, %p96
      %s99 = sadd.s32 %s98, 1
      %p102 = scmp.eq.s32.totalorder %s22, 1
      %p103 = scmp.ne.s32.totalorder %s98, %s100
      %p104 = scmp.eq.s32.totalorder %s22, 0
      %p105 = por %p103, %p104
      %p106 = scmp.ne.s32.totalorder %s98, %s100
      %p107 = scmp.eq.s32.totalorder %s27, 1
      %p108 = por %p106, %p107
      %p109 = scmp.ne.s32.totalorder %s100, %s101
      %p110 = scmp.eq.s32.totalorder %s27, 0
      %p111 = por %p109, %p110
      %p112 = scmp.ne.s32.totalorder %s100, %s101
      %p113 = scmp.eq.s32.totalorder %s28, 1
      %p114 = por %p112, %p113
      %p116 = scmp.ne.s32.totalorder %s101, %s115
      %p117 = scmp.eq.s32.totalorder %s28, 0
      %p118 = por %p116, %p117
      %s120 = sadd.s32 %s119, 1
      %p123 = scmp.eq.s32.totalorder %s22, 1
      %p124 = scmp.ne.s32.totalorder %s119, %s121
      %p125 = scmp.eq.s32.totalorder %s22, 0
      %p126 = por %p124, %p125
      %p127 = scmp.ne.s32.totalorder %s119, %s121
      %p128 = scmp.eq.s32.totalorder %s27, 1
      %p129 = por %p127, %p128
      %p130 = scmp.ne.s32.totalorder %s121, %s122
      %p131 = scmp.eq.s32.totalorder %s27, 0
      %p132 = por %p130, %p131
      %p133 = scmp.ne.s32.totalorder %s121, %s122
      %p134 = scmp.eq.s32.totalorder %s28, 1
      %p135 = por %p133, %p134
      %p137 = scmp.ne.s32.totalorder %s122, %s136
      %p138 = scmp.eq.s32.totalorder %s28, 0
      %p139 = por %p137, %p138
      %s141 = sadd.s32 %s140, 1
      %p144 = scmp.eq.s32.totalorder %s22, 1
      %p145 = scmp.ne.s32.totalorder %s140, %s142
      %p146 = scmp.eq.s32.totalorder %s22, 0
      %p147 = por %p145, %p146
      %p148 = scmp.ne.s32.totalorder %s140, %s142
      %p149 = scmp.eq.s32.totalorder %s27, 1
      %p150 = por %p148, %p149
      %p151 = scmp.ne.s32.totalorder %s142, %s143
      %p152 = scmp.eq.s32.totalorder %s27, 0
      %p153 = por %p151, %p152
      %p154 = scmp.ne.s32.totalorder %s142, %s143
      %p155 = scmp.eq.s32.totalorder %s28, 1
      %p156 = por %p154, %p155
      %p158 = scmp.ne.s32.totalorder %s143, %s157
      %p159 = scmp.eq.s32.totalorder %s28, 0
      %p160 = por %p158, %p159
      %s162 = sadd.s32 %s161, 1
      %p165 = scmp.eq.s32.totalorder %s22, 1
      %p166 = scmp.ne.s32.totalorder %s161, %s163
      %p167 = scmp.eq.s32.totalorder %s22, 0
      %p168 = por %p166, %p167
      %p169 = scmp.ne.s32.totalorder %s161, %s163
      %p170 = scmp.eq.s32.totalorder %s27, 1
      %p171 = por %p169, %p170
      %p172 = scmp.ne.s32.totalorder %s163, %s164
      %p173 = scmp.eq.s32.totalorder %s27, 0
      %p174 = por %p172, %p173
      %p175 = scmp.ne.s32.totalorder %s163, %s164
      %p176 = scmp.eq.s32.totalorder %s28, 1
      %p177 = por %p175, %p176
      %p179 = scmp.ne.s32.totalorder %s164, %s178
      %p180 = scmp.eq.s32.totalorder %s28, 0
      %p181 = por %p179, %p180
      %s183 = sadd.s32 %s182, 1
      %p186 = scmp.eq.s32.totalorder %s22, 1
      %p187 = scmp.ne.s32.totalorder %s182, %s184
      %p188 = scmp.eq.s32.totalorder %s22, 0
      %p189 = por %p187, %p188
      %p190 = scmp.ne.s32.totalorder %s182, %s184
      %p191 = scmp.eq.s32.totalorder %s27, 1
      %p192 = por %p190, %p191
      %p193 = scmp.ne.s32.totalorder %s184, %s185
      %p194 = scmp.eq.s32.totalorder %s27, 0
      %p195 = por %p193, %p194
      %p196 = scmp.ne.s32.totalorder %s184, %s185
      %p197 = scmp.eq.s32.totalorder %s28, 1
      %p198 = por %p196, %p197
      %p200 = scmp.ne.s32.totalorder %s185, %s199
      %p201 = scmp.eq.s32.totalorder %s28, 0
      %p202 = por %p200, %p201
      %s204 = sadd.s32 %s203, 1
      %p207 = scmp.eq.s32.totalorder %s22, 1
      %p208 = scmp.ne.s32.totalorder %s203, %s205
      %p209 = scmp.eq.s32.totalorder %s22, 0
      %p210 = por %p208, %p209
      %p211 = scmp.ne.s32.totalorder %s203, %s205
      %p212 = scmp.eq.s32.totalorder %s27, 1
      %p213 = por %p211, %p212
      %p214 = scmp.ne.s32.totalorder %s205, %s206
      %p215 = scmp.eq.s32.totalorder %s27, 0
      %p216 = por %p214, %p215
      %p217 = scmp.ne.s32.totalorder %s205, %s206
      %p218 = scmp.eq.s32.totalorder %s28, 1
      %p219 = por %p217, %p218
      %p221 = scmp.ne.s32.totalorder %s206, %s220
      %p222 = scmp.eq.s32.totalorder %s28, 0
      %p223 = por %p221, %p222
      %s224 = ssub.s32 %s22, %s29
      %p225 = scmp.eq.s32.totalorder %s224, 0
      %s227 = sadd.s32 %s226, 1
      %s228 = scalar_select %p225, %s226, %s227
      %p231 = pneg %p225
      %p232 = scmp.eq.s32.totalorder %s22, 1
      %p233 = por %p231, %p232
      %p234 = scmp.ne.s32.totalorder %s226, %s229
      %p235 = scmp.eq.s32.totalorder %s22, 0
      %p236 = por %p234, %p235
      %p237 = scmp.ne.s32.totalorder %s226, %s229
      %p238 = scmp.eq.s32.totalorder %s27, 1
      %p239 = por %p237, %p238
      %p240 = scmp.ne.s32.totalorder %s229, %s230
      %p241 = scmp.eq.s32.totalorder %s27, 0
      %p242 = por %p240, %p241
      %p243 = scmp.ne.s32.totalorder %s229, %s230
      %p244 = scmp.eq.s32.totalorder %s28, 1
      %p245 = por %p243, %p244
      %p247 = scmp.ne.s32.totalorder %s230, %s246
      %p248 = scmp.eq.s32.totalorder %s28, 0
      %p249 = por %p247, %p248
      %p250 = scmp.le.s32.totalorder 1, %s22
      %p251 = scmp.lt.s32.totalorder %s22, 3
      %p252 = pnand %p250, %p251
      %p253 = pneg %p252
      // Predicated region
      $region9: #{tpu_custom_call.1} parent=5 // pred_check
        _
      $region10: #{tpu_custom_call.1} parent=5 // pred_check_branch
        %255 = sbr.rel (%p252) target = $region12
      $region11: #{tpu_custom_call.1} parent=5 // pred_region
        %s256 = ssub.s32 %s22, 1
        // Predicated region
        $region13: #{tpu_custom_call.1} parent=11 // pred_check
          %p257 = pneg %p69
        $region14: #{tpu_custom_call.1} parent=11 // pred_check_branch
          %259 = sbr.rel (%p257) target = $region16
        $region15: #{tpu_custom_call.1} parent=11 // pred_region
          %261 = vsyncadd [#allocation3], 0
          %s262 = sshll.u32 %s1, 4
          %s263 = int_to_ptr.hbm [resolvable:$true] %s262
          %s264 = sshll.u32 [#allocation2], 4
          %s265 = int_to_ptr.vmem [resolvable:$true] %s264
          %270 = dma.hbm_to_vmem [thread:$0]  %s263, 512, %s265, [#allocation3], 64, 64, 4
        $region16: #{tpu_custom_call.1} parent=11 // pred_fallthru
          _
        // Predicated region
        $region17: #{tpu_custom_call.1} parent=11 // pred_check
          %p271 = pneg %p90
        $region18: #{tpu_custom_call.1} parent=11 // pred_check_branch
          %273 = sbr.rel (%p271) target = $region20
        $region19: #{tpu_custom_call.1} parent=11 // pred_region
          %275 = vsyncadd [#allocation6], 0
          %s277 = sshll.u32 %s2, 4
          %s278 = int_to_ptr.hbm [resolvable:$true] %s277
          %s279 = sshll.u32 [#allocation5], 4
          %s280 = int_to_ptr.vmem [resolvable:$true] %s279
          %282 = dma.hbm_to_vmem [thread:$0]  %s278, 16, %s280, [#allocation6]
        $region20: #{tpu_custom_call.1} parent=11 // pred_fallthru
          _
        // Predicated region
        $region21: #{tpu_custom_call.1} parent=11 // pred_check
          %p283 = pneg %p111
        $region22: #{tpu_custom_call.1} parent=11 // pred_check_branch
          %285 = sbr.rel (%p283) target = $region24
        $region23: #{tpu_custom_call.1} parent=11 // pred_region
          _
        $region24: #{tpu_custom_call.1} parent=11 // pred_fallthru
          _
        // Predicated region
        $region25: #{tpu_custom_call.1} parent=11 // pred_check
          %p286 = pneg %p132
        $region26: #{tpu_custom_call.1} parent=11 // pred_check_branch
          %288 = sbr.rel (%p286) target = $region28
        $region27: #{tpu_custom_call.1} parent=11 // pred_region
          %290 = vsyncadd [#allocation6], 0
          %s292 = sshll.u32 %s4, 4
          %s293 = int_to_ptr.hbm [resolvable:$true] %s292
          %s294 = sshll.u32 [#allocation7], 4
          %s295 = int_to_ptr.vmem [resolvable:$true] %s294
          %297 = dma.hbm_to_vmem [thread:$0]  %s293, 96, %s295, [#allocation6]
        $region28: #{tpu_custom_call.1} parent=11 // pred_fallthru
          _
        // Predicated region
        $region29: #{tpu_custom_call.1} parent=11 // pred_check
          %p298 = pneg %p153
        $region30: #{tpu_custom_call.1} parent=11 // pred_check_branch
          %300 = sbr.rel (%p298) target = $region32
        $region31: #{tpu_custom_call.1} parent=11 // pred_region
          %302 = vsyncadd [#allocation9], 0
          %s303 = sshll.u32 %s5, 4
          %s304 = int_to_ptr.hbm [resolvable:$true] %s303
          %s305 = sshll.u32 [#allocation8], 4
          %s306 = int_to_ptr.vmem [resolvable:$true] %s305
          %311 = dma.hbm_to_vmem [thread:$0]  %s304, 24576, %s306, [#allocation9], 256, 256, 16
        $region32: #{tpu_custom_call.1} parent=11 // pred_fallthru
          _
        // Predicated region
        $region33: #{tpu_custom_call.1} parent=11 // pred_check
          %p312 = pneg %p174
        $region34: #{tpu_custom_call.1} parent=11 // pred_check_branch
          %314 = sbr.rel (%p312) target = $region36
        $region35: #{tpu_custom_call.1} parent=11 // pred_region
          _
        $region36: #{tpu_custom_call.1} parent=11 // pred_fallthru
          _
        // Predicated region
        $region37: #{tpu_custom_call.1} parent=11 // pred_check
          %p315 = pneg %p195
        $region38: #{tpu_custom_call.1} parent=11 // pred_check_branch
          %317 = sbr.rel (%p315) target = $region40
        $region39: #{tpu_custom_call.1} parent=11 // pred_region
          %319 = vsyncadd [#allocation9], 0
          %s320 = sshll.u32 %s7, 4
          %s321 = int_to_ptr.hbm [resolvable:$true] %s320
          %s322 = sshll.u32 [#allocation10], 4
          %s323 = int_to_ptr.vmem [resolvable:$true] %s322
          %328 = dma.hbm_to_vmem [thread:$0]  %s321, 4096, %s323, [#allocation9], 64, 64, 4
        $region40: #{tpu_custom_call.1} parent=11 // pred_fallthru
          _
        // Predicated region
        $region41: #{tpu_custom_call.1} parent=11 // pred_check
          %p329 = pneg %p216
        $region42: #{tpu_custom_call.1} parent=11 // pred_check_branch
          %331 = sbr.rel (%p329) target = $region44
        $region43: #{tpu_custom_call.1} parent=11 // pred_region
          %333 = vsyncadd [#allocation12], 0
          %s335 = sshll.u32 %s8, 4
          %s336 = int_to_ptr.hbm [resolvable:$true] %s335
          %s337 = sshll.u32 [#allocation11], 4
          %s338 = int_to_ptr.vmem [resolvable:$true] %s337
          %340 = dma.hbm_to_vmem [thread:$0]  %s336, 16, %s338, [#allocation12]
        $region44: #{tpu_custom_call.1} parent=11 // pred_fallthru
          _
      $region12: #{tpu_custom_call.1} parent=5 // pred_fallthru
        _
      %p341 = scmp.lt.s32.totalorder %s22, 2
      // Predicated region
      $region45: #{tpu_custom_call.1} parent=5 // pred_check
        %p342 = pneg %p341
      $region46: #{tpu_custom_call.1} parent=5 // pred_check_branch
        %344 = sbr.rel (%p342) target = $region48
      $region47: #{tpu_custom_call.1} parent=5 // pred_region
        // Predicated region
        $region49: #{tpu_custom_call.1} parent=47 // pred_check
          %p345 = pneg %p42
        $region50: #{tpu_custom_call.1} parent=47 // pred_check_branch
          %347 = sbr.rel (%p345) target = $region52
        $region51: #{tpu_custom_call.1} parent=47 // pred_region
          %s348 = smul.u32 16, %s22
          %p349 = scmp.lt.s32.totalorder %s348, 31
          %s350 = scalar_select %p349, %s348, 31
          %s351 = smul.addr %s350, 8
          %s352 = scalar_lea.vmem %s0, %s351
          %s353 = smul.u32 16, %s22
        $region52: #{tpu_custom_call.1} parent=47 // pred_fallthru
          _
      $region48: #{tpu_custom_call.1} parent=5 // pred_fallthru
        _
      %p354 = scmp.le.s32.totalorder 1, %s22
      %p355 = scmp.lt.s32.totalorder %s22, 3
      %p356 = pnand %p354, %p355
      %p357 = pneg %p356
      // Predicated region
      $region53: #{tpu_custom_call.1} parent=5 // pred_check
        _
      $region54: #{tpu_custom_call.1} parent=5 // pred_check_branch
        %359 = sbr.rel (%p356) target = $region56
      $region55: #{tpu_custom_call.1} parent=5 // pred_region
        %s360 = ssub.s32 %s22, 1
        // Predicated region
        $region57: #{tpu_custom_call.1} parent=55 // pred_check
          %p361 = pneg %p69
        $region58: #{tpu_custom_call.1} parent=55 // pred_check_branch
          %363 = sbr.rel (%p361) target = $region60
        $region59: #{tpu_custom_call.1} parent=55 // pred_region
          %365 = dma.done [#allocation3], 512
        $region60: #{tpu_custom_call.1} parent=55 // pred_fallthru
          _
        // Predicated region
        $region61: #{tpu_custom_call.1} parent=55 // pred_check
          %p366 = pneg %p90
        $region62: #{tpu_custom_call.1} parent=55 // pred_check_branch
          %368 = sbr.rel (%p366) target = $region64
        $region63: #{tpu_custom_call.1} parent=55 // pred_region
          %370 = dma.done [#allocation6], 16
        $region64: #{tpu_custom_call.1} parent=55 // pred_fallthru
          _
        // Predicated region
        $region65: #{tpu_custom_call.1} parent=55 // pred_check
          %p371 = pneg %p132
        $region66: #{tpu_custom_call.1} parent=55 // pred_check_branch
          %373 = sbr.rel (%p371) target = $region68
        $region67: #{tpu_custom_call.1} parent=55 // pred_region
          %375 = dma.done [#allocation6], 96
        $region68: #{tpu_custom_call.1} parent=55 // pred_fallthru
          _
        // Predicated region
        $region69: #{tpu_custom_call.1} parent=55 // pred_check
          %p376 = pneg %p153
        $region70: #{tpu_custom_call.1} parent=55 // pred_check_branch
          %378 = sbr.rel (%p376) target = $region72
        $region71: #{tpu_custom_call.1} parent=55 // pred_region
          %380 = dma.done [#allocation9], 24576
        $region72: #{tpu_custom_call.1} parent=55 // pred_fallthru
          _
        // Predicated region
        $region73: #{tpu_custom_call.1} parent=55 // pred_check
          %p381 = pneg %p195
        $region74: #{tpu_custom_call.1} parent=55 // pred_check_branch
          %383 = sbr.rel (%p381) target = $region76
        $region75: #{tpu_custom_call.1} parent=55 // pred_region
          %385 = dma.done [#allocation9], 4096
        $region76: #{tpu_custom_call.1} parent=55 // pred_fallthru
          _
        // Predicated region
        $region77: #{tpu_custom_call.1} parent=55 // pred_check
          %p386 = pneg %p216
        $region78: #{tpu_custom_call.1} parent=55 // pred_check_branch
          %388 = sbr.rel (%p386) target = $region80
        $region79: #{tpu_custom_call.1} parent=55 // pred_region
          %390 = dma.done [#allocation12], 16
        $region80: #{tpu_custom_call.1} parent=55 // pred_fallthru
          _
        %s391 = smul.u32 16, %s27
        %p392 = scmp.lt.s32.totalorder %s391, 31
        %s393 = scalar_select %p392, %s391, 31
        %s394 = smul.addr %s393, 8
        %s395 = scalar_lea.vmem %s0, %s394
        %p396 = pneg %p48
        %p397 = pneg %p45
        %p398 = pneg %p69
        %p399 = pneg %p66
        %p400 = pneg %p90
        %p401 = pneg %p87
        %p402 = pneg %p111
        %p403 = pneg %p108
        %p404 = pneg %p132
        %p405 = pneg %p129
        %p406 = pneg %p153
        %p407 = pneg %p150
        %p408 = pneg %p174
        %p409 = pneg %p171
        %p410 = pneg %p195
        %p411 = pneg %p192
        %p412 = pneg %p216
        %p413 = pneg %p213
        %p414 = pneg %p242
        %p415 = pneg %p239
        %s416 = sand.u32 %s229, 1
        %s417 = scalar_lea.sflag [#allocation4], %s416
        %s418 = sand.u32 %s229, 1
        %s419 = smul.addr %s418, 128
        %s420 = scalar_lea.vmem [#allocation13], %s419
        %s421 = smul.u32 16, %s27
        %p422 = scmp.lt.s32.totalorder %s421, 31
        %s423 = scalar_select %p422, %s421, 31
        %s424 = smul.addr %s423, 8
        %s425 = scalar_lea.vmem %s0, %s424
        %s426 = smul.u32 16, %s27
        %s427 = smul.u32 16, %s27
        %v429 = vld [vmem:[%s425] sm:$0xff]
        %v430 = vld [vmem:[%s425 + $0x8] sm:$0xff]
        %v431 = vld [vmem:[%s425 + $0x10] sm:$0xff]
        %v432 = vld [vmem:[%s425 + $0x18] sm:$0xff]
        %v433 = vld [vmem:[%s425 + $0x20] sm:$0xff]
        %v434 = vld [vmem:[%s425 + $0x28] sm:$0xff]
        %v435 = vld [vmem:[%s425 + $0x30] sm:$0xff]
        %v436 = vld [vmem:[%s425 + $0x38] sm:$0xff]
        %v437 = vld [vmem:[%s425 + $0x40] sm:$0xff]
        %v438 = vld [vmem:[%s425 + $0x48] sm:$0xff]
        %v439 = vld [vmem:[%s425 + $0x50] sm:$0xff]
        %v440 = vld [vmem:[%s425 + $0x58] sm:$0xff]
        %v441 = vld [vmem:[%s425 + $0x60] sm:$0xff]
        %v442 = vld [vmem:[%s425 + $0x68] sm:$0xff]
        %v443 = vld [vmem:[%s425 + $0x70] sm:$0xff]
        %v444 = vld [vmem:[%s425 + $0x78] sm:$0xff]
        %v445 = vpack.c.bf16 %v430, %v429
        %v446 = vpack.c.bf16 %v432, %v431
        %v447 = vpack.c.bf16 %v434, %v433
        %v448 = vpack.c.bf16 %v436, %v435
        %v449 = vpack.c.bf16 %v438, %v437
        %v450 = vpack.c.bf16 %v440, %v439
        %v451 = vpack.c.bf16 %v442, %v441
        %v452 = vpack.c.bf16 %v444, %v443
        %v453 = vld [vmem:[#allocation2] sm:$0xf]
        %v454 = vld [vmem:[#allocation2 + $0x4] sm:$0xf]
        %v455 = vld [vmem:[#allocation2 + $0x8] sm:$0xf]
        %v456 = vld [vmem:[#allocation2 + $0xc] sm:$0xf]
        %v457 = vld [vmem:[#allocation2 + $0x10] sm:$0xf]
        %v458 = vld [vmem:[#allocation2 + $0x14] sm:$0xf]
        %v459 = vld [vmem:[#allocation2 + $0x18] sm:$0xf]
        %v460 = vld [vmem:[#allocation2 + $0x1c] sm:$0xf]
        %v461 = vld [vmem:[#allocation5] sm:$0x1]
        %v463 = vperm.slane %v461, 0
        %v473 = vunpack.c.l.b16 %v453
        %v474 = vunpack.c.l.b16 %v454
        %v475 = vunpack.c.l.b16 %v455
        %v476 = vunpack.c.l.b16 %v456
        %v477 = vunpack.c.l.b16 %v457
        %v478 = vunpack.c.l.b16 %v458
        %v479 = vunpack.c.l.b16 %v459
        %v480 = vunpack.c.l.b16 %v460
        %v481 = vpack.c.b16 %v474, %v473
        %v482 = vpack.c.b16 %v476, %v475
        %v483 = vpack.c.b16 %v478, %v477
        %v484 = vpack.c.b16 %v480, %v479
        %vm489 = vcmask 523264
        %v491 = vsel %vm489, %v445, 0
        %v494 = vsel %vm489, %v446, 0
        %v497 = vsel %vm489, %v447, 0
        %v500 = vsel %vm489, %v448, 0
        %v503 = vsel %vm489, %v449, 0
        %v506 = vsel %vm489, %v450, 0
        %v509 = vsel %vm489, %v451, 0
        %v512 = vsel %vm489, %v452, 0
        %514 = vmatpush.bf16.msra.mxu0 0
        %515 = vmatpush.bf16.msra.mxu0 0
        %516 = vmatpush.bf16.msra.mxu0 0
        %517 = vmatpush.bf16.msra.mxu0 0
        %518 = vmatpush.bf16.msra.mxu0 %v484
        %519 = vmatpush.bf16.msra.mxu0 %v483
        %520 = vmatpush.bf16.msra.mxu0 %v482
        %521 = vmatpush.bf16.msra.mxu0 %v481
        %522 = vmatmul.bf16.gmra.mxu0 %v491
        %v523 = vpop.f32.mrf.mxu0
        %v524 = vadd.f32 %v463, %v523
        %v525 = vpop.f32.mrf.mxu0
        %v526 = vadd.f32 %v463, %v525
        %527 = vmatmul.bf16.gmra.mxu0 %v494
        %v528 = vpop.f32.mrf.mxu0
        %v529 = vadd.f32 %v463, %v528
        %v530 = vpop.f32.mrf.mxu0
        %v531 = vadd.f32 %v463, %v530
        %532 = vmatmul.bf16.gmra.mxu0 %v497
        %v533 = vpop.f32.mrf.mxu0
        %v534 = vadd.f32 %v463, %v533
        %v535 = vpop.f32.mrf.mxu0
        %v536 = vadd.f32 %v463, %v535
        %537 = vmatmul.bf16.gmra.mxu0 %v500
        %v538 = vpop.f32.mrf.mxu0
        %v539 = vadd.f32 %v463, %v538
        %v540 = vpop.f32.mrf.mxu0
        %v541 = vadd.f32 %v463, %v540
        %542 = vmatmul.bf16.gmra.mxu0 %v503
        %v543 = vpop.f32.mrf.mxu0
        %v544 = vadd.f32 %v463, %v543
        %v545 = vpop.f32.mrf.mxu0
        %v546 = vadd.f32 %v463, %v545
        %547 = vmatmul.bf16.gmra.mxu0 %v506
        %v548 = vpop.f32.mrf.mxu0
        %v549 = vadd.f32 %v463, %v548
        %v550 = vpop.f32.mrf.mxu0
        %v551 = vadd.f32 %v463, %v550
        %552 = vmatmul.bf16.gmra.mxu0 %v509
        %v553 = vpop.f32.mrf.mxu0
        %v554 = vadd.f32 %v463, %v553
        %v555 = vpop.f32.mrf.mxu0
        %v556 = vadd.f32 %v463, %v555
        %557 = vmatmul.bf16.gmra.mxu0 %v512
        %v558 = vpop.f32.mrf.mxu0
        %v559 = vadd.f32 %v463, %v558
        %v560 = vpop.f32.mrf.mxu0
        %v561 = vadd.f32 %v463, %v560
        %562 = vdwg.mxu0
        %v563 = vmax.f32 %v524, 0.0
        %v564 = vmax.f32 %v526, 0.0
        %v565 = vmax.f32 %v529, 0.0
        %v566 = vmax.f32 %v531, 0.0
        %v567 = vmax.f32 %v534, 0.0
        %v568 = vmax.f32 %v536, 0.0
        %v569 = vmax.f32 %v539, 0.0
        %v570 = vmax.f32 %v541, 0.0
        %v571 = vmax.f32 %v544, 0.0
        %v572 = vmax.f32 %v546, 0.0
        %v573 = vmax.f32 %v549, 0.0
        %v574 = vmax.f32 %v551, 0.0
        %v575 = vmax.f32 %v554, 0.0
        %v576 = vmax.f32 %v556, 0.0
        %v577 = vmax.f32 %v559, 0.0
        %v578 = vmax.f32 %v561, 0.0
        %v579 = vpack.c.bf16 %v564, %v563
        %v580 = vpack.c.bf16 %v566, %v565
        %v581 = vpack.c.bf16 %v568, %v567
        %v582 = vpack.c.bf16 %v570, %v569
        %v583 = vpack.c.bf16 %v572, %v571
        %v584 = vpack.c.bf16 %v574, %v573
        %v585 = vpack.c.bf16 %v576, %v575
        %v586 = vpack.c.bf16 %v578, %v577
        %v587 = vld [vmem:[%s3] sm:$0xff]
        %v588 = vld [vmem:[%s3 + $0x8] sm:$0xff]
        %v589 = vld [vmem:[%s3 + $0x10] sm:$0xff]
        %v590 = vld [vmem:[%s3 + $0x18] sm:$0xff]
        %v591 = vld [vmem:[%s3 + $0x20] sm:$0xff]
        %v592 = vld [vmem:[%s3 + $0x28] sm:$0xff]
        %v593 = vld [vmem:[%s3 + $0x30] sm:$0xff]
        %v594 = vld [vmem:[%s3 + $0x38] sm:$0xff]
        %v595 = vld [vmem:[%s3 + $0x40] sm:$0xff]
        %v596 = vld [vmem:[%s3 + $0x48] sm:$0xff]
        %v597 = vld [vmem:[%s3 + $0x50] sm:$0xff]
        %v598 = vld [vmem:[%s3 + $0x58] sm:$0xff]
        %v599 = vld [vmem:[%s3 + $0x60] sm:$0xff]
        %v600 = vld [vmem:[%s3 + $0x68] sm:$0xff]
        %v601 = vld [vmem:[%s3 + $0x70] sm:$0xff]
        %v602 = vld [vmem:[%s3 + $0x78] sm:$0xff]
        %v603 = vld [vmem:[%s3 + $0x80] sm:$0xff]
        %v604 = vld [vmem:[%s3 + $0x88] sm:$0xff]
        %v605 = vld [vmem:[%s3 + $0x90] sm:$0xff]
        %v606 = vld [vmem:[%s3 + $0x98] sm:$0xff]
        %v607 = vld [vmem:[%s3 + $0xa0] sm:$0xff]
        %v608 = vld [vmem:[%s3 + $0xa8] sm:$0xff]
        %v609 = vld [vmem:[%s3 + $0xb0] sm:$0xff]
        %v610 = vld [vmem:[%s3 + $0xb8] sm:$0xff]
        %v611 = vld [vmem:[%s3 + $0xc0] sm:$0xff]
        %v612 = vld [vmem:[%s3 + $0xc8] sm:$0xff]
        %v613 = vld [vmem:[%s3 + $0xd0] sm:$0xff]
        %v614 = vld [vmem:[%s3 + $0xd8] sm:$0xff]
        %v615 = vld [vmem:[%s3 + $0xe0] sm:$0xff]
        %v616 = vld [vmem:[%s3 + $0xe8] sm:$0xff]
        %v617 = vld [vmem:[%s3 + $0xf0] sm:$0xff]
        %v618 = vld [vmem:[%s3 + $0xf8] sm:$0xff]
        %v619 = vld [vmem:[%s3 + $0x100] sm:$0xff]
        %v620 = vld [vmem:[%s3 + $0x108] sm:$0xff]
        %v621 = vld [vmem:[%s3 + $0x110] sm:$0xff]
        %v622 = vld [vmem:[%s3 + $0x118] sm:$0xff]
        %v623 = vld [vmem:[%s3 + $0x120] sm:$0xff]
        %v624 = vld [vmem:[%s3 + $0x128] sm:$0xff]
        %v625 = vld [vmem:[%s3 + $0x130] sm:$0xff]
        %v626 = vld [vmem:[%s3 + $0x138] sm:$0xff]
        %v627 = vld [vmem:[%s3 + $0x140] sm:$0xff]
        %v628 = vld [vmem:[%s3 + $0x148] sm:$0xff]
        %v629 = vld [vmem:[%s3 + $0x150] sm:$0xff]
        %v630 = vld [vmem:[%s3 + $0x158] sm:$0xff]
        %v631 = vld [vmem:[%s3 + $0x160] sm:$0xff]
        %v632 = vld [vmem:[%s3 + $0x168] sm:$0xff]
        %v633 = vld [vmem:[%s3 + $0x170] sm:$0xff]
        %v634 = vld [vmem:[%s3 + $0x178] sm:$0xff]
        %v635 = vld [vmem:[#allocation7] sm:$0x3f]
        %v637 = vperm.slane %v635, 0
        %v638 = vperm.slane %v635, 1
        %v639 = vperm.slane %v635, 2
        %v640 = vperm.slane %v635, 3
        %v641 = vperm.slane %v635, 4
        %v642 = vperm.slane %v635, 5
        %v697 = vunpack.c.l.b16 %v587
        %v698 = vunpack.c.h.b16 %v587
        %v699 = vunpack.c.l.b16 %v588
        %v700 = vunpack.c.h.b16 %v588
        %v701 = vunpack.c.l.b16 %v589
        %v702 = vunpack.c.h.b16 %v589
        %v703 = vunpack.c.l.b16 %v590
        %v704 = vunpack.c.h.b16 %v590
        %v705 = vunpack.c.l.b16 %v591
        %v706 = vunpack.c.h.b16 %v591
        %v707 = vunpack.c.l.b16 %v592
        %v708 = vunpack.c.h.b16 %v592
        %v709 = vunpack.c.l.b16 %v593
        %v710 = vunpack.c.h.b16 %v593
        %v711 = vunpack.c.l.b16 %v594
        %v712 = vunpack.c.h.b16 %v594
        %v713 = vunpack.c.l.b16 %v595
        %v714 = vunpack.c.h.b16 %v595
        %v715 = vunpack.c.l.b16 %v596
        %v716 = vunpack.c.h.b16 %v596
        %v717 = vunpack.c.l.b16 %v597
        %v718 = vunpack.c.h.b16 %v597
        %v719 = vunpack.c.l.b16 %v598
        %v720 = vunpack.c.h.b16 %v598
        %v721 = vunpack.c.l.b16 %v599
        %v722 = vunpack.c.h.b16 %v599
        %v723 = vunpack.c.l.b16 %v600
        %v724 = vunpack.c.h.b16 %v600
        %v725 = vunpack.c.l.b16 %v601
        %v726 = vunpack.c.h.b16 %v601
        %v727 = vunpack.c.l.b16 %v602
        %v728 = vunpack.c.h.b16 %v602
        %v729 = vunpack.c.l.b16 %v603
        %v730 = vunpack.c.h.b16 %v603
        %v731 = vunpack.c.l.b16 %v604
        %v732 = vunpack.c.h.b16 %v604
        %v733 = vunpack.c.l.b16 %v605
        %v734 = vunpack.c.h.b16 %v605
        %v735 = vunpack.c.l.b16 %v606
        %v736 = vunpack.c.h.b16 %v606
        %v737 = vunpack.c.l.b16 %v607
        %v738 = vunpack.c.h.b16 %v607
        %v739 = vunpack.c.l.b16 %v608
        %v740 = vunpack.c.h.b16 %v608
        %v741 = vunpack.c.l.b16 %v609
        %v742 = vunpack.c.h.b16 %v609
        %v743 = vunpack.c.l.b16 %v610
        %v744 = vunpack.c.h.b16 %v610
        %v745 = vunpack.c.l.b16 %v611
        %v746 = vunpack.c.h.b16 %v611
        %v747 = vunpack.c.l.b16 %v612
        %v748 = vunpack.c.h.b16 %v612
        %v749 = vunpack.c.l.b16 %v613
        %v750 = vunpack.c.h.b16 %v613
        %v751 = vunpack.c.l.b16 %v614
        %v752 = vunpack.c.h.b16 %v614
        %v753 = vunpack.c.l.b16 %v615
        %v754 = vunpack.c.h.b16 %v615
        %v755 = vunpack.c.l.b16 %v616
        %v756 = vunpack.c.h.b16 %v616
        %v757 = vunpack.c.l.b16 %v617
        %v758 = vunpack.c.h.b16 %v617
        %v759 = vunpack.c.l.b16 %v618
        %v760 = vunpack.c.h.b16 %v618
        %v761 = vunpack.c.l.b16 %v619
        %v762 = vunpack.c.h.b16 %v619
        %v763 = vunpack.c.l.b16 %v620
        %v764 = vunpack.c.h.b16 %v620
        %v765 = vunpack.c.l.b16 %v621
        %v766 = vunpack.c.h.b16 %v621
        %v767 = vunpack.c.l.b16 %v622
        %v768 = vunpack.c.h.b16 %v622
        %v769 = vunpack.c.l.b16 %v623
        %v770 = vunpack.c.h.b16 %v623
        %v771 = vunpack.c.l.b16 %v624
        %v772 = vunpack.c.h.b16 %v624
        %v773 = vunpack.c.l.b16 %v625
        %v774 = vunpack.c.h.b16 %v625
        %v775 = vunpack.c.l.b16 %v626
        %v776 = vunpack.c.h.b16 %v626
        %v777 = vunpack.c.l.b16 %v627
        %v778 = vunpack.c.h.b16 %v627
        %v779 = vunpack.c.l.b16 %v628
        %v780 = vunpack.c.h.b16 %v628
        %v781 = vunpack.c.l.b16 %v629
        %v782 = vunpack.c.h.b16 %v629
        %v783 = vunpack.c.l.b16 %v630
        %v784 = vunpack.c.h.b16 %v630
        %v785 = vunpack.c.l.b16 %v631
        %v786 = vunpack.c.h.b16 %v631
        %v787 = vunpack.c.l.b16 %v632
        %v788 = vunpack.c.h.b16 %v632
        %v789 = vunpack.c.l.b16 %v633
        %v790 = vunpack.c.h.b16 %v633
        %v791 = vunpack.c.l.b16 %v634
        %v792 = vunpack.c.h.b16 %v634
        %v793 = vpack.c.b16 %v703, %v697
        %v794 = vpack.c.b16 %v704, %v698
        %v795 = vpack.c.b16 %v705, %v699
        %v796 = vpack.c.b16 %v706, %v700
        %v797 = vpack.c.b16 %v707, %v701
        %v798 = vpack.c.b16 %v708, %v702
        %v799 = vpack.c.b16 %v715, %v709
        %v800 = vpack.c.b16 %v716, %v710
        %v801 = vpack.c.b16 %v717, %v711
        %v802 = vpack.c.b16 %v718, %v712
        %v803 = vpack.c.b16 %v719, %v713
        %v804 = vpack.c.b16 %v720, %v714
        %v805 = vpack.c.b16 %v727, %v721
        %v806 = vpack.c.b16 %v728, %v722
        %v807 = vpack.c.b16 %v729, %v723
        %v808 = vpack.c.b16 %v730, %v724
        %v809 = vpack.c.b16 %v731, %v725
        %v810 = vpack.c.b16 %v732, %v726
        %v811 = vpack.c.b16 %v739, %v733
        %v812 = vpack.c.b16 %v740, %v734
        %v813 = vpack.c.b16 %v741, %v735
        %v814 = vpack.c.b16 %v742, %v736
        %v815 = vpack.c.b16 %v743, %v737
        %v816 = vpack.c.b16 %v744, %v738
        %v817 = vpack.c.b16 %v751, %v745
        %v818 = vpack.c.b16 %v752, %v746
        %v819 = vpack.c.b16 %v753, %v747
        %v820 = vpack.c.b16 %v754, %v748
        %v821 = vpack.c.b16 %v755, %v749
        %v822 = vpack.c.b16 %v756, %v750
        %v823 = vpack.c.b16 %v763, %v757
        %v824 = vpack.c.b16 %v764, %v758
        %v825 = vpack.c.b16 %v765, %v759
        %v826 = vpack.c.b16 %v766, %v760
        %v827 = vpack.c.b16 %v767, %v761
        %v828 = vpack.c.b16 %v768, %v762
        %v829 = vpack.c.b16 %v775, %v769
        %v830 = vpack.c.b16 %v776, %v770
        %v831 = vpack.c.b16 %v777, %v771
        %v832 = vpack.c.b16 %v778, %v772
        %v833 = vpack.c.b16 %v779, %v773
        %v834 = vpack.c.b16 %v780, %v774
        %v835 = vpack.c.b16 %v787, %v781
        %v836 = vpack.c.b16 %v788, %v782
        %v837 = vpack.c.b16 %v789, %v783
        %v838 = vpack.c.b16 %v790, %v784
        %v839 = vpack.c.b16 %v791, %v785
        %v840 = vpack.c.b16 %v792, %v786
        %889 = vmatpush.bf16.msra.mxu0 %v835
        %890 = vmatpush.bf16.msra.mxu0 %v829
        %891 = vmatpush.bf16.msra.mxu0 %v823
        %892 = vmatpush.bf16.msra.mxu0 %v817
        %893 = vmatpush.bf16.msra.mxu0 %v811
        %894 = vmatpush.bf16.msra.mxu0 %v805
        %895 = vmatpush.bf16.msra.mxu0 %v799
        %896 = vmatpush.bf16.msra.mxu0 %v793
        %897 = vmatmul.bf16.gmra.mxu0 %v579
        %v898 = vpop.f32.mrf.mxu0
        %v899 = vadd.f32 %v637, %v898
        %v900 = vpop.f32.mrf.mxu0
        %v901 = vadd.f32 %v637, %v900
        %902 = vmatmul.bf16.gmra.mxu0 %v580
        %v903 = vpop.f32.mrf.mxu0
        %v904 = vadd.f32 %v637, %v903
        %v905 = vpop.f32.mrf.mxu0
        %v906 = vadd.f32 %v637, %v905
        %907 = vmatmul.bf16.gmra.mxu0 %v581
        %v908 = vpop.f32.mrf.mxu0
        %v909 = vadd.f32 %v637, %v908
        %v910 = vpop.f32.mrf.mxu0
        %v911 = vadd.f32 %v637, %v910
        %912 = vmatmul.bf16.gmra.mxu0 %v582
        %v913 = vpop.f32.mrf.mxu0
        %v914 = vadd.f32 %v637, %v913
        %v915 = vpop.f32.mrf.mxu0
        %v916 = vadd.f32 %v637, %v915
        %917 = vmatmul.bf16.gmra.mxu0 %v583
        %v918 = vpop.f32.mrf.mxu0
        %v919 = vadd.f32 %v637, %v918
        %v920 = vpop.f32.mrf.mxu0
        %v921 = vadd.f32 %v637, %v920
        %922 = vmatmul.bf16.gmra.mxu0 %v584
        %v923 = vpop.f32.mrf.mxu0
        %v924 = vadd.f32 %v637, %v923
        %v925 = vpop.f32.mrf.mxu0
        %v926 = vadd.f32 %v637, %v925
        %927 = vmatmul.bf16.gmra.mxu0 %v585
        %v928 = vpop.f32.mrf.mxu0
        %v929 = vadd.f32 %v637, %v928
        %v930 = vpop.f32.mrf.mxu0
        %v931 = vadd.f32 %v637, %v930
        %932 = vmatmul.bf16.gmra.mxu0 %v586
        %v933 = vpop.f32.mrf.mxu0
        %v934 = vadd.f32 %v637, %v933
        %v935 = vpop.f32.mrf.mxu0
        %v936 = vadd.f32 %v637, %v935
        %937 = vdwg.mxu0
        %938 = vmatpush.bf16.msra.mxu0 %v836
        %939 = vmatpush.bf16.msra.mxu0 %v830
        %940 = vmatpush.bf16.msra.mxu0 %v824
        %941 = vmatpush.bf16.msra.mxu0 %v818
        %942 = vmatpush.bf16.msra.mxu0 %v812
        %943 = vmatpush.bf16.msra.mxu0 %v806
        %944 = vmatpush.bf16.msra.mxu0 %v800
        %945 = vmatpush.bf16.msra.mxu0 %v794
        %946 = vmatmul.bf16.gmra.mxu0 %v579
        %v947 = vpop.f32.mrf.mxu0
        %v948 = vadd.f32 %v638, %v947
        %v949 = vpop.f32.mrf.mxu0
        %v950 = vadd.f32 %v638, %v949
        %951 = vmatmul.bf16.gmra.mxu0 %v580
        %v952 = vpop.f32.mrf.mxu0
        %v953 = vadd.f32 %v638, %v952
        %v954 = vpop.f32.mrf.mxu0
        %v955 = vadd.f32 %v638, %v954
        %956 = vmatmul.bf16.gmra.mxu0 %v581
        %v957 = vpop.f32.mrf.mxu0
        %v958 = vadd.f32 %v638, %v957
        %v959 = vpop.f32.mrf.mxu0
        %v960 = vadd.f32 %v638, %v959
        %961 = vmatmul.bf16.gmra.mxu0 %v582
        %v962 = vpop.f32.mrf.mxu0
        %v963 = vadd.f32 %v638, %v962
        %v964 = vpop.f32.mrf.mxu0
        %v965 = vadd.f32 %v638, %v964
        %966 = vmatmul.bf16.gmra.mxu0 %v583
        %v967 = vpop.f32.mrf.mxu0
        %v968 = vadd.f32 %v638, %v967
        %v969 = vpop.f32.mrf.mxu0
        %v970 = vadd.f32 %v638, %v969
        %971 = vmatmul.bf16.gmra.mxu0 %v584
        %v972 = vpop.f32.mrf.mxu0
        %v973 = vadd.f32 %v638, %v972
        %v974 = vpop.f32.mrf.mxu0
        %v975 = vadd.f32 %v638, %v974
        %976 = vmatmul.bf16.gmra.mxu0 %v585
        %v977 = vpop.f32.mrf.mxu0
        %v978 = vadd.f32 %v638, %v977
        %v979 = vpop.f32.mrf.mxu0
        %v980 = vadd.f32 %v638, %v979
        %981 = vmatmul.bf16.gmra.mxu0 %v586
        %v982 = vpop.f32.mrf.mxu0
        %v983 = vadd.f32 %v638, %v982
        %v984 = vpop.f32.mrf.mxu0
        %v985 = vadd.f32 %v638, %v984
        %986 = vdwg.mxu0
        %987 = vmatpush.bf16.msra.mxu0 %v837
        %988 = vmatpush.bf16.msra.mxu0 %v831
        %989 = vmatpush.bf16.msra.mxu0 %v825
        %990 = vmatpush.bf16.msra.mxu0 %v819
        %991 = vmatpush.bf16.msra.mxu0 %v813
        %992 = vmatpush.bf16.msra.mxu0 %v807
        %993 = vmatpush.bf16.msra.mxu0 %v801
        %994 = vmatpush.bf16.msra.mxu0 %v795
        %995 = vmatmul.bf16.gmra.mxu0 %v579
        %v996 = vpop.f32.mrf.mxu0
        %v997 = vadd.f32 %v639, %v996
        %v998 = vpop.f32.mrf.mxu0
        %v999 = vadd.f32 %v639, %v998
        %1000 = vmatmul.bf16.gmra.mxu0 %v580
        %v1001 = vpop.f32.mrf.mxu0
        %v1002 = vadd.f32 %v639, %v1001
        %v1003 = vpop.f32.mrf.mxu0
        %v1004 = vadd.f32 %v639, %v1003
        %1005 = vmatmul.bf16.gmra.mxu0 %v581
        %v1006 = vpop.f32.mrf.mxu0
        %v1007 = vadd.f32 %v639, %v1006
        %v1008 = vpop.f32.mrf.mxu0
        %v1009 = vadd.f32 %v639, %v1008
        %1010 = vmatmul.bf16.gmra.mxu0 %v582
        %v1011 = vpop.f32.mrf.mxu0
        %v1012 = vadd.f32 %v639, %v1011
        %v1013 = vpop.f32.mrf.mxu0
        %v1014 = vadd.f32 %v639, %v1013
        %1015 = vmatmul.bf16.gmra.mxu0 %v583
        %v1016 = vpop.f32.mrf.mxu0
        %v1017 = vadd.f32 %v639, %v1016
        %v1018 = vpop.f32.mrf.mxu0
        %v1019 = vadd.f32 %v639, %v1018
        %1020 = vmatmul.bf16.gmra.mxu0 %v584
        %v1021 = vpop.f32.mrf.mxu0
        %v1022 = vadd.f32 %v639, %v1021
        %v1023 = vpop.f32.mrf.mxu0
        %v1024 = vadd.f32 %v639, %v1023
        %1025 = vmatmul.bf16.gmra.mxu0 %v585
        %v1026 = vpop.f32.mrf.mxu0
        %v1027 = vadd.f32 %v639, %v1026
        %v1028 = vpop.f32.mrf.mxu0
        %v1029 = vadd.f32 %v639, %v1028
        %1030 = vmatmul.bf16.gmra.mxu0 %v586
        %v1031 = vpop.f32.mrf.mxu0
        %v1032 = vadd.f32 %v639, %v1031
        %v1033 = vpop.f32.mrf.mxu0
        %v1034 = vadd.f32 %v639, %v1033
        %1035 = vdwg.mxu0
        %1036 = vmatpush.bf16.msra.mxu0 %v838
        %1037 = vmatpush.bf16.msra.mxu0 %v832
        %1038 = vmatpush.bf16.msra.mxu0 %v826
        %1039 = vmatpush.bf16.msra.mxu0 %v820
        %1040 = vmatpush.bf16.msra.mxu0 %v814
        %1041 = vmatpush.bf16.msra.mxu0 %v808
        %1042 = vmatpush.bf16.msra.mxu0 %v802
        %1043 = vmatpush.bf16.msra.mxu0 %v796
        %1044 = vmatmul.bf16.gmra.mxu0 %v579
        %v1045 = vpop.f32.mrf.mxu0
        %v1046 = vadd.f32 %v640, %v1045
        %v1047 = vpop.f32.mrf.mxu0
        %v1048 = vadd.f32 %v640, %v1047
        %1049 = vmatmul.bf16.gmra.mxu0 %v580
        %v1050 = vpop.f32.mrf.mxu0
        %v1051 = vadd.f32 %v640, %v1050
        %v1052 = vpop.f32.mrf.mxu0
        %v1053 = vadd.f32 %v640, %v1052
        %1054 = vmatmul.bf16.gmra.mxu0 %v581
        %v1055 = vpop.f32.mrf.mxu0
        %v1056 = vadd.f32 %v640, %v1055
        %v1057 = vpop.f32.mrf.mxu0
        %v1058 = vadd.f32 %v640, %v1057
        %1059 = vmatmul.bf16.gmra.mxu0 %v582
        %v1060 = vpop.f32.mrf.mxu0
        %v1061 = vadd.f32 %v640, %v1060
        %v1062 = vpop.f32.mrf.mxu0
        %v1063 = vadd.f32 %v640, %v1062
        %1064 = vmatmul.bf16.gmra.mxu0 %v583
        %v1065 = vpop.f32.mrf.mxu0
        %v1066 = vadd.f32 %v640, %v1065
        %v1067 = vpop.f32.mrf.mxu0
        %v1068 = vadd.f32 %v640, %v1067
        %1069 = vmatmul.bf16.gmra.mxu0 %v584
        %v1070 = vpop.f32.mrf.mxu0
        %v1071 = vadd.f32 %v640, %v1070
        %v1072 = vpop.f32.mrf.mxu0
        %v1073 = vadd.f32 %v640, %v1072
        %1074 = vmatmul.bf16.gmra.mxu0 %v585
        %v1075 = vpop.f32.mrf.mxu0
        %v1076 = vadd.f32 %v640, %v1075
        %v1077 = vpop.f32.mrf.mxu0
        %v1078 = vadd.f32 %v640, %v1077
        %1079 = vmatmul.bf16.gmra.mxu0 %v586
        %v1080 = vpop.f32.mrf.mxu0
        %v1081 = vadd.f32 %v640, %v1080
        %v1082 = vpop.f32.mrf.mxu0
        %v1083 = vadd.f32 %v640, %v1082
        %1084 = vdwg.mxu0
        %1085 = vmatpush.bf16.msra.mxu0 %v839
        %1086 = vmatpush.bf16.msra.mxu0 %v833
        %1087 = vmatpush.bf16.msra.mxu0 %v827
        %1088 = vmatpush.bf16.msra.mxu0 %v821
        %1089 = vmatpush.bf16.msra.mxu0 %v815
        %1090 = vmatpush.bf16.msra.mxu0 %v809
        %1091 = vmatpush.bf16.msra.mxu0 %v803
        %1092 = vmatpush.bf16.msra.mxu0 %v797
        %1093 = vmatmul.bf16.gmra.mxu0 %v579
        %v1094 = vpop.f32.mrf.mxu0
        %v1095 = vadd.f32 %v641, %v1094
        %v1096 = vpop.f32.mrf.mxu0
        %v1097 = vadd.f32 %v641, %v1096
        %1098 = vmatmul.bf16.gmra.mxu0 %v580
        %v1099 = vpop.f32.mrf.mxu0
        %v1100 = vadd.f32 %v641, %v1099
        %v1101 = vpop.f32.mrf.mxu0
        %v1102 = vadd.f32 %v641, %v1101
        %1103 = vmatmul.bf16.gmra.mxu0 %v581
        %v1104 = vpop.f32.mrf.mxu0
        %v1105 = vadd.f32 %v641, %v1104
        %v1106 = vpop.f32.mrf.mxu0
        %v1107 = vadd.f32 %v641, %v1106
        %1108 = vmatmul.bf16.gmra.mxu0 %v582
        %v1109 = vpop.f32.mrf.mxu0
        %v1110 = vadd.f32 %v641, %v1109
        %v1111 = vpop.f32.mrf.mxu0
        %v1112 = vadd.f32 %v641, %v1111
        %1113 = vmatmul.bf16.gmra.mxu0 %v583
        %v1114 = vpop.f32.mrf.mxu0
        %v1115 = vadd.f32 %v641, %v1114
        %v1116 = vpop.f32.mrf.mxu0
        %v1117 = vadd.f32 %v641, %v1116
        %1118 = vmatmul.bf16.gmra.mxu0 %v584
        %v1119 = vpop.f32.mrf.mxu0
        %v1120 = vadd.f32 %v641, %v1119
        %v1121 = vpop.f32.mrf.mxu0
        %v1122 = vadd.f32 %v641, %v1121
        %1123 = vmatmul.bf16.gmra.mxu0 %v585
        %v1124 = vpop.f32.mrf.mxu0
        %v1125 = vadd.f32 %v641, %v1124
        %v1126 = vpop.f32.mrf.mxu0
        %v1127 = vadd.f32 %v641, %v1126
        %1128 = vmatmul.bf16.gmra.mxu0 %v586
        %v1129 = vpop.f32.mrf.mxu0
        %v1130 = vadd.f32 %v641, %v1129
        %v1131 = vpop.f32.mrf.mxu0
        %v1132 = vadd.f32 %v641, %v1131
        %1133 = vdwg.mxu0
        %1134 = vmatpush.bf16.msra.mxu0 %v840
        %1135 = vmatpush.bf16.msra.mxu0 %v834
        %1136 = vmatpush.bf16.msra.mxu0 %v828
        %1137 = vmatpush.bf16.msra.mxu0 %v822
        %1138 = vmatpush.bf16.msra.mxu0 %v816
        %1139 = vmatpush.bf16.msra.mxu0 %v810
        %1140 = vmatpush.bf16.msra.mxu0 %v804
        %1141 = vmatpush.bf16.msra.mxu0 %v798
        %1142 = vmatmul.bf16.gmra.mxu0 %v579
        %v1143 = vpop.f32.mrf.mxu0
        %v1144 = vadd.f32 %v642, %v1143
        %v1145 = vpop.f32.mrf.mxu0
        %v1146 = vadd.f32 %v642, %v1145
        %1147 = vmatmul.bf16.gmra.mxu0 %v580
        %v1148 = vpop.f32.mrf.mxu0
        %v1149 = vadd.f32 %v642, %v1148
        %v1150 = vpop.f32.mrf.mxu0
        %v1151 = vadd.f32 %v642, %v1150
        %1152 = vmatmul.bf16.gmra.mxu0 %v581
        %v1153 = vpop.f32.mrf.mxu0
        %v1154 = vadd.f32 %v642, %v1153
        %v1155 = vpop.f32.mrf.mxu0
        %v1156 = vadd.f32 %v642, %v1155
        %1157 = vmatmul.bf16.gmra.mxu0 %v582
        %v1158 = vpop.f32.mrf.mxu0
        %v1159 = vadd.f32 %v642, %v1158
        %v1160 = vpop.f32.mrf.mxu0
        %v1161 = vadd.f32 %v642, %v1160
        %1162 = vmatmul.bf16.gmra.mxu0 %v583
        %v1163 = vpop.f32.mrf.mxu0
        %v1164 = vadd.f32 %v642, %v1163
        %v1165 = vpop.f32.mrf.mxu0
        %v1166 = vadd.f32 %v642, %v1165
        %1167 = vmatmul.bf16.gmra.mxu0 %v584
        %v1168 = vpop.f32.mrf.mxu0
        %v1169 = vadd.f32 %v642, %v1168
        %v1170 = vpop.f32.mrf.mxu0
        %v1171 = vadd.f32 %v642, %v1170
        %1172 = vmatmul.bf16.gmra.mxu0 %v585
        %v1173 = vpop.f32.mrf.mxu0
        %v1174 = vadd.f32 %v642, %v1173
        %v1175 = vpop.f32.mrf.mxu0
        %v1176 = vadd.f32 %v642, %v1175
        %1177 = vmatmul.bf16.gmra.mxu0 %v586
        %v1178 = vpop.f32.mrf.mxu0
        %v1179 = vadd.f32 %v642, %v1178
        %v1180 = vpop.f32.mrf.mxu0
        %v1181 = vadd.f32 %v642, %v1180
        %1182 = vdwg.mxu0
        %v1183 = vmax.f32 %v899, 0.0
        %v1184 = vmax.f32 %v948, 0.0
        %v1185 = vmax.f32 %v997, 0.0
        %v1186 = vmax.f32 %v1046, 0.0
        %v1187 = vmax.f32 %v1095, 0.0
        %v1188 = vmax.f32 %v1144, 0.0
        %v1189 = vmax.f32 %v901, 0.0
        %v1190 = vmax.f32 %v950, 0.0
        %v1191 = vmax.f32 %v999, 0.0
        %v1192 = vmax.f32 %v1048, 0.0
        %v1193 = vmax.f32 %v1097, 0.0
        %v1194 = vmax.f32 %v1146, 0.0
        %v1195 = vmax.f32 %v904, 0.0
        %v1196 = vmax.f32 %v953, 0.0
        %v1197 = vmax.f32 %v1002, 0.0
        %v1198 = vmax.f32 %v1051, 0.0
        %v1199 = vmax.f32 %v1100, 0.0
        %v1200 = vmax.f32 %v1149, 0.0
        %v1201 = vmax.f32 %v906, 0.0
        %v1202 = vmax.f32 %v955, 0.0
        %v1203 = vmax.f32 %v1004, 0.0
        %v1204 = vmax.f32 %v1053, 0.0
        %v1205 = vmax.f32 %v1102, 0.0
        %v1206 = vmax.f32 %v1151, 0.0
        %v1207 = vmax.f32 %v909, 0.0
        %v1208 = vmax.f32 %v958, 0.0
        %v1209 = vmax.f32 %v1007, 0.0
        %v1210 = vmax.f32 %v1056, 0.0
        %v1211 = vmax.f32 %v1105, 0.0
        %v1212 = vmax.f32 %v1154, 0.0
        %v1213 = vmax.f32 %v911, 0.0
        %v1214 = vmax.f32 %v960, 0.0
        %v1215 = vmax.f32 %v1009, 0.0
        %v1216 = vmax.f32 %v1058, 0.0
        %v1217 = vmax.f32 %v1107, 0.0
        %v1218 = vmax.f32 %v1156, 0.0
        %v1219 = vmax.f32 %v914, 0.0
        %v1220 = vmax.f32 %v963, 0.0
        %v1221 = vmax.f32 %v1012, 0.0
        %v1222 = vmax.f32 %v1061, 0.0
        %v1223 = vmax.f32 %v1110, 0.0
        %v1224 = vmax.f32 %v1159, 0.0
        %v1225 = vmax.f32 %v916, 0.0
        %v1226 = vmax.f32 %v965, 0.0
        %v1227 = vmax.f32 %v1014, 0.0
        %v1228 = vmax.f32 %v1063, 0.0
        %v1229 = vmax.f32 %v1112, 0.0
        %v1230 = vmax.f32 %v1161, 0.0
        %v1231 = vmax.f32 %v919, 0.0
        %v1232 = vmax.f32 %v968, 0.0
        %v1233 = vmax.f32 %v1017, 0.0
        %v1234 = vmax.f32 %v1066, 0.0
        %v1235 = vmax.f32 %v1115, 0.0
        %v1236 = vmax.f32 %v1164, 0.0
        %v1237 = vmax.f32 %v921, 0.0
        %v1238 = vmax.f32 %v970, 0.0
        %v1239 = vmax.f32 %v1019, 0.0
        %v1240 = vmax.f32 %v1068, 0.0
        %v1241 = vmax.f32 %v1117, 0.0
        %v1242 = vmax.f32 %v1166, 0.0
        %v1243 = vmax.f32 %v924, 0.0
        %v1244 = vmax.f32 %v973, 0.0
        %v1245 = vmax.f32 %v1022, 0.0
        %v1246 = vmax.f32 %v1071, 0.0
        %v1247 = vmax.f32 %v1120, 0.0
        %v1248 = vmax.f32 %v1169, 0.0
        %v1249 = vmax.f32 %v926, 0.0
        %v1250 = vmax.f32 %v975, 0.0
        %v1251 = vmax.f32 %v1024, 0.0
        %v1252 = vmax.f32 %v1073, 0.0
        %v1253 = vmax.f32 %v1122, 0.0
        %v1254 = vmax.f32 %v1171, 0.0
        %v1255 = vmax.f32 %v929, 0.0
        %v1256 = vmax.f32 %v978, 0.0
        %v1257 = vmax.f32 %v1027, 0.0
        %v1258 = vmax.f32 %v1076, 0.0
        %v1259 = vmax.f32 %v1125, 0.0
        %v1260 = vmax.f32 %v1174, 0.0
        %v1261 = vmax.f32 %v931, 0.0
        %v1262 = vmax.f32 %v980, 0.0
        %v1263 = vmax.f32 %v1029, 0.0
        %v1264 = vmax.f32 %v1078, 0.0
        %v1265 = vmax.f32 %v1127, 0.0
        %v1266 = vmax.f32 %v1176, 0.0
        %v1267 = vmax.f32 %v934, 0.0
        %v1268 = vmax.f32 %v983, 0.0
        %v1269 = vmax.f32 %v1032, 0.0
        %v1270 = vmax.f32 %v1081, 0.0
        %v1271 = vmax.f32 %v1130, 0.0
        %v1272 = vmax.f32 %v1179, 0.0
        %v1273 = vmax.f32 %v936, 0.0
        %v1274 = vmax.f32 %v985, 0.0
        %v1275 = vmax.f32 %v1034, 0.0
        %v1276 = vmax.f32 %v1083, 0.0
        %v1277 = vmax.f32 %v1132, 0.0
        %v1278 = vmax.f32 %v1181, 0.0
        %v1279 = vpack.c.bf16 %v1189, %v1183
        %v1280 = vpack.c.bf16 %v1190, %v1184
        %v1281 = vpack.c.bf16 %v1191, %v1185
        %v1282 = vpack.c.bf16 %v1192, %v1186
        %v1283 = vpack.c.bf16 %v1193, %v1187
        %v1284 = vpack.c.bf16 %v1194, %v1188
        %v1285 = vpack.c.bf16 %v1201, %v1195
        %v1286 = vpack.c.bf16 %v1202, %v1196
        %v1287 = vpack.c.bf16 %v1203, %v1197
        %v1288 = vpack.c.bf16 %v1204, %v1198
        %v1289 = vpack.c.bf16 %v1205, %v1199
        %v1290 = vpack.c.bf16 %v1206, %v1200
        %v1291 = vpack.c.bf16 %v1213, %v1207
        %v1292 = vpack.c.bf16 %v1214, %v1208
        %v1293 = vpack.c.bf16 %v1215, %v1209
        %v1294 = vpack.c.bf16 %v1216, %v1210
        %v1295 = vpack.c.bf16 %v1217, %v1211
        %v1296 = vpack.c.bf16 %v1218, %v1212
        %v1297 = vpack.c.bf16 %v1225, %v1219
        %v1298 = vpack.c.bf16 %v1226, %v1220
        %v1299 = vpack.c.bf16 %v1227, %v1221
        %v1300 = vpack.c.bf16 %v1228, %v1222
        %v1301 = vpack.c.bf16 %v1229, %v1223
        %v1302 = vpack.c.bf16 %v1230, %v1224
        %v1303 = vpack.c.bf16 %v1237, %v1231
        %v1304 = vpack.c.bf16 %v1238, %v1232
        %v1305 = vpack.c.bf16 %v1239, %v1233
        %v1306 = vpack.c.bf16 %v1240, %v1234
        %v1307 = vpack.c.bf16 %v1241, %v1235
        %v1308 = vpack.c.bf16 %v1242, %v1236
        %v1309 = vpack.c.bf16 %v1249, %v1243
        %v1310 = vpack.c.bf16 %v1250, %v1244
        %v1311 = vpack.c.bf16 %v1251, %v1245
        %v1312 = vpack.c.bf16 %v1252, %v1246
        %v1313 = vpack.c.bf16 %v1253, %v1247
        %v1314 = vpack.c.bf16 %v1254, %v1248
        %v1315 = vpack.c.bf16 %v1261, %v1255
        %v1316 = vpack.c.bf16 %v1262, %v1256
        %v1317 = vpack.c.bf16 %v1263, %v1257
        %v1318 = vpack.c.bf16 %v1264, %v1258
        %v1319 = vpack.c.bf16 %v1265, %v1259
        %v1320 = vpack.c.bf16 %v1266, %v1260
        %v1321 = vpack.c.bf16 %v1273, %v1267
        %v1322 = vpack.c.bf16 %v1274, %v1268
        %v1323 = vpack.c.bf16 %v1275, %v1269
        %v1324 = vpack.c.bf16 %v1276, %v1270
        %v1325 = vpack.c.bf16 %v1277, %v1271
        %v1326 = vpack.c.bf16 %v1278, %v1272
        %v1327 = vld [vmem:[#allocation8] sm:$0xff]
        %v1328 = vld [vmem:[#allocation8 + $0x8] sm:$0xff]
        %v1329 = vld [vmem:[#allocation8 + $0x10] sm:$0xff]
        %v1330 = vld [vmem:[#allocation8 + $0x18] sm:$0xff]
        %v1331 = vld [vmem:[#allocation8 + $0x20] sm:$0xff]
        %v1332 = vld [vmem:[#allocation8 + $0x28] sm:$0xff]
        %v1333 = vld [vmem:[#allocation8 + $0x30] sm:$0xff]
        %v1334 = vld [vmem:[#allocation8 + $0x38] sm:$0xff]
        %v1335 = vld [vmem:[#allocation8 + $0x40] sm:$0xff]
        %v1336 = vld [vmem:[#allocation8 + $0x48] sm:$0xff]
        %v1337 = vld [vmem:[#allocation8 + $0x50] sm:$0xff]
        %v1338 = vld [vmem:[#allocation8 + $0x58] sm:$0xff]
        %v1339 = vld [vmem:[#allocation8 + $0x60] sm:$0xff]
        %v1340 = vld [vmem:[#allocation8 + $0x68] sm:$0xff]
        %v1341 = vld [vmem:[#allocation8 + $0x70] sm:$0xff]
        %v1342 = vld [vmem:[#allocation8 + $0x78] sm:$0xff]
        %v1343 = vld [vmem:[#allocation8 + $0x80] sm:$0xff]
        %v1344 = vld [vmem:[#allocation8 + $0x88] sm:$0xff]
        %v1345 = vld [vmem:[#allocation8 + $0x90] sm:$0xff]
        %v1346 = vld [vmem:[#allocation8 + $0x98] sm:$0xff]
        %v1347 = vld [vmem:[#allocation8 + $0xa0] sm:$0xff]
        %v1348 = vld [vmem:[#allocation8 + $0xa8] sm:$0xff]
        %v1349 = vld [vmem:[#allocation8 + $0xb0] sm:$0xff]
        %v1350 = vld [vmem:[#allocation8 + $0xb8] sm:$0xff]
        %v1351 = vld [vmem:[#allocation8 + $0xc0] sm:$0xff]
        %v1352 = vld [vmem:[#allocation8 + $0xc8] sm:$0xff]
        %v1353 = vld [vmem:[#allocation8 + $0xd0] sm:$0xff]
        %v1354 = vld [vmem:[#allocation8 + $0xd8] sm:$0xff]
        %v1355 = vld [vmem:[#allocation8 + $0xe0] sm:$0xff]
        %v1356 = vld [vmem:[#allocation8 + $0xe8] sm:$0xff]
        %v1357 = vld [vmem:[#allocation8 + $0xf0] sm:$0xff]
        %v1358 = vld [vmem:[#allocation8 + $0xf8] sm:$0xff]
        %v1359 = vld [vmem:[#allocation8 + $0x100] sm:$0xff]
        %v1360 = vld [vmem:[#allocation8 + $0x108] sm:$0xff]
        %v1361 = vld [vmem:[#allocation8 + $0x110] sm:$0xff]
        %v1362 = vld [vmem:[#allocation8 + $0x118] sm:$0xff]
        %v1363 = vld [vmem:[#allocation8 + $0x120] sm:$0xff]
        %v1364 = vld [vmem:[#allocation8 + $0x128] sm:$0xff]
        %v1365 = vld [vmem:[#allocation8 + $0x130] sm:$0xff]
        %v1366 = vld [vmem:[#allocation8 + $0x138] sm:$0xff]
        %v1367 = vld [vmem:[#allocation8 + $0x140] sm:$0xff]
        %v1368 = vld [vmem:[#allocation8 + $0x148] sm:$0xff]
        %v1369 = vld [vmem:[#allocation8 + $0x150] sm:$0xff]
        %v1370 = vld [vmem:[#allocation8 + $0x158] sm:$0xff]
        %v1371 = vld [vmem:[#allocation8 + $0x160] sm:$0xff]
        %v1372 = vld [vmem:[#allocation8 + $0x168] sm:$0xff]
        %v1373 = vld [vmem:[#allocation8 + $0x170] sm:$0xff]
        %v1374 = vld [vmem:[#allocation8 + $0x178] sm:$0xff]
        %v1375 = vld [vmem:[#allocation8 + $0x180] sm:$0xff]
        %v1376 = vld [vmem:[#allocation8 + $0x188] sm:$0xff]
        %v1377 = vld [vmem:[#allocation8 + $0x190] sm:$0xff]
        %v1378 = vld [vmem:[#allocation8 + $0x198] sm:$0xff]
        %v1379 = vld [vmem:[#allocation8 + $0x1a0] sm:$0xff]
        %v1380 = vld [vmem:[#allocation8 + $0x1a8] sm:$0xff]
        %v1381 = vld [vmem:[#allocation8 + $0x1b0] sm:$0xff]
        %v1382 = vld [vmem:[#allocation8 + $0x1b8] sm:$0xff]
        %v1383 = vld [vmem:[#allocation8 + $0x1c0] sm:$0xff]
        %v1384 = vld [vmem:[#allocation8 + $0x1c8] sm:$0xff]
        %v1385 = vld [vmem:[#allocation8 + $0x1d0] sm:$0xff]
        %v1386 = vld [vmem:[#allocation8 + $0x1d8] sm:$0xff]
        %v1387 = vld [vmem:[#allocation8 + $0x1e0] sm:$0xff]
        %v1388 = vld [vmem:[#allocation8 + $0x1e8] sm:$0xff]
        %v1389 = vld [vmem:[#allocation8 + $0x1f0] sm:$0xff]
        %v1390 = vld [vmem:[#allocation8 + $0x1f8] sm:$0xff]
        %v1391 = vld [vmem:[#allocation8 + $0x200] sm:$0xff]
        %v1392 = vld [vmem:[#allocation8 + $0x208] sm:$0xff]
        %v1393 = vld [vmem:[#allocation8 + $0x210] sm:$0xff]
        %v1394 = vld [vmem:[#allocation8 + $0x218] sm:$0xff]
        %v1395 = vld [vmem:[#allocation8 + $0x220] sm:$0xff]
        %v1396 = vld [vmem:[#allocation8 + $0x228] sm:$0xff]
        %v1397 = vld [vmem:[#allocation8 + $0x230] sm:$0xff]
        %v1398 = vld [vmem:[#allocation8 + $0x238] sm:$0xff]
        %v1399 = vld [vmem:[#allocation8 + $0x240] sm:$0xff]
        %v1400 = vld [vmem:[#allocation8 + $0x248] sm:$0xff]
        %v1401 = vld [vmem:[#allocation8 + $0x250] sm:$0xff]
        %v1402 = vld [vmem:[#allocation8 + $0x258] sm:$0xff]
        %v1403 = vld [vmem:[#allocation8 + $0x260] sm:$0xff]
        %v1404 = vld [vmem:[#allocation8 + $0x268] sm:$0xff]
        %v1405 = vld [vmem:[#allocation8 + $0x270] sm:$0xff]
        %v1406 = vld [vmem:[#allocation8 + $0x278] sm:$0xff]
        %v1407 = vld [vmem:[#allocation8 + $0x280] sm:$0xff]
        %v1408 = vld [vmem:[#allocation8 + $0x288] sm:$0xff]
        %v1409 = vld [vmem:[#allocation8 + $0x290] sm:$0xff]
        %v1410 = vld [vmem:[#allocation8 + $0x298] sm:$0xff]
        %v1411 = vld [vmem:[#allocation8 + $0x2a0] sm:$0xff]
        %v1412 = vld [vmem:[#allocation8 + $0x2a8] sm:$0xff]
        %v1413 = vld [vmem:[#allocation8 + $0x2b0] sm:$0xff]
        %v1414 = vld [vmem:[#allocation8 + $0x2b8] sm:$0xff]
        %v1415 = vld [vmem:[#allocation8 + $0x2c0] sm:$0xff]
        %v1416 = vld [vmem:[#allocation8 + $0x2c8] sm:$0xff]
        %v1417 = vld [vmem:[#allocation8 + $0x2d0] sm:$0xff]
        %v1418 = vld [vmem:[#allocation8 + $0x2d8] sm:$0xff]
        %v1419 = vld [vmem:[#allocation8 + $0x2e0] sm:$0xff]
        %v1420 = vld [vmem:[#allocation8 + $0x2e8] sm:$0xff]
        %v1421 = vld [vmem:[#allocation8 + $0x2f0] sm:$0xff]
        %v1422 = vld [vmem:[#allocation8 + $0x2f8] sm:$0xff]
        %v1423 = vld [vmem:[#allocation8 + $0x300] sm:$0xff]
        %v1424 = vld [vmem:[#allocation8 + $0x308] sm:$0xff]
        %v1425 = vld [vmem:[#allocation8 + $0x310] sm:$0xff]
        %v1426 = vld [vmem:[#allocation8 + $0x318] sm:$0xff]
        %v1427 = vld [vmem:[#allocation8 + $0x320] sm:$0xff]
        %v1428 = vld [vmem:[#allocation8 + $0x328] sm:$0xff]
        %v1429 = vld [vmem:[#allocation8 + $0x330] sm:$0xff]
        %v1430 = vld [vmem:[#allocation8 + $0x338] sm:$0xff]
        %v1431 = vld [vmem:[#allocation8 + $0x340] sm:$0xff]
        %v1432 = vld [vmem:[#allocation8 + $0x348] sm:$0xff]
        %v1433 = vld [vmem:[#allocation8 + $0x350] sm:$0xff]
        %v1434 = vld [vmem:[#allocation8 + $0x358] sm:$0xff]
        %v1435 = vld [vmem:[#allocation8 + $0x360] sm:$0xff]
        %v1436 = vld [vmem:[#allocation8 + $0x368] sm:$0xff]
        %v1437 = vld [vmem:[#allocation8 + $0x370] sm:$0xff]
        %v1438 = vld [vmem:[#allocation8 + $0x378] sm:$0xff]
        %v1439 = vld [vmem:[#allocation8 + $0x380] sm:$0xff]
        %v1440 = vld [vmem:[#allocation8 + $0x388] sm:$0xff]
        %v1441 = vld [vmem:[#allocation8 + $0x390] sm:$0xff]
        %v1442 = vld [vmem:[#allocation8 + $0x398] sm:$0xff]
        %v1443 = vld [vmem:[#allocation8 + $0x3a0] sm:$0xff]
        %v1444 = vld [vmem:[#allocation8 + $0x3a8] sm:$0xff]
        %v1445 = vld [vmem:[#allocation8 + $0x3b0] sm:$0xff]
        %v1446 = vld [vmem:[#allocation8 + $0x3b8] sm:$0xff]
        %v1447 = vld [vmem:[#allocation8 + $0x3c0] sm:$0xff]
        %v1448 = vld [vmem:[#allocation8 + $0x3c8] sm:$0xff]
        %v1449 = vld [vmem:[#allocation8 + $0x3d0] sm:$0xff]
        %v1450 = vld [vmem:[#allocation8 + $0x3d8] sm:$0xff]
        %v1451 = vld [vmem:[#allocation8 + $0x3e0] sm:$0xff]
        %v1452 = vld [vmem:[#allocation8 + $0x3e8] sm:$0xff]
        %v1453 = vld [vmem:[#allocation8 + $0x3f0] sm:$0xff]
        %v1454 = vld [vmem:[#allocation8 + $0x3f8] sm:$0xff]
        %v1455 = vld [vmem:[#allocation8 + $0x400] sm:$0xff]
        %v1456 = vld [vmem:[#allocation8 + $0x408] sm:$0xff]
        %v1457 = vld [vmem:[#allocation8 + $0x410] sm:$0xff]
        %v1458 = vld [vmem:[#allocation8 + $0x418] sm:$0xff]
        %v1459 = vld [vmem:[#allocation8 + $0x420] sm:$0xff]
        %v1460 = vld [vmem:[#allocation8 + $0x428] sm:$0xff]
        %v1461 = vld [vmem:[#allocation8 + $0x430] sm:$0xff]
        %v1462 = vld [vmem:[#allocation8 + $0x438] sm:$0xff]
        %v1463 = vld [vmem:[#allocation8 + $0x440] sm:$0xff]
        %v1464 = vld [vmem:[#allocation8 + $0x448] sm:$0xff]
        %v1465 = vld [vmem:[#allocation8 + $0x450] sm:$0xff]
        %v1466 = vld [vmem:[#allocation8 + $0x458] sm:$0xff]
        %v1467 = vld [vmem:[#allocation8 + $0x460] sm:$0xff]
        %v1468 = vld [vmem:[#allocation8 + $0x468] sm:$0xff]
        %v1469 = vld [vmem:[#allocation8 + $0x470] sm:$0xff]
        %v1470 = vld [vmem:[#allocation8 + $0x478] sm:$0xff]
        %v1471 = vld [vmem:[#allocation8 + $0x480] sm:$0xff]
        %v1472 = vld [vmem:[#allocation8 + $0x488] sm:$0xff]
        %v1473 = vld [vmem:[#allocation8 + $0x490] sm:$0xff]
        %v1474 = vld [vmem:[#allocation8 + $0x498] sm:$0xff]
        %v1475 = vld [vmem:[#allocation8 + $0x4a0] sm:$0xff]
        %v1476 = vld [vmem:[#allocation8 + $0x4a8] sm:$0xff]
        %v1477 = vld [vmem:[#allocation8 + $0x4b0] sm:$0xff]
        %v1478 = vld [vmem:[#allocation8 + $0x4b8] sm:$0xff]
        %v1479 = vld [vmem:[#allocation8 + $0x4c0] sm:$0xff]
        %v1480 = vld [vmem:[#allocation8 + $0x4c8] sm:$0xff]
        %v1481 = vld [vmem:[#allocation8 + $0x4d0] sm:$0xff]
        %v1482 = vld [vmem:[#allocation8 + $0x4d8] sm:$0xff]
        %v1483 = vld [vmem:[#allocation8 + $0x4e0] sm:$0xff]
        %v1484 = vld [vmem:[#allocation8 + $0x4e8] sm:$0xff]
        %v1485 = vld [vmem:[#allocation8 + $0x4f0] sm:$0xff]
        %v1486 = vld [vmem:[#allocation8 + $0x4f8] sm:$0xff]
        %v1487 = vld [vmem:[#allocation8 + $0x500] sm:$0xff]
        %v1488 = vld [vmem:[#allocation8 + $0x508] sm:$0xff]
        %v1489 = vld [vmem:[#allocation8 + $0x510] sm:$0xff]
        %v1490 = vld [vmem:[#allocation8 + $0x518] sm:$0xff]
        %v1491 = vld [vmem:[#allocation8 + $0x520] sm:$0xff]
        %v1492 = vld [vmem:[#allocation8 + $0x528] sm:$0xff]
        %v1493 = vld [vmem:[#allocation8 + $0x530] sm:$0xff]
        %v1494 = vld [vmem:[#allocation8 + $0x538] sm:$0xff]
        %v1495 = vld [vmem:[#allocation8 + $0x540] sm:$0xff]
        %v1496 = vld [vmem:[#allocation8 + $0x548] sm:$0xff]
        %v1497 = vld [vmem:[#allocation8 + $0x550] sm:$0xff]
        %v1498 = vld [vmem:[#allocation8 + $0x558] sm:$0xff]
        %v1499 = vld [vmem:[#allocation8 + $0x560] sm:$0xff]
        %v1500 = vld [vmem:[#allocation8 + $0x568] sm:$0xff]
        %v1501 = vld [vmem:[#allocation8 + $0x570] sm:$0xff]
        %v1502 = vld [vmem:[#allocation8 + $0x578] sm:$0xff]
        %v1503 = vld [vmem:[#allocation8 + $0x580] sm:$0xff]
        %v1504 = vld [vmem:[#allocation8 + $0x588] sm:$0xff]
        %v1505 = vld [vmem:[#allocation8 + $0x590] sm:$0xff]
        %v1506 = vld [vmem:[#allocation8 + $0x598] sm:$0xff]
        %v1507 = vld [vmem:[#allocation8 + $0x5a0] sm:$0xff]
        %v1508 = vld [vmem:[#allocation8 + $0x5a8] sm:$0xff]
        %v1509 = vld [vmem:[#allocation8 + $0x5b0] sm:$0xff]
        %v1510 = vld [vmem:[#allocation8 + $0x5b8] sm:$0xff]
        %v1511 = vld [vmem:[#allocation8 + $0x5c0] sm:$0xff]
        %v1512 = vld [vmem:[#allocation8 + $0x5c8] sm:$0xff]
        %v1513 = vld [vmem:[#allocation8 + $0x5d0] sm:$0xff]
        %v1514 = vld [vmem:[#allocation8 + $0x5d8] sm:$0xff]
        %v1515 = vld [vmem:[#allocation8 + $0x5e0] sm:$0xff]
        %v1516 = vld [vmem:[#allocation8 + $0x5e8] sm:$0xff]
        %v1517 = vld [vmem:[#allocation8 + $0x5f0] sm:$0xff]
        %v1518 = vld [vmem:[#allocation8 + $0x5f8] sm:$0xff]
        %v1519 = vld [vmem:[%s6] sm:$0xf]
        %v1521 = vperm.slane %v1519, 0
        %v1522 = vperm.slane %v1519, 1
        %v1523 = vperm.slane %v1519, 2
        %v1524 = vperm.slane %v1519, 3
        %v1721 = vunpack.c.l.b16 %v1327
        %v1722 = vunpack.c.h.b16 %v1327
        %v1723 = vunpack.c.l.b16 %v1328
        %v1724 = vunpack.c.h.b16 %v1328
        %v1725 = vunpack.c.l.b16 %v1329
        %v1726 = vunpack.c.h.b16 %v1329
        %v1727 = vunpack.c.l.b16 %v1330
        %v1728 = vunpack.c.h.b16 %v1330
        %v1729 = vunpack.c.l.b16 %v1331
        %v1730 = vunpack.c.h.b16 %v1331
        %v1731 = vunpack.c.l.b16 %v1332
        %v1732 = vunpack.c.h.b16 %v1332
        %v1733 = vunpack.c.l.b16 %v1333
        %v1734 = vunpack.c.h.b16 %v1333
        %v1735 = vunpack.c.l.b16 %v1334
        %v1736 = vunpack.c.h.b16 %v1334
        %v1737 = vunpack.c.l.b16 %v1335
        %v1738 = vunpack.c.h.b16 %v1335
        %v1739 = vunpack.c.l.b16 %v1336
        %v1740 = vunpack.c.h.b16 %v1336
        %v1741 = vunpack.c.l.b16 %v1337
        %v1742 = vunpack.c.h.b16 %v1337
        %v1743 = vunpack.c.l.b16 %v1338
        %v1744 = vunpack.c.h.b16 %v1338
        %v1745 = vunpack.c.l.b16 %v1339
        %v1746 = vunpack.c.h.b16 %v1339
        %v1747 = vunpack.c.l.b16 %v1340
        %v1748 = vunpack.c.h.b16 %v1340
        %v1749 = vunpack.c.l.b16 %v1341
        %v1750 = vunpack.c.h.b16 %v1341
        %v1751 = vunpack.c.l.b16 %v1342
        %v1752 = vunpack.c.h.b16 %v1342
        %v1753 = vunpack.c.l.b16 %v1343
        %v1754 = vunpack.c.h.b16 %v1343
        %v1755 = vunpack.c.l.b16 %v1344
        %v1756 = vunpack.c.h.b16 %v1344
        %v1757 = vunpack.c.l.b16 %v1345
        %v1758 = vunpack.c.h.b16 %v1345
        %v1759 = vunpack.c.l.b16 %v1346
        %v1760 = vunpack.c.h.b16 %v1346
        %v1761 = vunpack.c.l.b16 %v1347
        %v1762 = vunpack.c.h.b16 %v1347
        %v1763 = vunpack.c.l.b16 %v1348
        %v1764 = vunpack.c.h.b16 %v1348
        %v1765 = vunpack.c.l.b16 %v1349
        %v1766 = vunpack.c.h.b16 %v1349
        %v1767 = vunpack.c.l.b16 %v1350
        %v1768 = vunpack.c.h.b16 %v1350
        %v1769 = vunpack.c.l.b16 %v1351
        %v1770 = vunpack.c.h.b16 %v1351
        %v1771 = vunpack.c.l.b16 %v1352
        %v1772 = vunpack.c.h.b16 %v1352
        %v1773 = vunpack.c.l.b16 %v1353
        %v1774 = vunpack.c.h.b16 %v1353
        %v1775 = vunpack.c.l.b16 %v1354
        %v1776 = vunpack.c.h.b16 %v1354
        %v1777 = vunpack.c.l.b16 %v1355
        %v1778 = vunpack.c.h.b16 %v1355
        %v1779 = vunpack.c.l.b16 %v1356
        %v1780 = vunpack.c.h.b16 %v1356
        %v1781 = vunpack.c.l.b16 %v1357
        %v1782 = vunpack.c.h.b16 %v1357
        %v1783 = vunpack.c.l.b16 %v1358
        %v1784 = vunpack.c.h.b16 %v1358
        %v1785 = vunpack.c.l.b16 %v1359
        %v1786 = vunpack.c.h.b16 %v1359
        %v1787 = vunpack.c.l.b16 %v1360
        %v1788 = vunpack.c.h.b16 %v1360
        %v1789 = vunpack.c.l.b16 %v1361
        %v1790 = vunpack.c.h.b16 %v1361
        %v1791 = vunpack.c.l.b16 %v1362
        %v1792 = vunpack.c.h.b16 %v1362
        %v1793 = vunpack.c.l.b16 %v1363
        %v1794 = vunpack.c.h.b16 %v1363
        %v1795 = vunpack.c.l.b16 %v1364
        %v1796 = vunpack.c.h.b16 %v1364
        %v1797 = vunpack.c.l.b16 %v1365
        %v1798 = vunpack.c.h.b16 %v1365
        %v1799 = vunpack.c.l.b16 %v1366
        %v1800 = vunpack.c.h.b16 %v1366
        %v1801 = vunpack.c.l.b16 %v1367
        %v1802 = vunpack.c.h.b16 %v1367
        %v1803 = vunpack.c.l.b16 %v1368
        %v1804 = vunpack.c.h.b16 %v1368
        %v1805 = vunpack.c.l.b16 %v1369
        %v1806 = vunpack.c.h.b16 %v1369
        %v1807 = vunpack.c.l.b16 %v1370
        %v1808 = vunpack.c.h.b16 %v1370
        %v1809 = vunpack.c.l.b16 %v1371
        %v1810 = vunpack.c.h.b16 %v1371
        %v1811 = vunpack.c.l.b16 %v1372
        %v1812 = vunpack.c.h.b16 %v1372
        %v1813 = vunpack.c.l.b16 %v1373
        %v1814 = vunpack.c.h.b16 %v1373
        %v1815 = vunpack.c.l.b16 %v1374
        %v1816 = vunpack.c.h.b16 %v1374
        %v1817 = vunpack.c.l.b16 %v1375
        %v1818 = vunpack.c.h.b16 %v1375
        %v1819 = vunpack.c.l.b16 %v1376
        %v1820 = vunpack.c.h.b16 %v1376
        %v1821 = vunpack.c.l.b16 %v1377
        %v1822 = vunpack.c.h.b16 %v1377
        %v1823 = vunpack.c.l.b16 %v1378
        %v1824 = vunpack.c.h.b16 %v1378
        %v1825 = vunpack.c.l.b16 %v1379
        %v1826 = vunpack.c.h.b16 %v1379
        %v1827 = vunpack.c.l.b16 %v1380
        %v1828 = vunpack.c.h.b16 %v1380
        %v1829 = vunpack.c.l.b16 %v1381
        %v1830 = vunpack.c.h.b16 %v1381
        %v1831 = vunpack.c.l.b16 %v1382
        %v1832 = vunpack.c.h.b16 %v1382
        %v1833 = vunpack.c.l.b16 %v1383
        %v1834 = vunpack.c.h.b16 %v1383
        %v1835 = vunpack.c.l.b16 %v1384
        %v1836 = vunpack.c.h.b16 %v1384
        %v1837 = vunpack.c.l.b16 %v1385
        %v1838 = vunpack.c.h.b16 %v1385
        %v1839 = vunpack.c.l.b16 %v1386
        %v1840 = vunpack.c.h.b16 %v1386
        %v1841 = vunpack.c.l.b16 %v1387
        %v1842 = vunpack.c.h.b16 %v1387
        %v1843 = vunpack.c.l.b16 %v1388
        %v1844 = vunpack.c.h.b16 %v1388
        %v1845 = vunpack.c.l.b16 %v1389
        %v1846 = vunpack.c.h.b16 %v1389
        %v1847 = vunpack.c.l.b16 %v1390
        %v1848 = vunpack.c.h.b16 %v1390
        %v1849 = vunpack.c.l.b16 %v1391
        %v1850 = vunpack.c.h.b16 %v1391
        %v1851 = vunpack.c.l.b16 %v1392
        %v1852 = vunpack.c.h.b16 %v1392
        %v1853 = vunpack.c.l.b16 %v1393
        %v1854 = vunpack.c.h.b16 %v1393
        %v1855 = vunpack.c.l.b16 %v1394
        %v1856 = vunpack.c.h.b16 %v1394
        %v1857 = vunpack.c.l.b16 %v1395
        %v1858 = vunpack.c.h.b16 %v1395
        %v1859 = vunpack.c.l.b16 %v1396
        %v1860 = vunpack.c.h.b16 %v1396
        %v1861 = vunpack.c.l.b16 %v1397
        %v1862 = vunpack.c.h.b16 %v1397
        %v1863 = vunpack.c.l.b16 %v1398
        %v1864 = vunpack.c.h.b16 %v1398
        %v1865 = vunpack.c.l.b16 %v1399
        %v1866 = vunpack.c.h.b16 %v1399
        %v1867 = vunpack.c.l.b16 %v1400
        %v1868 = vunpack.c.h.b16 %v1400
        %v1869 = vunpack.c.l.b16 %v1401
        %v1870 = vunpack.c.h.b16 %v1401
        %v1871 = vunpack.c.l.b16 %v1402
        %v1872 = vunpack.c.h.b16 %v1402
        %v1873 = vunpack.c.l.b16 %v1403
        %v1874 = vunpack.c.h.b16 %v1403
        %v1875 = vunpack.c.l.b16 %v1404
        %v1876 = vunpack.c.h.b16 %v1404
        %v1877 = vunpack.c.l.b16 %v1405
        %v1878 = vunpack.c.h.b16 %v1405
        %v1879 = vunpack.c.l.b16 %v1406
        %v1880 = vunpack.c.h.b16 %v1406
        %v1881 = vunpack.c.l.b16 %v1407
        %v1882 = vunpack.c.h.b16 %v1407
        %v1883 = vunpack.c.l.b16 %v1408
        %v1884 = vunpack.c.h.b16 %v1408
        %v1885 = vunpack.c.l.b16 %v1409
        %v1886 = vunpack.c.h.b16 %v1409
        %v1887 = vunpack.c.l.b16 %v1410
        %v1888 = vunpack.c.h.b16 %v1410
        %v1889 = vunpack.c.l.b16 %v1411
        %v1890 = vunpack.c.h.b16 %v1411
        %v1891 = vunpack.c.l.b16 %v1412
        %v1892 = vunpack.c.h.b16 %v1412
        %v1893 = vunpack.c.l.b16 %v1413
        %v1894 = vunpack.c.h.b16 %v1413
        %v1895 = vunpack.c.l.b16 %v1414
        %v1896 = vunpack.c.h.b16 %v1414
        %v1897 = vunpack.c.l.b16 %v1415
        %v1898 = vunpack.c.h.b16 %v1415
        %v1899 = vunpack.c.l.b16 %v1416
        %v1900 = vunpack.c.h.b16 %v1416
        %v1901 = vunpack.c.l.b16 %v1417
        %v1902 = vunpack.c.h.b16 %v1417
        %v1903 = vunpack.c.l.b16 %v1418
        %v1904 = vunpack.c.h.b16 %v1418
        %v1905 = vunpack.c.l.b16 %v1419
        %v1906 = vunpack.c.h.b16 %v1419
        %v1907 = vunpack.c.l.b16 %v1420
        %v1908 = vunpack.c.h.b16 %v1420
        %v1909 = vunpack.c.l.b16 %v1421
        %v1910 = vunpack.c.h.b16 %v1421
        %v1911 = vunpack.c.l.b16 %v1422
        %v1912 = vunpack.c.h.b16 %v1422
        %v1913 = vunpack.c.l.b16 %v1423
        %v1914 = vunpack.c.h.b16 %v1423
        %v1915 = vunpack.c.l.b16 %v1424
        %v1916 = vunpack.c.h.b16 %v1424
        %v1917 = vunpack.c.l.b16 %v1425
        %v1918 = vunpack.c.h.b16 %v1425
        %v1919 = vunpack.c.l.b16 %v1426
        %v1920 = vunpack.c.h.b16 %v1426
        %v1921 = vunpack.c.l.b16 %v1427
        %v1922 = vunpack.c.h.b16 %v1427
        %v1923 = vunpack.c.l.b16 %v1428
        %v1924 = vunpack.c.h.b16 %v1428
        %v1925 = vunpack.c.l.b16 %v1429
        %v1926 = vunpack.c.h.b16 %v1429
        %v1927 = vunpack.c.l.b16 %v1430
        %v1928 = vunpack.c.h.b16 %v1430
        %v1929 = vunpack.c.l.b16 %v1431
        %v1930 = vunpack.c.h.b16 %v1431
        %v1931 = vunpack.c.l.b16 %v1432
        %v1932 = vunpack.c.h.b16 %v1432
        %v1933 = vunpack.c.l.b16 %v1433
        %v1934 = vunpack.c.h.b16 %v1433
        %v1935 = vunpack.c.l.b16 %v1434
        %v1936 = vunpack.c.h.b16 %v1434
        %v1937 = vunpack.c.l.b16 %v1435
        %v1938 = vunpack.c.h.b16 %v1435
        %v1939 = vunpack.c.l.b16 %v1436
        %v1940 = vunpack.c.h.b16 %v1436
        %v1941 = vunpack.c.l.b16 %v1437
        %v1942 = vunpack.c.h.b16 %v1437
        %v1943 = vunpack.c.l.b16 %v1438
        %v1944 = vunpack.c.h.b16 %v1438
        %v1945 = vunpack.c.l.b16 %v1439
        %v1946 = vunpack.c.h.b16 %v1439
        %v1947 = vunpack.c.l.b16 %v1440
        %v1948 = vunpack.c.h.b16 %v1440
        %v1949 = vunpack.c.l.b16 %v1441
        %v1950 = vunpack.c.h.b16 %v1441
        %v1951 = vunpack.c.l.b16 %v1442
        %v1952 = vunpack.c.h.b16 %v1442
        %v1953 = vunpack.c.l.b16 %v1443
        %v1954 = vunpack.c.h.b16 %v1443
        %v1955 = vunpack.c.l.b16 %v1444
        %v1956 = vunpack.c.h.b16 %v1444
        %v1957 = vunpack.c.l.b16 %v1445
        %v1958 = vunpack.c.h.b16 %v1445
        %v1959 = vunpack.c.l.b16 %v1446
        %v1960 = vunpack.c.h.b16 %v1446
        %v1961 = vunpack.c.l.b16 %v1447
        %v1962 = vunpack.c.h.b16 %v1447
        %v1963 = vunpack.c.l.b16 %v1448
        %v1964 = vunpack.c.h.b16 %v1448
        %v1965 = vunpack.c.l.b16 %v1449
        %v1966 = vunpack.c.h.b16 %v1449
        %v1967 = vunpack.c.l.b16 %v1450
        %v1968 = vunpack.c.h.b16 %v1450
        %v1969 = vunpack.c.l.b16 %v1451
        %v1970 = vunpack.c.h.b16 %v1451
        %v1971 = vunpack.c.l.b16 %v1452
        %v1972 = vunpack.c.h.b16 %v1452
        %v1973 = vunpack.c.l.b16 %v1453
        %v1974 = vunpack.c.h.b16 %v1453
        %v1975 = vunpack.c.l.b16 %v1454
        %v1976 = vunpack.c.h.b16 %v1454
        %v1977 = vunpack.c.l.b16 %v1455
        %v1978 = vunpack.c.h.b16 %v1455
        %v1979 = vunpack.c.l.b16 %v1456
        %v1980 = vunpack.c.h.b16 %v1456
        %v1981 = vunpack.c.l.b16 %v1457
        %v1982 = vunpack.c.h.b16 %v1457
        %v1983 = vunpack.c.l.b16 %v1458
        %v1984 = vunpack.c.h.b16 %v1458
        %v1985 = vunpack.c.l.b16 %v1459
        %v1986 = vunpack.c.h.b16 %v1459
        %v1987 = vunpack.c.l.b16 %v1460
        %v1988 = vunpack.c.h.b16 %v1460
        %v1989 = vunpack.c.l.b16 %v1461
        %v1990 = vunpack.c.h.b16 %v1461
        %v1991 = vunpack.c.l.b16 %v1462
        %v1992 = vunpack.c.h.b16 %v1462
        %v1993 = vunpack.c.l.b16 %v1463
        %v1994 = vunpack.c.h.b16 %v1463
        %v1995 = vunpack.c.l.b16 %v1464
        %v1996 = vunpack.c.h.b16 %v1464
        %v1997 = vunpack.c.l.b16 %v1465
        %v1998 = vunpack.c.h.b16 %v1465
        %v1999 = vunpack.c.l.b16 %v1466
        %v2000 = vunpack.c.h.b16 %v1466
        %v2001 = vunpack.c.l.b16 %v1467
        %v2002 = vunpack.c.h.b16 %v1467
        %v2003 = vunpack.c.l.b16 %v1468
        %v2004 = vunpack.c.h.b16 %v1468
        %v2005 = vunpack.c.l.b16 %v1469
        %v2006 = vunpack.c.h.b16 %v1469
        %v2007 = vunpack.c.l.b16 %v1470
        %v2008 = vunpack.c.h.b16 %v1470
        %v2009 = vunpack.c.l.b16 %v1471
        %v2010 = vunpack.c.h.b16 %v1471
        %v2011 = vunpack.c.l.b16 %v1472
        %v2012 = vunpack.c.h.b16 %v1472
        %v2013 = vunpack.c.l.b16 %v1473
        %v2014 = vunpack.c.h.b16 %v1473
        %v2015 = vunpack.c.l.b16 %v1474
        %v2016 = vunpack.c.h.b16 %v1474
        %v2017 = vunpack.c.l.b16 %v1475
        %v2018 = vunpack.c.h.b16 %v1475
        %v2019 = vunpack.c.l.b16 %v1476
        %v2020 = vunpack.c.h.b16 %v1476
        %v2021 = vunpack.c.l.b16 %v1477
        %v2022 = vunpack.c.h.b16 %v1477
        %v2023 = vunpack.c.l.b16 %v1478
        %v2024 = vunpack.c.h.b16 %v1478
        %v2025 = vunpack.c.l.b16 %v1479
        %v2026 = vunpack.c.h.b16 %v1479
        %v2027 = vunpack.c.l.b16 %v1480
        %v2028 = vunpack.c.h.b16 %v1480
        %v2029 = vunpack.c.l.b16 %v1481
        %v2030 = vunpack.c.h.b16 %v1481
        %v2031 = vunpack.c.l.b16 %v1482
        %v2032 = vunpack.c.h.b16 %v1482
        %v2033 = vunpack.c.l.b16 %v1483
        %v2034 = vunpack.c.h.b16 %v1483
        %v2035 = vunpack.c.l.b16 %v1484
        %v2036 = vunpack.c.h.b16 %v1484
        %v2037 = vunpack.c.l.b16 %v1485
        %v2038 = vunpack.c.h.b16 %v1485
        %v2039 = vunpack.c.l.b16 %v1486
        %v2040 = vunpack.c.h.b16 %v1486
        %v2041 = vunpack.c.l.b16 %v1487
        %v2042 = vunpack.c.h.b16 %v1487
        %v2043 = vunpack.c.l.b16 %v1488
        %v2044 = vunpack.c.h.b16 %v1488
        %v2045 = vunpack.c.l.b16 %v1489
        %v2046 = vunpack.c.h.b16 %v1489
        %v2047 = vunpack.c.l.b16 %v1490
        %v2048 = vunpack.c.h.b16 %v1490
        %v2049 = vunpack.c.l.b16 %v1491
        %v2050 = vunpack.c.h.b16 %v1491
        %v2051 = vunpack.c.l.b16 %v1492
        %v2052 = vunpack.c.h.b16 %v1492
        %v2053 = vunpack.c.l.b16 %v1493
        %v2054 = vunpack.c.h.b16 %v1493
        %v2055 = vunpack.c.l.b16 %v1494
        %v2056 = vunpack.c.h.b16 %v1494
        %v2057 = vunpack.c.l.b16 %v1495
        %v2058 = vunpack.c.h.b16 %v1495
        %v2059 = vunpack.c.l.b16 %v1496
        %v2060 = vunpack.c.h.b16 %v1496
        %v2061 = vunpack.c.l.b16 %v1497
        %v2062 = vunpack.c.h.b16 %v1497
        %v2063 = vunpack.c.l.b16 %v1498
        %v2064 = vunpack.c.h.b16 %v1498
        %v2065 = vunpack.c.l.b16 %v1499
        %v2066 = vunpack.c.h.b16 %v1499
        %v2067 = vunpack.c.l.b16 %v1500
        %v2068 = vunpack.c.h.b16 %v1500
        %v2069 = vunpack.c.l.b16 %v1501
        %v2070 = vunpack.c.h.b16 %v1501
        %v2071 = vunpack.c.l.b16 %v1502
        %v2072 = vunpack.c.h.b16 %v1502
        %v2073 = vunpack.c.l.b16 %v1503
        %v2074 = vunpack.c.h.b16 %v1503
        %v2075 = vunpack.c.l.b16 %v1504
        %v2076 = vunpack.c.h.b16 %v1504
        %v2077 = vunpack.c.l.b16 %v1505
        %v2078 = vunpack.c.h.b16 %v1505
        %v2079 = vunpack.c.l.b16 %v1506
        %v2080 = vunpack.c.h.b16 %v1506
        %v2081 = vunpack.c.l.b16 %v1507
        %v2082 = vunpack.c.h.b16 %v1507
        %v2083 = vunpack.c.l.b16 %v1508
        %v2084 = vunpack.c.h.b16 %v1508
        %v2085 = vunpack.c.l.b16 %v1509
        %v2086 = vunpack.c.h.b16 %v1509
        %v2087 = vunpack.c.l.b16 %v1510
        %v2088 = vunpack.c.h.b16 %v1510
        %v2089 = vunpack.c.l.b16 %v1511
        %v2090 = vunpack.c.h.b16 %v1511
        %v2091 = vunpack.c.l.b16 %v1512
        %v2092 = vunpack.c.h.b16 %v1512
        %v2093 = vunpack.c.l.b16 %v1513
        %v2094 = vunpack.c.h.b16 %v1513
        %v2095 = vunpack.c.l.b16 %v1514
        %v2096 = vunpack.c.h.b16 %v1514
        %v2097 = vunpack.c.l.b16 %v1515
        %v2098 = vunpack.c.h.b16 %v1515
        %v2099 = vunpack.c.l.b16 %v1516
        %v2100 = vunpack.c.h.b16 %v1516
        %v2101 = vunpack.c.l.b16 %v1517
        %v2102 = vunpack.c.h.b16 %v1517
        %v2103 = vunpack.c.l.b16 %v1518
        %v2104 = vunpack.c.h.b16 %v1518
        %v2105 = vpack.c.b16 %v1725, %v1721
        %v2106 = vpack.c.b16 %v1726, %v1722
        %v2107 = vpack.c.b16 %v1727, %v1723
        %v2108 = vpack.c.b16 %v1728, %v1724
        %v2109 = vpack.c.b16 %v1733, %v1729
        %v2110 = vpack.c.b16 %v1734, %v1730
        %v2111 = vpack.c.b16 %v1735, %v1731
        %v2112 = vpack.c.b16 %v1736, %v1732
        %v2113 = vpack.c.b16 %v1741, %v1737
        %v2114 = vpack.c.b16 %v1742, %v1738
        %v2115 = vpack.c.b16 %v1743, %v1739
        %v2116 = vpack.c.b16 %v1744, %v1740
        %v2117 = vpack.c.b16 %v1749, %v1745
        %v2118 = vpack.c.b16 %v1750, %v1746
        %v2119 = vpack.c.b16 %v1751, %v1747
        %v2120 = vpack.c.b16 %v1752, %v1748
        %v2121 = vpack.c.b16 %v1757, %v1753
        %v2122 = vpack.c.b16 %v1758, %v1754
        %v2123 = vpack.c.b16 %v1759, %v1755
        %v2124 = vpack.c.b16 %v1760, %v1756
        %v2125 = vpack.c.b16 %v1765, %v1761
        %v2126 = vpack.c.b16 %v1766, %v1762
        %v2127 = vpack.c.b16 %v1767, %v1763
        %v2128 = vpack.c.b16 %v1768, %v1764
        %v2129 = vpack.c.b16 %v1773, %v1769
        %v2130 = vpack.c.b16 %v1774, %v1770
        %v2131 = vpack.c.b16 %v1775, %v1771
        %v2132 = vpack.c.b16 %v1776, %v1772
        %v2133 = vpack.c.b16 %v1781, %v1777
        %v2134 = vpack.c.b16 %v1782, %v1778
        %v2135 = vpack.c.b16 %v1783, %v1779
        %v2136 = vpack.c.b16 %v1784, %v1780
        %v2137 = vpack.c.b16 %v1789, %v1785
        %v2138 = vpack.c.b16 %v1790, %v1786
        %v2139 = vpack.c.b16 %v1791, %v1787
        %v2140 = vpack.c.b16 %v1792, %v1788
        %v2141 = vpack.c.b16 %v1797, %v1793
        %v2142 = vpack.c.b16 %v1798, %v1794
        %v2143 = vpack.c.b16 %v1799, %v1795
        %v2144 = vpack.c.b16 %v1800, %v1796
        %v2145 = vpack.c.b16 %v1805, %v1801
        %v2146 = vpack.c.b16 %v1806, %v1802
        %v2147 = vpack.c.b16 %v1807, %v1803
        %v2148 = vpack.c.b16 %v1808, %v1804
        %v2149 = vpack.c.b16 %v1813, %v1809
        %v2150 = vpack.c.b16 %v1814, %v1810
        %v2151 = vpack.c.b16 %v1815, %v1811
        %v2152 = vpack.c.b16 %v1816, %v1812
        %v2153 = vpack.c.b16 %v1821, %v1817
        %v2154 = vpack.c.b16 %v1822, %v1818
        %v2155 = vpack.c.b16 %v1823, %v1819
        %v2156 = vpack.c.b16 %v1824, %v1820
        %v2157 = vpack.c.b16 %v1829, %v1825
        %v2158 = vpack.c.b16 %v1830, %v1826
        %v2159 = vpack.c.b16 %v1831, %v1827
        %v2160 = vpack.c.b16 %v1832, %v1828
        %v2161 = vpack.c.b16 %v1837, %v1833
        %v2162 = vpack.c.b16 %v1838, %v1834
        %v2163 = vpack.c.b16 %v1839, %v1835
        %v2164 = vpack.c.b16 %v1840, %v1836
        %v2165 = vpack.c.b16 %v1845, %v1841
        %v2166 = vpack.c.b16 %v1846, %v1842
        %v2167 = vpack.c.b16 %v1847, %v1843
        %v2168 = vpack.c.b16 %v1848, %v1844
        %v2169 = vpack.c.b16 %v1853, %v1849
        %v2170 = vpack.c.b16 %v1854, %v1850
        %v2171 = vpack.c.b16 %v1855, %v1851
        %v2172 = vpack.c.b16 %v1856, %v1852
        %v2173 = vpack.c.b16 %v1861, %v1857
        %v2174 = vpack.c.b16 %v1862, %v1858
        %v2175 = vpack.c.b16 %v1863, %v1859
        %v2176 = vpack.c.b16 %v1864, %v1860
        %v2177 = vpack.c.b16 %v1869, %v1865
        %v2178 = vpack.c.b16 %v1870, %v1866
        %v2179 = vpack.c.b16 %v1871, %v1867
        %v2180 = vpack.c.b16 %v1872, %v1868
        %v2181 = vpack.c.b16 %v1877, %v1873
        %v2182 = vpack.c.b16 %v1878, %v1874
        %v2183 = vpack.c.b16 %v1879, %v1875
        %v2184 = vpack.c.b16 %v1880, %v1876
        %v2185 = vpack.c.b16 %v1885, %v1881
        %v2186 = vpack.c.b16 %v1886, %v1882
        %v2187 = vpack.c.b16 %v1887, %v1883
        %v2188 = vpack.c.b16 %v1888, %v1884
        %v2189 = vpack.c.b16 %v1893, %v1889
        %v2190 = vpack.c.b16 %v1894, %v1890
        %v2191 = vpack.c.b16 %v1895, %v1891
        %v2192 = vpack.c.b16 %v1896, %v1892
        %v2193 = vpack.c.b16 %v1901, %v1897
        %v2194 = vpack.c.b16 %v1902, %v1898
        %v2195 = vpack.c.b16 %v1903, %v1899
        %v2196 = vpack.c.b16 %v1904, %v1900
        %v2197 = vpack.c.b16 %v1909, %v1905
        %v2198 = vpack.c.b16 %v1910, %v1906
        %v2199 = vpack.c.b16 %v1911, %v1907
        %v2200 = vpack.c.b16 %v1912, %v1908
        %v2201 = vpack.c.b16 %v1917, %v1913
        %v2202 = vpack.c.b16 %v1918, %v1914
        %v2203 = vpack.c.b16 %v1919, %v1915
        %v2204 = vpack.c.b16 %v1920, %v1916
        %v2205 = vpack.c.b16 %v1925, %v1921
        %v2206 = vpack.c.b16 %v1926, %v1922
        %v2207 = vpack.c.b16 %v1927, %v1923
        %v2208 = vpack.c.b16 %v1928, %v1924
        %v2209 = vpack.c.b16 %v1933, %v1929
        %v2210 = vpack.c.b16 %v1934, %v1930
        %v2211 = vpack.c.b16 %v1935, %v1931
        %v2212 = vpack.c.b16 %v1936, %v1932
        %v2213 = vpack.c.b16 %v1941, %v1937
        %v2214 = vpack.c.b16 %v1942, %v1938
        %v2215 = vpack.c.b16 %v1943, %v1939
        %v2216 = vpack.c.b16 %v1944, %v1940
        %v2217 = vpack.c.b16 %v1949, %v1945
        %v2218 = vpack.c.b16 %v1950, %v1946
        %v2219 = vpack.c.b16 %v1951, %v1947
        %v2220 = vpack.c.b16 %v1952, %v1948
        %v2221 = vpack.c.b16 %v1957, %v1953
        %v2222 = vpack.c.b16 %v1958, %v1954
        %v2223 = vpack.c.b16 %v1959, %v1955
        %v2224 = vpack.c.b16 %v1960, %v1956
        %v2225 = vpack.c.b16 %v1965, %v1961
        %v2226 = vpack.c.b16 %v1966, %v1962
        %v2227 = vpack.c.b16 %v1967, %v1963
        %v2228 = vpack.c.b16 %v1968, %v1964
        %v2229 = vpack.c.b16 %v1973, %v1969
        %v2230 = vpack.c.b16 %v1974, %v1970
        %v2231 = vpack.c.b16 %v1975, %v1971
        %v2232 = vpack.c.b16 %v1976, %v1972
        %v2233 = vpack.c.b16 %v1981, %v1977
        %v2234 = vpack.c.b16 %v1982, %v1978
        %v2235 = vpack.c.b16 %v1983, %v1979
        %v2236 = vpack.c.b16 %v1984, %v1980
        %v2237 = vpack.c.b16 %v1989, %v1985
        %v2238 = vpack.c.b16 %v1990, %v1986
        %v2239 = vpack.c.b16 %v1991, %v1987
        %v2240 = vpack.c.b16 %v1992, %v1988
        %v2241 = vpack.c.b16 %v1997, %v1993
        %v2242 = vpack.c.b16 %v1998, %v1994
        %v2243 = vpack.c.b16 %v1999, %v1995
        %v2244 = vpack.c.b16 %v2000, %v1996
        %v2245 = vpack.c.b16 %v2005, %v2001
        %v2246 = vpack.c.b16 %v2006, %v2002
        %v2247 = vpack.c.b16 %v2007, %v2003
        %v2248 = vpack.c.b16 %v2008, %v2004
        %v2249 = vpack.c.b16 %v2013, %v2009
        %v2250 = vpack.c.b16 %v2014, %v2010
        %v2251 = vpack.c.b16 %v2015, %v2011
        %v2252 = vpack.c.b16 %v2016, %v2012
        %v2253 = vpack.c.b16 %v2021, %v2017
        %v2254 = vpack.c.b16 %v2022, %v2018
        %v2255 = vpack.c.b16 %v2023, %v2019
        %v2256 = vpack.c.b16 %v2024, %v2020
        %v2257 = vpack.c.b16 %v2029, %v2025
        %v2258 = vpack.c.b16 %v2030, %v2026
        %v2259 = vpack.c.b16 %v2031, %v2027
        %v2260 = vpack.c.b16 %v2032, %v2028
        %v2261 = vpack.c.b16 %v2037, %v2033
        %v2262 = vpack.c.b16 %v2038, %v2034
        %v2263 = vpack.c.b16 %v2039, %v2035
        %v2264 = vpack.c.b16 %v2040, %v2036
        %v2265 = vpack.c.b16 %v2045, %v2041
        %v2266 = vpack.c.b16 %v2046, %v2042
        %v2267 = vpack.c.b16 %v2047, %v2043
        %v2268 = vpack.c.b16 %v2048, %v2044
        %v2269 = vpack.c.b16 %v2053, %v2049
        %v2270 = vpack.c.b16 %v2054, %v2050
        %v2271 = vpack.c.b16 %v2055, %v2051
        %v2272 = vpack.c.b16 %v2056, %v2052
        %v2273 = vpack.c.b16 %v2061, %v2057
        %v2274 = vpack.c.b16 %v2062, %v2058
        %v2275 = vpack.c.b16 %v2063, %v2059
        %v2276 = vpack.c.b16 %v2064, %v2060
        %v2277 = vpack.c.b16 %v2069, %v2065
        %v2278 = vpack.c.b16 %v2070, %v2066
        %v2279 = vpack.c.b16 %v2071, %v2067
        %v2280 = vpack.c.b16 %v2072, %v2068
        %v2281 = vpack.c.b16 %v2077, %v2073
        %v2282 = vpack.c.b16 %v2078, %v2074
        %v2283 = vpack.c.b16 %v2079, %v2075
        %v2284 = vpack.c.b16 %v2080, %v2076
        %v2285 = vpack.c.b16 %v2085, %v2081
        %v2286 = vpack.c.b16 %v2086, %v2082
        %v2287 = vpack.c.b16 %v2087, %v2083
        %v2288 = vpack.c.b16 %v2088, %v2084
        %v2289 = vpack.c.b16 %v2093, %v2089
        %v2290 = vpack.c.b16 %v2094, %v2090
        %v2291 = vpack.c.b16 %v2095, %v2091
        %v2292 = vpack.c.b16 %v2096, %v2092
        %v2293 = vpack.c.b16 %v2101, %v2097
        %v2294 = vpack.c.b16 %v2102, %v2098
        %v2295 = vpack.c.b16 %v2103, %v2099
        %v2296 = vpack.c.b16 %v2104, %v2100
        %2489 = vmatpush.bf16.msra.mxu0 %v2133
        %2490 = vmatpush.bf16.msra.mxu0 %v2129
        %2491 = vmatpush.bf16.msra.mxu0 %v2125
        %2492 = vmatpush.bf16.msra.mxu0 %v2121
        %2493 = vmatpush.bf16.msra.mxu0 %v2117
        %2494 = vmatpush.bf16.msra.mxu0 %v2113
        %2495 = vmatpush.bf16.msra.mxu0 %v2109
        %2496 = vmatpush.bf16.msra.mxu0 %v2105
        %2497 = vmatmul.bf16.gmra.mxu0 %v1279
        %v2498 = vpop.f32.mrf.mxu0
        %v2499 = vadd.f32 %v1521, %v2498
        %v2500 = vpop.f32.mrf.mxu0
        %v2501 = vadd.f32 %v1521, %v2500
        %2502 = vmatmul.bf16.gmra.mxu0 %v1285
        %v2503 = vpop.f32.mrf.mxu0
        %v2504 = vadd.f32 %v1521, %v2503
        %v2505 = vpop.f32.mrf.mxu0
        %v2506 = vadd.f32 %v1521, %v2505
        %2507 = vmatmul.bf16.gmra.mxu0 %v1291
        %v2508 = vpop.f32.mrf.mxu0
        %v2509 = vadd.f32 %v1521, %v2508
        %v2510 = vpop.f32.mrf.mxu0
        %v2511 = vadd.f32 %v1521, %v2510
        %2512 = vmatmul.bf16.gmra.mxu0 %v1297
        %v2513 = vpop.f32.mrf.mxu0
        %v2514 = vadd.f32 %v1521, %v2513
        %v2515 = vpop.f32.mrf.mxu0
        %v2516 = vadd.f32 %v1521, %v2515
        %2517 = vmatmul.bf16.gmra.mxu0 %v1303
        %v2518 = vpop.f32.mrf.mxu0
        %v2519 = vadd.f32 %v1521, %v2518
        %v2520 = vpop.f32.mrf.mxu0
        %v2521 = vadd.f32 %v1521, %v2520
        %2522 = vmatmul.bf16.gmra.mxu0 %v1309
        %v2523 = vpop.f32.mrf.mxu0
        %v2524 = vadd.f32 %v1521, %v2523
        %v2525 = vpop.f32.mrf.mxu0
        %v2526 = vadd.f32 %v1521, %v2525
        %2527 = vmatmul.bf16.gmra.mxu0 %v1315
        %v2528 = vpop.f32.mrf.mxu0
        %v2529 = vadd.f32 %v1521, %v2528
        %v2530 = vpop.f32.mrf.mxu0
        %v2531 = vadd.f32 %v1521, %v2530
        %2532 = vmatmul.bf16.gmra.mxu0 %v1321
        %v2533 = vpop.f32.mrf.mxu0
        %v2534 = vadd.f32 %v1521, %v2533
        %v2535 = vpop.f32.mrf.mxu0
        %v2536 = vadd.f32 %v1521, %v2535
        %2537 = vdwg.mxu0
        %2538 = vmatpush.bf16.msra.mxu0 %v2165
        %2539 = vmatpush.bf16.msra.mxu0 %v2161
        %2540 = vmatpush.bf16.msra.mxu0 %v2157
        %2541 = vmatpush.bf16.msra.mxu0 %v2153
        %2542 = vmatpush.bf16.msra.mxu0 %v2149
        %2543 = vmatpush.bf16.msra.mxu0 %v2145
        %2544 = vmatpush.bf16.msra.mxu0 %v2141
        %2545 = vmatpush.bf16.msra.mxu0 %v2137
        %2546 = vmatmul.bf16.gmra.mxu0 %v1280
        %v2547 = vpop.f32.mrf.mxu0
        %v2548 = vadd.f32 %v2499, %v2547
        %v2549 = vpop.f32.mrf.mxu0
        %v2550 = vadd.f32 %v2501, %v2549
        %2551 = vmatmul.bf16.gmra.mxu0 %v1286
        %v2552 = vpop.f32.mrf.mxu0
        %v2553 = vadd.f32 %v2504, %v2552
        %v2554 = vpop.f32.mrf.mxu0
        %v2555 = vadd.f32 %v2506, %v2554
        %2556 = vmatmul.bf16.gmra.mxu0 %v1292
        %v2557 = vpop.f32.mrf.mxu0
        %v2558 = vadd.f32 %v2509, %v2557
        %v2559 = vpop.f32.mrf.mxu0
        %v2560 = vadd.f32 %v2511, %v2559
        %2561 = vmatmul.bf16.gmra.mxu0 %v1298
        %v2562 = vpop.f32.mrf.mxu0
        %v2563 = vadd.f32 %v2514, %v2562
        %v2564 = vpop.f32.mrf.mxu0
        %v2565 = vadd.f32 %v2516, %v2564
        %2566 = vmatmul.bf16.gmra.mxu0 %v1304
        %v2567 = vpop.f32.mrf.mxu0
        %v2568 = vadd.f32 %v2519, %v2567
        %v2569 = vpop.f32.mrf.mxu0
        %v2570 = vadd.f32 %v2521, %v2569
        %2571 = vmatmul.bf16.gmra.mxu0 %v1310
        %v2572 = vpop.f32.mrf.mxu0
        %v2573 = vadd.f32 %v2524, %v2572
        %v2574 = vpop.f32.mrf.mxu0
        %v2575 = vadd.f32 %v2526, %v2574
        %2576 = vmatmul.bf16.gmra.mxu0 %v1316
        %v2577 = vpop.f32.mrf.mxu0
        %v2578 = vadd.f32 %v2529, %v2577
        %v2579 = vpop.f32.mrf.mxu0
        %v2580 = vadd.f32 %v2531, %v2579
        %2581 = vmatmul.bf16.gmra.mxu0 %v1322
        %v2582 = vpop.f32.mrf.mxu0
        %v2583 = vadd.f32 %v2534, %v2582
        %v2584 = vpop.f32.mrf.mxu0
        %v2585 = vadd.f32 %v2536, %v2584
        %2586 = vdwg.mxu0
        %2587 = vmatpush.bf16.msra.mxu0 %v2197
        %2588 = vmatpush.bf16.msra.mxu0 %v2193
        %2589 = vmatpush.bf16.msra.mxu0 %v2189
        %2590 = vmatpush.bf16.msra.mxu0 %v2185
        %2591 = vmatpush.bf16.msra.mxu0 %v2181
        %2592 = vmatpush.bf16.msra.mxu0 %v2177
        %2593 = vmatpush.bf16.msra.mxu0 %v2173
        %2594 = vmatpush.bf16.msra.mxu0 %v2169
        %2595 = vmatmul.bf16.gmra.mxu0 %v1281
        %v2596 = vpop.f32.mrf.mxu0
        %v2597 = vadd.f32 %v2548, %v2596
        %v2598 = vpop.f32.mrf.mxu0
        %v2599 = vadd.f32 %v2550, %v2598
        %2600 = vmatmul.bf16.gmra.mxu0 %v1287
        %v2601 = vpop.f32.mrf.mxu0
        %v2602 = vadd.f32 %v2553, %v2601
        %v2603 = vpop.f32.mrf.mxu0
        %v2604 = vadd.f32 %v2555, %v2603
        %2605 = vmatmul.bf16.gmra.mxu0 %v1293
        %v2606 = vpop.f32.mrf.mxu0
        %v2607 = vadd.f32 %v2558, %v2606
        %v2608 = vpop.f32.mrf.mxu0
        %v2609 = vadd.f32 %v2560, %v2608
        %2610 = vmatmul.bf16.gmra.mxu0 %v1299
        %v2611 = vpop.f32.mrf.mxu0
        %v2612 = vadd.f32 %v2563, %v2611
        %v2613 = vpop.f32.mrf.mxu0
        %v2614 = vadd.f32 %v2565, %v2613
        %2615 = vmatmul.bf16.gmra.mxu0 %v1305
        %v2616 = vpop.f32.mrf.mxu0
        %v2617 = vadd.f32 %v2568, %v2616
        %v2618 = vpop.f32.mrf.mxu0
        %v2619 = vadd.f32 %v2570, %v2618
        %2620 = vmatmul.bf16.gmra.mxu0 %v1311
        %v2621 = vpop.f32.mrf.mxu0
        %v2622 = vadd.f32 %v2573, %v2621
        %v2623 = vpop.f32.mrf.mxu0
        %v2624 = vadd.f32 %v2575, %v2623
        %2625 = vmatmul.bf16.gmra.mxu0 %v1317
        %v2626 = vpop.f32.mrf.mxu0
        %v2627 = vadd.f32 %v2578, %v2626
        %v2628 = vpop.f32.mrf.mxu0
        %v2629 = vadd.f32 %v2580, %v2628
        %2630 = vmatmul.bf16.gmra.mxu0 %v1323
        %v2631 = vpop.f32.mrf.mxu0
        %v2632 = vadd.f32 %v2583, %v2631
        %v2633 = vpop.f32.mrf.mxu0
        %v2634 = vadd.f32 %v2585, %v2633
        %2635 = vdwg.mxu0
        %2636 = vmatpush.bf16.msra.mxu0 %v2229
        %2637 = vmatpush.bf16.msra.mxu0 %v2225
        %2638 = vmatpush.bf16.msra.mxu0 %v2221
        %2639 = vmatpush.bf16.msra.mxu0 %v2217
        %2640 = vmatpush.bf16.msra.mxu0 %v2213
        %2641 = vmatpush.bf16.msra.mxu0 %v2209
        %2642 = vmatpush.bf16.msra.mxu0 %v2205
        %2643 = vmatpush.bf16.msra.mxu0 %v2201
        %2644 = vmatmul.bf16.gmra.mxu0 %v1282
        %v2645 = vpop.f32.mrf.mxu0
        %v2646 = vadd.f32 %v2597, %v2645
        %v2647 = vpop.f32.mrf.mxu0
        %v2648 = vadd.f32 %v2599, %v2647
        %2649 = vmatmul.bf16.gmra.mxu0 %v1288
        %v2650 = vpop.f32.mrf.mxu0
        %v2651 = vadd.f32 %v2602, %v2650
        %v2652 = vpop.f32.mrf.mxu0
        %v2653 = vadd.f32 %v2604, %v2652
        %2654 = vmatmul.bf16.gmra.mxu0 %v1294
        %v2655 = vpop.f32.mrf.mxu0
        %v2656 = vadd.f32 %v2607, %v2655
        %v2657 = vpop.f32.mrf.mxu0
        %v2658 = vadd.f32 %v2609, %v2657
        %2659 = vmatmul.bf16.gmra.mxu0 %v1300
        %v2660 = vpop.f32.mrf.mxu0
        %v2661 = vadd.f32 %v2612, %v2660
        %v2662 = vpop.f32.mrf.mxu0
        %v2663 = vadd.f32 %v2614, %v2662
        %2664 = vmatmul.bf16.gmra.mxu0 %v1306
        %v2665 = vpop.f32.mrf.mxu0
        %v2666 = vadd.f32 %v2617, %v2665
        %v2667 = vpop.f32.mrf.mxu0
        %v2668 = vadd.f32 %v2619, %v2667
        %2669 = vmatmul.bf16.gmra.mxu0 %v1312
        %v2670 = vpop.f32.mrf.mxu0
        %v2671 = vadd.f32 %v2622, %v2670
        %v2672 = vpop.f32.mrf.mxu0
        %v2673 = vadd.f32 %v2624, %v2672
        %2674 = vmatmul.bf16.gmra.mxu0 %v1318
        %v2675 = vpop.f32.mrf.mxu0
        %v2676 = vadd.f32 %v2627, %v2675
        %v2677 = vpop.f32.mrf.mxu0
        %v2678 = vadd.f32 %v2629, %v2677
        %2679 = vmatmul.bf16.gmra.mxu0 %v1324
        %v2680 = vpop.f32.mrf.mxu0
        %v2681 = vadd.f32 %v2632, %v2680
        %v2682 = vpop.f32.mrf.mxu0
        %v2683 = vadd.f32 %v2634, %v2682
        %2684 = vdwg.mxu0
        %2685 = vmatpush.bf16.msra.mxu0 %v2261
        %2686 = vmatpush.bf16.msra.mxu0 %v2257
        %2687 = vmatpush.bf16.msra.mxu0 %v2253
        %2688 = vmatpush.bf16.msra.mxu0 %v2249
        %2689 = vmatpush.bf16.msra.mxu0 %v2245
        %2690 = vmatpush.bf16.msra.mxu0 %v2241
        %2691 = vmatpush.bf16.msra.mxu0 %v2237
        %2692 = vmatpush.bf16.msra.mxu0 %v2233
        %2693 = vmatmul.bf16.gmra.mxu0 %v1283
        %v2694 = vpop.f32.mrf.mxu0
        %v2695 = vadd.f32 %v2646, %v2694
        %v2696 = vpop.f32.mrf.mxu0
        %v2697 = vadd.f32 %v2648, %v2696
        %2698 = vmatmul.bf16.gmra.mxu0 %v1289
        %v2699 = vpop.f32.mrf.mxu0
        %v2700 = vadd.f32 %v2651, %v2699
        %v2701 = vpop.f32.mrf.mxu0
        %v2702 = vadd.f32 %v2653, %v2701
        %2703 = vmatmul.bf16.gmra.mxu0 %v1295
        %v2704 = vpop.f32.mrf.mxu0
        %v2705 = vadd.f32 %v2656, %v2704
        %v2706 = vpop.f32.mrf.mxu0
        %v2707 = vadd.f32 %v2658, %v2706
        %2708 = vmatmul.bf16.gmra.mxu0 %v1301
        %v2709 = vpop.f32.mrf.mxu0
        %v2710 = vadd.f32 %v2661, %v2709
        %v2711 = vpop.f32.mrf.mxu0
        %v2712 = vadd.f32 %v2663, %v2711
        %2713 = vmatmul.bf16.gmra.mxu0 %v1307
        %v2714 = vpop.f32.mrf.mxu0
        %v2715 = vadd.f32 %v2666, %v2714
        %v2716 = vpop.f32.mrf.mxu0
        %v2717 = vadd.f32 %v2668, %v2716
        %2718 = vmatmul.bf16.gmra.mxu0 %v1313
        %v2719 = vpop.f32.mrf.mxu0
        %v2720 = vadd.f32 %v2671, %v2719
        %v2721 = vpop.f32.mrf.mxu0
        %v2722 = vadd.f32 %v2673, %v2721
        %2723 = vmatmul.bf16.gmra.mxu0 %v1319
        %v2724 = vpop.f32.mrf.mxu0
        %v2725 = vadd.f32 %v2676, %v2724
        %v2726 = vpop.f32.mrf.mxu0
        %v2727 = vadd.f32 %v2678, %v2726
        %2728 = vmatmul.bf16.gmra.mxu0 %v1325
        %v2729 = vpop.f32.mrf.mxu0
        %v2730 = vadd.f32 %v2681, %v2729
        %v2731 = vpop.f32.mrf.mxu0
        %v2732 = vadd.f32 %v2683, %v2731
        %2733 = vdwg.mxu0
        %2734 = vmatpush.bf16.msra.mxu0 %v2293
        %2735 = vmatpush.bf16.msra.mxu0 %v2289
        %2736 = vmatpush.bf16.msra.mxu0 %v2285
        %2737 = vmatpush.bf16.msra.mxu0 %v2281
        %2738 = vmatpush.bf16.msra.mxu0 %v2277
        %2739 = vmatpush.bf16.msra.mxu0 %v2273
        %2740 = vmatpush.bf16.msra.mxu0 %v2269
        %2741 = vmatpush.bf16.msra.mxu0 %v2265
        %2742 = vmatmul.bf16.gmra.mxu0 %v1284
        %v2743 = vpop.f32.mrf.mxu0
        %v2744 = vadd.f32 %v2695, %v2743
        %v2745 = vpop.f32.mrf.mxu0
        %v2746 = vadd.f32 %v2697, %v2745
        %2747 = vmatmul.bf16.gmra.mxu0 %v1290
        %v2748 = vpop.f32.mrf.mxu0
        %v2749 = vadd.f32 %v2700, %v2748
        %v2750 = vpop.f32.mrf.mxu0
        %v2751 = vadd.f32 %v2702, %v2750
        %2752 = vmatmul.bf16.gmra.mxu0 %v1296
        %v2753 = vpop.f32.mrf.mxu0
        %v2754 = vadd.f32 %v2705, %v2753
        %v2755 = vpop.f32.mrf.mxu0
        %v2756 = vadd.f32 %v2707, %v2755
        %2757 = vmatmul.bf16.gmra.mxu0 %v1302
        %v2758 = vpop.f32.mrf.mxu0
        %v2759 = vadd.f32 %v2710, %v2758
        %v2760 = vpop.f32.mrf.mxu0
        %v2761 = vadd.f32 %v2712, %v2760
        %2762 = vmatmul.bf16.gmra.mxu0 %v1308
        %v2763 = vpop.f32.mrf.mxu0
        %v2764 = vadd.f32 %v2715, %v2763
        %v2765 = vpop.f32.mrf.mxu0
        %v2766 = vadd.f32 %v2717, %v2765
        %2767 = vmatmul.bf16.gmra.mxu0 %v1314
        %v2768 = vpop.f32.mrf.mxu0
        %v2769 = vadd.f32 %v2720, %v2768
        %v2770 = vpop.f32.mrf.mxu0
        %v2771 = vadd.f32 %v2722, %v2770
        %2772 = vmatmul.bf16.gmra.mxu0 %v1320
        %v2773 = vpop.f32.mrf.mxu0
        %v2774 = vadd.f32 %v2725, %v2773
        %v2775 = vpop.f32.mrf.mxu0
        %v2776 = vadd.f32 %v2727, %v2775
        %2777 = vmatmul.bf16.gmra.mxu0 %v1326
        %v2778 = vpop.f32.mrf.mxu0
        %v2779 = vadd.f32 %v2730, %v2778
        %v2780 = vpop.f32.mrf.mxu0
        %v2781 = vadd.f32 %v2732, %v2780
        %2782 = vdwg.mxu0
        %2783 = vmatpush.bf16.msra.mxu0 %v2134
        %2784 = vmatpush.bf16.msra.mxu0 %v2130
        %2785 = vmatpush.bf16.msra.mxu0 %v2126
        %2786 = vmatpush.bf16.msra.mxu0 %v2122
        %2787 = vmatpush.bf16.msra.mxu0 %v2118
        %2788 = vmatpush.bf16.msra.mxu0 %v2114
        %2789 = vmatpush.bf16.msra.mxu0 %v2110
        %2790 = vmatpush.bf16.msra.mxu0 %v2106
        %2791 = vmatmul.bf16.gmra.mxu0 %v1279
        %v2792 = vpop.f32.mrf.mxu0
        %v2793 = vadd.f32 %v1522, %v2792
        %v2794 = vpop.f32.mrf.mxu0
        %v2795 = vadd.f32 %v1522, %v2794
        %2796 = vmatmul.bf16.gmra.mxu0 %v1285
        %v2797 = vpop.f32.mrf.mxu0
        %v2798 = vadd.f32 %v1522, %v2797
        %v2799 = vpop.f32.mrf.mxu0
        %v2800 = vadd.f32 %v1522, %v2799
        %2801 = vmatmul.bf16.gmra.mxu0 %v1291
        %v2802 = vpop.f32.mrf.mxu0
        %v2803 = vadd.f32 %v1522, %v2802
        %v2804 = vpop.f32.mrf.mxu0
        %v2805 = vadd.f32 %v1522, %v2804
        %2806 = vmatmul.bf16.gmra.mxu0 %v1297
        %v2807 = vpop.f32.mrf.mxu0
        %v2808 = vadd.f32 %v1522, %v2807
        %v2809 = vpop.f32.mrf.mxu0
        %v2810 = vadd.f32 %v1522, %v2809
        %2811 = vmatmul.bf16.gmra.mxu0 %v1303
        %v2812 = vpop.f32.mrf.mxu0
        %v2813 = vadd.f32 %v1522, %v2812
        %v2814 = vpop.f32.mrf.mxu0
        %v2815 = vadd.f32 %v1522, %v2814
        %2816 = vmatmul.bf16.gmra.mxu0 %v1309
        %v2817 = vpop.f32.mrf.mxu0
        %v2818 = vadd.f32 %v1522, %v2817
        %v2819 = vpop.f32.mrf.mxu0
        %v2820 = vadd.f32 %v1522, %v2819
        %2821 = vmatmul.bf16.gmra.mxu0 %v1315
        %v2822 = vpop.f32.mrf.mxu0
        %v2823 = vadd.f32 %v1522, %v2822
        %v2824 = vpop.f32.mrf.mxu0
        %v2825 = vadd.f32 %v1522, %v2824
        %2826 = vmatmul.bf16.gmra.mxu0 %v1321
        %v2827 = vpop.f32.mrf.mxu0
        %v2828 = vadd.f32 %v1522, %v2827
        %v2829 = vpop.f32.mrf.mxu0
        %v2830 = vadd.f32 %v1522, %v2829
        %2831 = vdwg.mxu0
        %2832 = vmatpush.bf16.msra.mxu0 %v2166
        %2833 = vmatpush.bf16.msra.mxu0 %v2162
        %2834 = vmatpush.bf16.msra.mxu0 %v2158
        %2835 = vmatpush.bf16.msra.mxu0 %v2154
        %2836 = vmatpush.bf16.msra.mxu0 %v2150
        %2837 = vmatpush.bf16.msra.mxu0 %v2146
        %2838 = vmatpush.bf16.msra.mxu0 %v2142
        %2839 = vmatpush.bf16.msra.mxu0 %v2138
        %2840 = vmatmul.bf16.gmra.mxu0 %v1280
        %v2841 = vpop.f32.mrf.mxu0
        %v2842 = vadd.f32 %v2793, %v2841
        %v2843 = vpop.f32.mrf.mxu0
        %v2844 = vadd.f32 %v2795, %v2843
        %2845 = vmatmul.bf16.gmra.mxu0 %v1286
        %v2846 = vpop.f32.mrf.mxu0
        %v2847 = vadd.f32 %v2798, %v2846
        %v2848 = vpop.f32.mrf.mxu0
        %v2849 = vadd.f32 %v2800, %v2848
        %2850 = vmatmul.bf16.gmra.mxu0 %v1292
        %v2851 = vpop.f32.mrf.mxu0
        %v2852 = vadd.f32 %v2803, %v2851
        %v2853 = vpop.f32.mrf.mxu0
        %v2854 = vadd.f32 %v2805, %v2853
        %2855 = vmatmul.bf16.gmra.mxu0 %v1298
        %v2856 = vpop.f32.mrf.mxu0
        %v2857 = vadd.f32 %v2808, %v2856
        %v2858 = vpop.f32.mrf.mxu0
        %v2859 = vadd.f32 %v2810, %v2858
        %2860 = vmatmul.bf16.gmra.mxu0 %v1304
        %v2861 = vpop.f32.mrf.mxu0
        %v2862 = vadd.f32 %v2813, %v2861
        %v2863 = vpop.f32.mrf.mxu0
        %v2864 = vadd.f32 %v2815, %v2863
        %2865 = vmatmul.bf16.gmra.mxu0 %v1310
        %v2866 = vpop.f32.mrf.mxu0
        %v2867 = vadd.f32 %v2818, %v2866
        %v2868 = vpop.f32.mrf.mxu0
        %v2869 = vadd.f32 %v2820, %v2868
        %2870 = vmatmul.bf16.gmra.mxu0 %v1316
        %v2871 = vpop.f32.mrf.mxu0
        %v2872 = vadd.f32 %v2823, %v2871
        %v2873 = vpop.f32.mrf.mxu0
        %v2874 = vadd.f32 %v2825, %v2873
        %2875 = vmatmul.bf16.gmra.mxu0 %v1322
        %v2876 = vpop.f32.mrf.mxu0
        %v2877 = vadd.f32 %v2828, %v2876
        %v2878 = vpop.f32.mrf.mxu0
        %v2879 = vadd.f32 %v2830, %v2878
        %2880 = vdwg.mxu0
        %2881 = vmatpush.bf16.msra.mxu0 %v2198
        %2882 = vmatpush.bf16.msra.mxu0 %v2194
        %2883 = vmatpush.bf16.msra.mxu0 %v2190
        %2884 = vmatpush.bf16.msra.mxu0 %v2186
        %2885 = vmatpush.bf16.msra.mxu0 %v2182
        %2886 = vmatpush.bf16.msra.mxu0 %v2178
        %2887 = vmatpush.bf16.msra.mxu0 %v2174
        %2888 = vmatpush.bf16.msra.mxu0 %v2170
        %2889 = vmatmul.bf16.gmra.mxu0 %v1281
        %v2890 = vpop.f32.mrf.mxu0
        %v2891 = vadd.f32 %v2842, %v2890
        %v2892 = vpop.f32.mrf.mxu0
        %v2893 = vadd.f32 %v2844, %v2892
        %2894 = vmatmul.bf16.gmra.mxu0 %v1287
        %v2895 = vpop.f32.mrf.mxu0
        %v2896 = vadd.f32 %v2847, %v2895
        %v2897 = vpop.f32.mrf.mxu0
        %v2898 = vadd.f32 %v2849, %v2897
        %2899 = vmatmul.bf16.gmra.mxu0 %v1293
        %v2900 = vpop.f32.mrf.mxu0
        %v2901 = vadd.f32 %v2852, %v2900
        %v2902 = vpop.f32.mrf.mxu0
        %v2903 = vadd.f32 %v2854, %v2902
        %2904 = vmatmul.bf16.gmra.mxu0 %v1299
        %v2905 = vpop.f32.mrf.mxu0
        %v2906 = vadd.f32 %v2857, %v2905
        %v2907 = vpop.f32.mrf.mxu0
        %v2908 = vadd.f32 %v2859, %v2907
        %2909 = vmatmul.bf16.gmra.mxu0 %v1305
        %v2910 = vpop.f32.mrf.mxu0
        %v2911 = vadd.f32 %v2862, %v2910
        %v2912 = vpop.f32.mrf.mxu0
        %v2913 = vadd.f32 %v2864, %v2912
        %2914 = vmatmul.bf16.gmra.mxu0 %v1311
        %v2915 = vpop.f32.mrf.mxu0
        %v2916 = vadd.f32 %v2867, %v2915
        %v2917 = vpop.f32.mrf.mxu0
        %v2918 = vadd.f32 %v2869, %v2917
        %2919 = vmatmul.bf16.gmra.mxu0 %v1317
        %v2920 = vpop.f32.mrf.mxu0
        %v2921 = vadd.f32 %v2872, %v2920
        %v2922 = vpop.f32.mrf.mxu0
        %v2923 = vadd.f32 %v2874, %v2922
        %2924 = vmatmul.bf16.gmra.mxu0 %v1323
        %v2925 = vpop.f32.mrf.mxu0
        %v2926 = vadd.f32 %v2877, %v2925
        %v2927 = vpop.f32.mrf.mxu0
        %v2928 = vadd.f32 %v2879, %v2927
        %2929 = vdwg.mxu0
        %2930 = vmatpush.bf16.msra.mxu0 %v2230
        %2931 = vmatpush.bf16.msra.mxu0 %v2226
        %2932 = vmatpush.bf16.msra.mxu0 %v2222
        %2933 = vmatpush.bf16.msra.mxu0 %v2218
        %2934 = vmatpush.bf16.msra.mxu0 %v2214
        %2935 = vmatpush.bf16.msra.mxu0 %v2210
        %2936 = vmatpush.bf16.msra.mxu0 %v2206
        %2937 = vmatpush.bf16.msra.mxu0 %v2202
        %2938 = vmatmul.bf16.gmra.mxu0 %v1282
        %v2939 = vpop.f32.mrf.mxu0
        %v2940 = vadd.f32 %v2891, %v2939
        %v2941 = vpop.f32.mrf.mxu0
        %v2942 = vadd.f32 %v2893, %v2941
        %2943 = vmatmul.bf16.gmra.mxu0 %v1288
        %v2944 = vpop.f32.mrf.mxu0
        %v2945 = vadd.f32 %v2896, %v2944
        %v2946 = vpop.f32.mrf.mxu0
        %v2947 = vadd.f32 %v2898, %v2946
        %2948 = vmatmul.bf16.gmra.mxu0 %v1294
        %v2949 = vpop.f32.mrf.mxu0
        %v2950 = vadd.f32 %v2901, %v2949
        %v2951 = vpop.f32.mrf.mxu0
        %v2952 = vadd.f32 %v2903, %v2951
        %2953 = vmatmul.bf16.gmra.mxu0 %v1300
        %v2954 = vpop.f32.mrf.mxu0
        %v2955 = vadd.f32 %v2906, %v2954
        %v2956 = vpop.f32.mrf.mxu0
        %v2957 = vadd.f32 %v2908, %v2956
        %2958 = vmatmul.bf16.gmra.mxu0 %v1306
        %v2959 = vpop.f32.mrf.mxu0
        %v2960 = vadd.f32 %v2911, %v2959
        %v2961 = vpop.f32.mrf.mxu0
        %v2962 = vadd.f32 %v2913, %v2961
        %2963 = vmatmul.bf16.gmra.mxu0 %v1312
        %v2964 = vpop.f32.mrf.mxu0
        %v2965 = vadd.f32 %v2916, %v2964
        %v2966 = vpop.f32.mrf.mxu0
        %v2967 = vadd.f32 %v2918, %v2966
        %2968 = vmatmul.bf16.gmra.mxu0 %v1318
        %v2969 = vpop.f32.mrf.mxu0
        %v2970 = vadd.f32 %v2921, %v2969
        %v2971 = vpop.f32.mrf.mxu0
        %v2972 = vadd.f32 %v2923, %v2971
        %2973 = vmatmul.bf16.gmra.mxu0 %v1324
        %v2974 = vpop.f32.mrf.mxu0
        %v2975 = vadd.f32 %v2926, %v2974
        %v2976 = vpop.f32.mrf.mxu0
        %v2977 = vadd.f32 %v2928, %v2976
        %2978 = vdwg.mxu0
        %2979 = vmatpush.bf16.msra.mxu0 %v2262
        %2980 = vmatpush.bf16.msra.mxu0 %v2258
        %2981 = vmatpush.bf16.msra.mxu0 %v2254
        %2982 = vmatpush.bf16.msra.mxu0 %v2250
        %2983 = vmatpush.bf16.msra.mxu0 %v2246
        %2984 = vmatpush.bf16.msra.mxu0 %v2242
        %2985 = vmatpush.bf16.msra.mxu0 %v2238
        %2986 = vmatpush.bf16.msra.mxu0 %v2234
        %2987 = vmatmul.bf16.gmra.mxu0 %v1283
        %v2988 = vpop.f32.mrf.mxu0
        %v2989 = vadd.f32 %v2940, %v2988
        %v2990 = vpop.f32.mrf.mxu0
        %v2991 = vadd.f32 %v2942, %v2990
        %2992 = vmatmul.bf16.gmra.mxu0 %v1289
        %v2993 = vpop.f32.mrf.mxu0
        %v2994 = vadd.f32 %v2945, %v2993
        %v2995 = vpop.f32.mrf.mxu0
        %v2996 = vadd.f32 %v2947, %v2995
        %2997 = vmatmul.bf16.gmra.mxu0 %v1295
        %v2998 = vpop.f32.mrf.mxu0
        %v2999 = vadd.f32 %v2950, %v2998
        %v3000 = vpop.f32.mrf.mxu0
        %v3001 = vadd.f32 %v2952, %v3000
        %3002 = vmatmul.bf16.gmra.mxu0 %v1301
        %v3003 = vpop.f32.mrf.mxu0
        %v3004 = vadd.f32 %v2955, %v3003
        %v3005 = vpop.f32.mrf.mxu0
        %v3006 = vadd.f32 %v2957, %v3005
        %3007 = vmatmul.bf16.gmra.mxu0 %v1307
        %v3008 = vpop.f32.mrf.mxu0
        %v3009 = vadd.f32 %v2960, %v3008
        %v3010 = vpop.f32.mrf.mxu0
        %v3011 = vadd.f32 %v2962, %v3010
        %3012 = vmatmul.bf16.gmra.mxu0 %v1313
        %v3013 = vpop.f32.mrf.mxu0
        %v3014 = vadd.f32 %v2965, %v3013
        %v3015 = vpop.f32.mrf.mxu0
        %v3016 = vadd.f32 %v2967, %v3015
        %3017 = vmatmul.bf16.gmra.mxu0 %v1319
        %v3018 = vpop.f32.mrf.mxu0
        %v3019 = vadd.f32 %v2970, %v3018
        %v3020 = vpop.f32.mrf.mxu0
        %v3021 = vadd.f32 %v2972, %v3020
        %3022 = vmatmul.bf16.gmra.mxu0 %v1325
        %v3023 = vpop.f32.mrf.mxu0
        %v3024 = vadd.f32 %v2975, %v3023
        %v3025 = vpop.f32.mrf.mxu0
        %v3026 = vadd.f32 %v2977, %v3025
        %3027 = vdwg.mxu0
        %3028 = vmatpush.bf16.msra.mxu0 %v2294
        %3029 = vmatpush.bf16.msra.mxu0 %v2290
        %3030 = vmatpush.bf16.msra.mxu0 %v2286
        %3031 = vmatpush.bf16.msra.mxu0 %v2282
        %3032 = vmatpush.bf16.msra.mxu0 %v2278
        %3033 = vmatpush.bf16.msra.mxu0 %v2274
        %3034 = vmatpush.bf16.msra.mxu0 %v2270
        %3035 = vmatpush.bf16.msra.mxu0 %v2266
        %3036 = vmatmul.bf16.gmra.mxu0 %v1284
        %v3037 = vpop.f32.mrf.mxu0
        %v3038 = vadd.f32 %v2989, %v3037
        %v3039 = vpop.f32.mrf.mxu0
        %v3040 = vadd.f32 %v2991, %v3039
        %3041 = vmatmul.bf16.gmra.mxu0 %v1290
        %v3042 = vpop.f32.mrf.mxu0
        %v3043 = vadd.f32 %v2994, %v3042
        %v3044 = vpop.f32.mrf.mxu0
        %v3045 = vadd.f32 %v2996, %v3044
        %3046 = vmatmul.bf16.gmra.mxu0 %v1296
        %v3047 = vpop.f32.mrf.mxu0
        %v3048 = vadd.f32 %v2999, %v3047
        %v3049 = vpop.f32.mrf.mxu0
        %v3050 = vadd.f32 %v3001, %v3049
        %3051 = vmatmul.bf16.gmra.mxu0 %v1302
        %v3052 = vpop.f32.mrf.mxu0
        %v3053 = vadd.f32 %v3004, %v3052
        %v3054 = vpop.f32.mrf.mxu0
        %v3055 = vadd.f32 %v3006, %v3054
        %3056 = vmatmul.bf16.gmra.mxu0 %v1308
        %v3057 = vpop.f32.mrf.mxu0
        %v3058 = vadd.f32 %v3009, %v3057
        %v3059 = vpop.f32.mrf.mxu0
        %v3060 = vadd.f32 %v3011, %v3059
        %3061 = vmatmul.bf16.gmra.mxu0 %v1314
        %v3062 = vpop.f32.mrf.mxu0
        %v3063 = vadd.f32 %v3014, %v3062
        %v3064 = vpop.f32.mrf.mxu0
        %v3065 = vadd.f32 %v3016, %v3064
        %3066 = vmatmul.bf16.gmra.mxu0 %v1320
        %v3067 = vpop.f32.mrf.mxu0
        %v3068 = vadd.f32 %v3019, %v3067
        %v3069 = vpop.f32.mrf.mxu0
        %v3070 = vadd.f32 %v3021, %v3069
        %3071 = vmatmul.bf16.gmra.mxu0 %v1326
        %v3072 = vpop.f32.mrf.mxu0
        %v3073 = vadd.f32 %v3024, %v3072
        %v3074 = vpop.f32.mrf.mxu0
        %v3075 = vadd.f32 %v3026, %v3074
        %3076 = vdwg.mxu0
        %3077 = vmatpush.bf16.msra.mxu0 %v2135
        %3078 = vmatpush.bf16.msra.mxu0 %v2131
        %3079 = vmatpush.bf16.msra.mxu0 %v2127
        %3080 = vmatpush.bf16.msra.mxu0 %v2123
        %3081 = vmatpush.bf16.msra.mxu0 %v2119
        %3082 = vmatpush.bf16.msra.mxu0 %v2115
        %3083 = vmatpush.bf16.msra.mxu0 %v2111
        %3084 = vmatpush.bf16.msra.mxu0 %v2107
        %3085 = vmatmul.bf16.gmra.mxu0 %v1279
        %v3086 = vpop.f32.mrf.mxu0
        %v3087 = vadd.f32 %v1523, %v3086
        %v3088 = vpop.f32.mrf.mxu0
        %v3089 = vadd.f32 %v1523, %v3088
        %3090 = vmatmul.bf16.gmra.mxu0 %v1285
        %v3091 = vpop.f32.mrf.mxu0
        %v3092 = vadd.f32 %v1523, %v3091
        %v3093 = vpop.f32.mrf.mxu0
        %v3094 = vadd.f32 %v1523, %v3093
        %3095 = vmatmul.bf16.gmra.mxu0 %v1291
        %v3096 = vpop.f32.mrf.mxu0
        %v3097 = vadd.f32 %v1523, %v3096
        %v3098 = vpop.f32.mrf.mxu0
        %v3099 = vadd.f32 %v1523, %v3098
        %3100 = vmatmul.bf16.gmra.mxu0 %v1297
        %v3101 = vpop.f32.mrf.mxu0
        %v3102 = vadd.f32 %v1523, %v3101
        %v3103 = vpop.f32.mrf.mxu0
        %v3104 = vadd.f32 %v1523, %v3103
        %3105 = vmatmul.bf16.gmra.mxu0 %v1303
        %v3106 = vpop.f32.mrf.mxu0
        %v3107 = vadd.f32 %v1523, %v3106
        %v3108 = vpop.f32.mrf.mxu0
        %v3109 = vadd.f32 %v1523, %v3108
        %3110 = vmatmul.bf16.gmra.mxu0 %v1309
        %v3111 = vpop.f32.mrf.mxu0
        %v3112 = vadd.f32 %v1523, %v3111
        %v3113 = vpop.f32.mrf.mxu0
        %v3114 = vadd.f32 %v1523, %v3113
        %3115 = vmatmul.bf16.gmra.mxu0 %v1315
        %v3116 = vpop.f32.mrf.mxu0
        %v3117 = vadd.f32 %v1523, %v3116
        %v3118 = vpop.f32.mrf.mxu0
        %v3119 = vadd.f32 %v1523, %v3118
        %3120 = vmatmul.bf16.gmra.mxu0 %v1321
        %v3121 = vpop.f32.mrf.mxu0
        %v3122 = vadd.f32 %v1523, %v3121
        %v3123 = vpop.f32.mrf.mxu0
        %v3124 = vadd.f32 %v1523, %v3123
        %3125 = vdwg.mxu0
        %3126 = vmatpush.bf16.msra.mxu0 %v2167
        %3127 = vmatpush.bf16.msra.mxu0 %v2163
        %3128 = vmatpush.bf16.msra.mxu0 %v2159
        %3129 = vmatpush.bf16.msra.mxu0 %v2155
        %3130 = vmatpush.bf16.msra.mxu0 %v2151
        %3131 = vmatpush.bf16.msra.mxu0 %v2147
        %3132 = vmatpush.bf16.msra.mxu0 %v2143
        %3133 = vmatpush.bf16.msra.mxu0 %v2139
        %3134 = vmatmul.bf16.gmra.mxu0 %v1280
        %v3135 = vpop.f32.mrf.mxu0
        %v3136 = vadd.f32 %v3087, %v3135
        %v3137 = vpop.f32.mrf.mxu0
        %v3138 = vadd.f32 %v3089, %v3137
        %3139 = vmatmul.bf16.gmra.mxu0 %v1286
        %v3140 = vpop.f32.mrf.mxu0
        %v3141 = vadd.f32 %v3092, %v3140
        %v3142 = vpop.f32.mrf.mxu0
        %v3143 = vadd.f32 %v3094, %v3142
        %3144 = vmatmul.bf16.gmra.mxu0 %v1292
        %v3145 = vpop.f32.mrf.mxu0
        %v3146 = vadd.f32 %v3097, %v3145
        %v3147 = vpop.f32.mrf.mxu0
        %v3148 = vadd.f32 %v3099, %v3147
        %3149 = vmatmul.bf16.gmra.mxu0 %v1298
        %v3150 = vpop.f32.mrf.mxu0
        %v3151 = vadd.f32 %v3102, %v3150
        %v3152 = vpop.f32.mrf.mxu0
        %v3153 = vadd.f32 %v3104, %v3152
        %3154 = vmatmul.bf16.gmra.mxu0 %v1304
        %v3155 = vpop.f32.mrf.mxu0
        %v3156 = vadd.f32 %v3107, %v3155
        %v3157 = vpop.f32.mrf.mxu0
        %v3158 = vadd.f32 %v3109, %v3157
        %3159 = vmatmul.bf16.gmra.mxu0 %v1310
        %v3160 = vpop.f32.mrf.mxu0
        %v3161 = vadd.f32 %v3112, %v3160
        %v3162 = vpop.f32.mrf.mxu0
        %v3163 = vadd.f32 %v3114, %v3162
        %3164 = vmatmul.bf16.gmra.mxu0 %v1316
        %v3165 = vpop.f32.mrf.mxu0
        %v3166 = vadd.f32 %v3117, %v3165
        %v3167 = vpop.f32.mrf.mxu0
        %v3168 = vadd.f32 %v3119, %v3167
        %3169 = vmatmul.bf16.gmra.mxu0 %v1322
        %v3170 = vpop.f32.mrf.mxu0
        %v3171 = vadd.f32 %v3122, %v3170
        %v3172 = vpop.f32.mrf.mxu0
        %v3173 = vadd.f32 %v3124, %v3172
        %3174 = vdwg.mxu0
        %3175 = vmatpush.bf16.msra.mxu0 %v2199
        %3176 = vmatpush.bf16.msra.mxu0 %v2195
        %3177 = vmatpush.bf16.msra.mxu0 %v2191
        %3178 = vmatpush.bf16.msra.mxu0 %v2187
        %3179 = vmatpush.bf16.msra.mxu0 %v2183
        %3180 = vmatpush.bf16.msra.mxu0 %v2179
        %3181 = vmatpush.bf16.msra.mxu0 %v2175
        %3182 = vmatpush.bf16.msra.mxu0 %v2171
        %3183 = vmatmul.bf16.gmra.mxu0 %v1281
        %v3184 = vpop.f32.mrf.mxu0
        %v3185 = vadd.f32 %v3136, %v3184
        %v3186 = vpop.f32.mrf.mxu0
        %v3187 = vadd.f32 %v3138, %v3186
        %3188 = vmatmul.bf16.gmra.mxu0 %v1287
        %v3189 = vpop.f32.mrf.mxu0
        %v3190 = vadd.f32 %v3141, %v3189
        %v3191 = vpop.f32.mrf.mxu0
        %v3192 = vadd.f32 %v3143, %v3191
        %3193 = vmatmul.bf16.gmra.mxu0 %v1293
        %v3194 = vpop.f32.mrf.mxu0
        %v3195 = vadd.f32 %v3146, %v3194
        %v3196 = vpop.f32.mrf.mxu0
        %v3197 = vadd.f32 %v3148, %v3196
        %3198 = vmatmul.bf16.gmra.mxu0 %v1299
        %v3199 = vpop.f32.mrf.mxu0
        %v3200 = vadd.f32 %v3151, %v3199
        %v3201 = vpop.f32.mrf.mxu0
        %v3202 = vadd.f32 %v3153, %v3201
        %3203 = vmatmul.bf16.gmra.mxu0 %v1305
        %v3204 = vpop.f32.mrf.mxu0
        %v3205 = vadd.f32 %v3156, %v3204
        %v3206 = vpop.f32.mrf.mxu0
        %v3207 = vadd.f32 %v3158, %v3206
        %3208 = vmatmul.bf16.gmra.mxu0 %v1311
        %v3209 = vpop.f32.mrf.mxu0
        %v3210 = vadd.f32 %v3161, %v3209
        %v3211 = vpop.f32.mrf.mxu0
        %v3212 = vadd.f32 %v3163, %v3211
        %3213 = vmatmul.bf16.gmra.mxu0 %v1317
        %v3214 = vpop.f32.mrf.mxu0
        %v3215 = vadd.f32 %v3166, %v3214
        %v3216 = vpop.f32.mrf.mxu0
        %v3217 = vadd.f32 %v3168, %v3216
        %3218 = vmatmul.bf16.gmra.mxu0 %v1323
        %v3219 = vpop.f32.mrf.mxu0
        %v3220 = vadd.f32 %v3171, %v3219
        %v3221 = vpop.f32.mrf.mxu0
        %v3222 = vadd.f32 %v3173, %v3221
        %3223 = vdwg.mxu0
        %3224 = vmatpush.bf16.msra.mxu0 %v2231
        %3225 = vmatpush.bf16.msra.mxu0 %v2227
        %3226 = vmatpush.bf16.msra.mxu0 %v2223
        %3227 = vmatpush.bf16.msra.mxu0 %v2219
        %3228 = vmatpush.bf16.msra.mxu0 %v2215
        %3229 = vmatpush.bf16.msra.mxu0 %v2211
        %3230 = vmatpush.bf16.msra.mxu0 %v2207
        %3231 = vmatpush.bf16.msra.mxu0 %v2203
        %3232 = vmatmul.bf16.gmra.mxu0 %v1282
        %v3233 = vpop.f32.mrf.mxu0
        %v3234 = vadd.f32 %v3185, %v3233
        %v3235 = vpop.f32.mrf.mxu0
        %v3236 = vadd.f32 %v3187, %v3235
        %3237 = vmatmul.bf16.gmra.mxu0 %v1288
        %v3238 = vpop.f32.mrf.mxu0
        %v3239 = vadd.f32 %v3190, %v3238
        %v3240 = vpop.f32.mrf.mxu0
        %v3241 = vadd.f32 %v3192, %v3240
        %3242 = vmatmul.bf16.gmra.mxu0 %v1294
        %v3243 = vpop.f32.mrf.mxu0
        %v3244 = vadd.f32 %v3195, %v3243
        %v3245 = vpop.f32.mrf.mxu0
        %v3246 = vadd.f32 %v3197, %v3245
        %3247 = vmatmul.bf16.gmra.mxu0 %v1300
        %v3248 = vpop.f32.mrf.mxu0
        %v3249 = vadd.f32 %v3200, %v3248
        %v3250 = vpop.f32.mrf.mxu0
        %v3251 = vadd.f32 %v3202, %v3250
        %3252 = vmatmul.bf16.gmra.mxu0 %v1306
        %v3253 = vpop.f32.mrf.mxu0
        %v3254 = vadd.f32 %v3205, %v3253
        %v3255 = vpop.f32.mrf.mxu0
        %v3256 = vadd.f32 %v3207, %v3255
        %3257 = vmatmul.bf16.gmra.mxu0 %v1312
        %v3258 = vpop.f32.mrf.mxu0
        %v3259 = vadd.f32 %v3210, %v3258
        %v3260 = vpop.f32.mrf.mxu0
        %v3261 = vadd.f32 %v3212, %v3260
        %3262 = vmatmul.bf16.gmra.mxu0 %v1318
        %v3263 = vpop.f32.mrf.mxu0
        %v3264 = vadd.f32 %v3215, %v3263
        %v3265 = vpop.f32.mrf.mxu0
        %v3266 = vadd.f32 %v3217, %v3265
        %3267 = vmatmul.bf16.gmra.mxu0 %v1324
        %v3268 = vpop.f32.mrf.mxu0
        %v3269 = vadd.f32 %v3220, %v3268
        %v3270 = vpop.f32.mrf.mxu0
        %v3271 = vadd.f32 %v3222, %v3270
        %3272 = vdwg.mxu0
        %3273 = vmatpush.bf16.msra.mxu0 %v2263
        %3274 = vmatpush.bf16.msra.mxu0 %v2259
        %3275 = vmatpush.bf16.msra.mxu0 %v2255
        %3276 = vmatpush.bf16.msra.mxu0 %v2251
        %3277 = vmatpush.bf16.msra.mxu0 %v2247
        %3278 = vmatpush.bf16.msra.mxu0 %v2243
        %3279 = vmatpush.bf16.msra.mxu0 %v2239
        %3280 = vmatpush.bf16.msra.mxu0 %v2235
        %3281 = vmatmul.bf16.gmra.mxu0 %v1283
        %v3282 = vpop.f32.mrf.mxu0
        %v3283 = vadd.f32 %v3234, %v3282
        %v3284 = vpop.f32.mrf.mxu0
        %v3285 = vadd.f32 %v3236, %v3284
        %3286 = vmatmul.bf16.gmra.mxu0 %v1289
        %v3287 = vpop.f32.mrf.mxu0
        %v3288 = vadd.f32 %v3239, %v3287
        %v3289 = vpop.f32.mrf.mxu0
        %v3290 = vadd.f32 %v3241, %v3289
        %3291 = vmatmul.bf16.gmra.mxu0 %v1295
        %v3292 = vpop.f32.mrf.mxu0
        %v3293 = vadd.f32 %v3244, %v3292
        %v3294 = vpop.f32.mrf.mxu0
        %v3295 = vadd.f32 %v3246, %v3294
        %3296 = vmatmul.bf16.gmra.mxu0 %v1301
        %v3297 = vpop.f32.mrf.mxu0
        %v3298 = vadd.f32 %v3249, %v3297
        %v3299 = vpop.f32.mrf.mxu0
        %v3300 = vadd.f32 %v3251, %v3299
        %3301 = vmatmul.bf16.gmra.mxu0 %v1307
        %v3302 = vpop.f32.mrf.mxu0
        %v3303 = vadd.f32 %v3254, %v3302
        %v3304 = vpop.f32.mrf.mxu0
        %v3305 = vadd.f32 %v3256, %v3304
        %3306 = vmatmul.bf16.gmra.mxu0 %v1313
        %v3307 = vpop.f32.mrf.mxu0
        %v3308 = vadd.f32 %v3259, %v3307
        %v3309 = vpop.f32.mrf.mxu0
        %v3310 = vadd.f32 %v3261, %v3309
        %3311 = vmatmul.bf16.gmra.mxu0 %v1319
        %v3312 = vpop.f32.mrf.mxu0
        %v3313 = vadd.f32 %v3264, %v3312
        %v3314 = vpop.f32.mrf.mxu0
        %v3315 = vadd.f32 %v3266, %v3314
        %3316 = vmatmul.bf16.gmra.mxu0 %v1325
        %v3317 = vpop.f32.mrf.mxu0
        %v3318 = vadd.f32 %v3269, %v3317
        %v3319 = vpop.f32.mrf.mxu0
        %v3320 = vadd.f32 %v3271, %v3319
        %3321 = vdwg.mxu0
        %3322 = vmatpush.bf16.msra.mxu0 %v2295
        %3323 = vmatpush.bf16.msra.mxu0 %v2291
        %3324 = vmatpush.bf16.msra.mxu0 %v2287
        %3325 = vmatpush.bf16.msra.mxu0 %v2283
        %3326 = vmatpush.bf16.msra.mxu0 %v2279
        %3327 = vmatpush.bf16.msra.mxu0 %v2275
        %3328 = vmatpush.bf16.msra.mxu0 %v2271
        %3329 = vmatpush.bf16.msra.mxu0 %v2267
        %3330 = vmatmul.bf16.gmra.mxu0 %v1284
        %v3331 = vpop.f32.mrf.mxu0
        %v3332 = vadd.f32 %v3283, %v3331
        %v3333 = vpop.f32.mrf.mxu0
        %v3334 = vadd.f32 %v3285, %v3333
        %3335 = vmatmul.bf16.gmra.mxu0 %v1290
        %v3336 = vpop.f32.mrf.mxu0
        %v3337 = vadd.f32 %v3288, %v3336
        %v3338 = vpop.f32.mrf.mxu0
        %v3339 = vadd.f32 %v3290, %v3338
        %3340 = vmatmul.bf16.gmra.mxu0 %v1296
        %v3341 = vpop.f32.mrf.mxu0
        %v3342 = vadd.f32 %v3293, %v3341
        %v3343 = vpop.f32.mrf.mxu0
        %v3344 = vadd.f32 %v3295, %v3343
        %3345 = vmatmul.bf16.gmra.mxu0 %v1302
        %v3346 = vpop.f32.mrf.mxu0
        %v3347 = vadd.f32 %v3298, %v3346
        %v3348 = vpop.f32.mrf.mxu0
        %v3349 = vadd.f32 %v3300, %v3348
        %3350 = vmatmul.bf16.gmra.mxu0 %v1308
        %v3351 = vpop.f32.mrf.mxu0
        %v3352 = vadd.f32 %v3303, %v3351
        %v3353 = vpop.f32.mrf.mxu0
        %v3354 = vadd.f32 %v3305, %v3353
        %3355 = vmatmul.bf16.gmra.mxu0 %v1314
        %v3356 = vpop.f32.mrf.mxu0
        %v3357 = vadd.f32 %v3308, %v3356
        %v3358 = vpop.f32.mrf.mxu0
        %v3359 = vadd.f32 %v3310, %v3358
        %3360 = vmatmul.bf16.gmra.mxu0 %v1320
        %v3361 = vpop.f32.mrf.mxu0
        %v3362 = vadd.f32 %v3313, %v3361
        %v3363 = vpop.f32.mrf.mxu0
        %v3364 = vadd.f32 %v3315, %v3363
        %3365 = vmatmul.bf16.gmra.mxu0 %v1326
        %v3366 = vpop.f32.mrf.mxu0
        %v3367 = vadd.f32 %v3318, %v3366
        %v3368 = vpop.f32.mrf.mxu0
        %v3369 = vadd.f32 %v3320, %v3368
        %3370 = vdwg.mxu0
        %3371 = vmatpush.bf16.msra.mxu0 %v2136
        %3372 = vmatpush.bf16.msra.mxu0 %v2132
        %3373 = vmatpush.bf16.msra.mxu0 %v2128
        %3374 = vmatpush.bf16.msra.mxu0 %v2124
        %3375 = vmatpush.bf16.msra.mxu0 %v2120
        %3376 = vmatpush.bf16.msra.mxu0 %v2116
        %3377 = vmatpush.bf16.msra.mxu0 %v2112
        %3378 = vmatpush.bf16.msra.mxu0 %v2108
        %3379 = vmatmul.bf16.gmra.mxu0 %v1279
        %v3380 = vpop.f32.mrf.mxu0
        %v3381 = vadd.f32 %v1524, %v3380
        %v3382 = vpop.f32.mrf.mxu0
        %v3383 = vadd.f32 %v1524, %v3382
        %3384 = vmatmul.bf16.gmra.mxu0 %v1285
        %v3385 = vpop.f32.mrf.mxu0
        %v3386 = vadd.f32 %v1524, %v3385
        %v3387 = vpop.f32.mrf.mxu0
        %v3388 = vadd.f32 %v1524, %v3387
        %3389 = vmatmul.bf16.gmra.mxu0 %v1291
        %v3390 = vpop.f32.mrf.mxu0
        %v3391 = vadd.f32 %v1524, %v3390
        %v3392 = vpop.f32.mrf.mxu0
        %v3393 = vadd.f32 %v1524, %v3392
        %3394 = vmatmul.bf16.gmra.mxu0 %v1297
        %v3395 = vpop.f32.mrf.mxu0
        %v3396 = vadd.f32 %v1524, %v3395
        %v3397 = vpop.f32.mrf.mxu0
        %v3398 = vadd.f32 %v1524, %v3397
        %3399 = vmatmul.bf16.gmra.mxu0 %v1303
        %v3400 = vpop.f32.mrf.mxu0
        %v3401 = vadd.f32 %v1524, %v3400
        %v3402 = vpop.f32.mrf.mxu0
        %v3403 = vadd.f32 %v1524, %v3402
        %3404 = vmatmul.bf16.gmra.mxu0 %v1309
        %v3405 = vpop.f32.mrf.mxu0
        %v3406 = vadd.f32 %v1524, %v3405
        %v3407 = vpop.f32.mrf.mxu0
        %v3408 = vadd.f32 %v1524, %v3407
        %3409 = vmatmul.bf16.gmra.mxu0 %v1315
        %v3410 = vpop.f32.mrf.mxu0
        %v3411 = vadd.f32 %v1524, %v3410
        %v3412 = vpop.f32.mrf.mxu0
        %v3413 = vadd.f32 %v1524, %v3412
        %3414 = vmatmul.bf16.gmra.mxu0 %v1321
        %v3415 = vpop.f32.mrf.mxu0
        %v3416 = vadd.f32 %v1524, %v3415
        %v3417 = vpop.f32.mrf.mxu0
        %v3418 = vadd.f32 %v1524, %v3417
        %3419 = vdwg.mxu0
        %3420 = vmatpush.bf16.msra.mxu0 %v2168
        %3421 = vmatpush.bf16.msra.mxu0 %v2164
        %3422 = vmatpush.bf16.msra.mxu0 %v2160
        %3423 = vmatpush.bf16.msra.mxu0 %v2156
        %3424 = vmatpush.bf16.msra.mxu0 %v2152
        %3425 = vmatpush.bf16.msra.mxu0 %v2148
        %3426 = vmatpush.bf16.msra.mxu0 %v2144
        %3427 = vmatpush.bf16.msra.mxu0 %v2140
        %3428 = vmatmul.bf16.gmra.mxu0 %v1280
        %v3429 = vpop.f32.mrf.mxu0
        %v3430 = vadd.f32 %v3381, %v3429
        %v3431 = vpop.f32.mrf.mxu0
        %v3432 = vadd.f32 %v3383, %v3431
        %3433 = vmatmul.bf16.gmra.mxu0 %v1286
        %v3434 = vpop.f32.mrf.mxu0
        %v3435 = vadd.f32 %v3386, %v3434
        %v3436 = vpop.f32.mrf.mxu0
        %v3437 = vadd.f32 %v3388, %v3436
        %3438 = vmatmul.bf16.gmra.mxu0 %v1292
        %v3439 = vpop.f32.mrf.mxu0
        %v3440 = vadd.f32 %v3391, %v3439
        %v3441 = vpop.f32.mrf.mxu0
        %v3442 = vadd.f32 %v3393, %v3441
        %3443 = vmatmul.bf16.gmra.mxu0 %v1298
        %v3444 = vpop.f32.mrf.mxu0
        %v3445 = vadd.f32 %v3396, %v3444
        %v3446 = vpop.f32.mrf.mxu0
        %v3447 = vadd.f32 %v3398, %v3446
        %3448 = vmatmul.bf16.gmra.mxu0 %v1304
        %v3449 = vpop.f32.mrf.mxu0
        %v3450 = vadd.f32 %v3401, %v3449
        %v3451 = vpop.f32.mrf.mxu0
        %v3452 = vadd.f32 %v3403, %v3451
        %3453 = vmatmul.bf16.gmra.mxu0 %v1310
        %v3454 = vpop.f32.mrf.mxu0
        %v3455 = vadd.f32 %v3406, %v3454
        %v3456 = vpop.f32.mrf.mxu0
        %v3457 = vadd.f32 %v3408, %v3456
        %3458 = vmatmul.bf16.gmra.mxu0 %v1316
        %v3459 = vpop.f32.mrf.mxu0
        %v3460 = vadd.f32 %v3411, %v3459
        %v3461 = vpop.f32.mrf.mxu0
        %v3462 = vadd.f32 %v3413, %v3461
        %3463 = vmatmul.bf16.gmra.mxu0 %v1322
        %v3464 = vpop.f32.mrf.mxu0
        %v3465 = vadd.f32 %v3416, %v3464
        %v3466 = vpop.f32.mrf.mxu0
        %v3467 = vadd.f32 %v3418, %v3466
        %3468 = vdwg.mxu0
        %3469 = vmatpush.bf16.msra.mxu0 %v2200
        %3470 = vmatpush.bf16.msra.mxu0 %v2196
        %3471 = vmatpush.bf16.msra.mxu0 %v2192
        %3472 = vmatpush.bf16.msra.mxu0 %v2188
        %3473 = vmatpush.bf16.msra.mxu0 %v2184
        %3474 = vmatpush.bf16.msra.mxu0 %v2180
        %3475 = vmatpush.bf16.msra.mxu0 %v2176
        %3476 = vmatpush.bf16.msra.mxu0 %v2172
        %3477 = vmatmul.bf16.gmra.mxu0 %v1281
        %v3478 = vpop.f32.mrf.mxu0
        %v3479 = vadd.f32 %v3430, %v3478
        %v3480 = vpop.f32.mrf.mxu0
        %v3481 = vadd.f32 %v3432, %v3480
        %3482 = vmatmul.bf16.gmra.mxu0 %v1287
        %v3483 = vpop.f32.mrf.mxu0
        %v3484 = vadd.f32 %v3435, %v3483
        %v3485 = vpop.f32.mrf.mxu0
        %v3486 = vadd.f32 %v3437, %v3485
        %3487 = vmatmul.bf16.gmra.mxu0 %v1293
        %v3488 = vpop.f32.mrf.mxu0
        %v3489 = vadd.f32 %v3440, %v3488
        %v3490 = vpop.f32.mrf.mxu0
        %v3491 = vadd.f32 %v3442, %v3490
        %3492 = vmatmul.bf16.gmra.mxu0 %v1299
        %v3493 = vpop.f32.mrf.mxu0
        %v3494 = vadd.f32 %v3445, %v3493
        %v3495 = vpop.f32.mrf.mxu0
        %v3496 = vadd.f32 %v3447, %v3495
        %3497 = vmatmul.bf16.gmra.mxu0 %v1305
        %v3498 = vpop.f32.mrf.mxu0
        %v3499 = vadd.f32 %v3450, %v3498
        %v3500 = vpop.f32.mrf.mxu0
        %v3501 = vadd.f32 %v3452, %v3500
        %3502 = vmatmul.bf16.gmra.mxu0 %v1311
        %v3503 = vpop.f32.mrf.mxu0
        %v3504 = vadd.f32 %v3455, %v3503
        %v3505 = vpop.f32.mrf.mxu0
        %v3506 = vadd.f32 %v3457, %v3505
        %3507 = vmatmul.bf16.gmra.mxu0 %v1317
        %v3508 = vpop.f32.mrf.mxu0
        %v3509 = vadd.f32 %v3460, %v3508
        %v3510 = vpop.f32.mrf.mxu0
        %v3511 = vadd.f32 %v3462, %v3510
        %3512 = vmatmul.bf16.gmra.mxu0 %v1323
        %v3513 = vpop.f32.mrf.mxu0
        %v3514 = vadd.f32 %v3465, %v3513
        %v3515 = vpop.f32.mrf.mxu0
        %v3516 = vadd.f32 %v3467, %v3515
        %3517 = vdwg.mxu0
        %3518 = vmatpush.bf16.msra.mxu0 %v2232
        %3519 = vmatpush.bf16.msra.mxu0 %v2228
        %3520 = vmatpush.bf16.msra.mxu0 %v2224
        %3521 = vmatpush.bf16.msra.mxu0 %v2220
        %3522 = vmatpush.bf16.msra.mxu0 %v2216
        %3523 = vmatpush.bf16.msra.mxu0 %v2212
        %3524 = vmatpush.bf16.msra.mxu0 %v2208
        %3525 = vmatpush.bf16.msra.mxu0 %v2204
        %3526 = vmatmul.bf16.gmra.mxu0 %v1282
        %v3527 = vpop.f32.mrf.mxu0
        %v3528 = vadd.f32 %v3479, %v3527
        %v3529 = vpop.f32.mrf.mxu0
        %v3530 = vadd.f32 %v3481, %v3529
        %3531 = vmatmul.bf16.gmra.mxu0 %v1288
        %v3532 = vpop.f32.mrf.mxu0
        %v3533 = vadd.f32 %v3484, %v3532
        %v3534 = vpop.f32.mrf.mxu0
        %v3535 = vadd.f32 %v3486, %v3534
        %3536 = vmatmul.bf16.gmra.mxu0 %v1294
        %v3537 = vpop.f32.mrf.mxu0
        %v3538 = vadd.f32 %v3489, %v3537
        %v3539 = vpop.f32.mrf.mxu0
        %v3540 = vadd.f32 %v3491, %v3539
        %3541 = vmatmul.bf16.gmra.mxu0 %v1300
        %v3542 = vpop.f32.mrf.mxu0
        %v3543 = vadd.f32 %v3494, %v3542
        %v3544 = vpop.f32.mrf.mxu0
        %v3545 = vadd.f32 %v3496, %v3544
        %3546 = vmatmul.bf16.gmra.mxu0 %v1306
        %v3547 = vpop.f32.mrf.mxu0
        %v3548 = vadd.f32 %v3499, %v3547
        %v3549 = vpop.f32.mrf.mxu0
        %v3550 = vadd.f32 %v3501, %v3549
        %3551 = vmatmul.bf16.gmra.mxu0 %v1312
        %v3552 = vpop.f32.mrf.mxu0
        %v3553 = vadd.f32 %v3504, %v3552
        %v3554 = vpop.f32.mrf.mxu0
        %v3555 = vadd.f32 %v3506, %v3554
        %3556 = vmatmul.bf16.gmra.mxu0 %v1318
        %v3557 = vpop.f32.mrf.mxu0
        %v3558 = vadd.f32 %v3509, %v3557
        %v3559 = vpop.f32.mrf.mxu0
        %v3560 = vadd.f32 %v3511, %v3559
        %3561 = vmatmul.bf16.gmra.mxu0 %v1324
        %v3562 = vpop.f32.mrf.mxu0
        %v3563 = vadd.f32 %v3514, %v3562
        %v3564 = vpop.f32.mrf.mxu0
        %v3565 = vadd.f32 %v3516, %v3564
        %3566 = vdwg.mxu0
        %3567 = vmatpush.bf16.msra.mxu0 %v2264
        %3568 = vmatpush.bf16.msra.mxu0 %v2260
        %3569 = vmatpush.bf16.msra.mxu0 %v2256
        %3570 = vmatpush.bf16.msra.mxu0 %v2252
        %3571 = vmatpush.bf16.msra.mxu0 %v2248
        %3572 = vmatpush.bf16.msra.mxu0 %v2244
        %3573 = vmatpush.bf16.msra.mxu0 %v2240
        %3574 = vmatpush.bf16.msra.mxu0 %v2236
        %3575 = vmatmul.bf16.gmra.mxu0 %v1283
        %v3576 = vpop.f32.mrf.mxu0
        %v3577 = vadd.f32 %v3528, %v3576
        %v3578 = vpop.f32.mrf.mxu0
        %v3579 = vadd.f32 %v3530, %v3578
        %3580 = vmatmul.bf16.gmra.mxu0 %v1289
        %v3581 = vpop.f32.mrf.mxu0
        %v3582 = vadd.f32 %v3533, %v3581
        %v3583 = vpop.f32.mrf.mxu0
        %v3584 = vadd.f32 %v3535, %v3583
        %3585 = vmatmul.bf16.gmra.mxu0 %v1295
        %v3586 = vpop.f32.mrf.mxu0
        %v3587 = vadd.f32 %v3538, %v3586
        %v3588 = vpop.f32.mrf.mxu0
        %v3589 = vadd.f32 %v3540, %v3588
        %3590 = vmatmul.bf16.gmra.mxu0 %v1301
        %v3591 = vpop.f32.mrf.mxu0
        %v3592 = vadd.f32 %v3543, %v3591
        %v3593 = vpop.f32.mrf.mxu0
        %v3594 = vadd.f32 %v3545, %v3593
        %3595 = vmatmul.bf16.gmra.mxu0 %v1307
        %v3596 = vpop.f32.mrf.mxu0
        %v3597 = vadd.f32 %v3548, %v3596
        %v3598 = vpop.f32.mrf.mxu0
        %v3599 = vadd.f32 %v3550, %v3598
        %3600 = vmatmul.bf16.gmra.mxu0 %v1313
        %v3601 = vpop.f32.mrf.mxu0
        %v3602 = vadd.f32 %v3553, %v3601
        %v3603 = vpop.f32.mrf.mxu0
        %v3604 = vadd.f32 %v3555, %v3603
        %3605 = vmatmul.bf16.gmra.mxu0 %v1319
        %v3606 = vpop.f32.mrf.mxu0
        %v3607 = vadd.f32 %v3558, %v3606
        %v3608 = vpop.f32.mrf.mxu0
        %v3609 = vadd.f32 %v3560, %v3608
        %3610 = vmatmul.bf16.gmra.mxu0 %v1325
        %v3611 = vpop.f32.mrf.mxu0
        %v3612 = vadd.f32 %v3563, %v3611
        %v3613 = vpop.f32.mrf.mxu0
        %v3614 = vadd.f32 %v3565, %v3613
        %3615 = vdwg.mxu0
        %3616 = vmatpush.bf16.msra.mxu0 %v2296
        %3617 = vmatpush.bf16.msra.mxu0 %v2292
        %3618 = vmatpush.bf16.msra.mxu0 %v2288
        %3619 = vmatpush.bf16.msra.mxu0 %v2284
        %3620 = vmatpush.bf16.msra.mxu0 %v2280
        %3621 = vmatpush.bf16.msra.mxu0 %v2276
        %3622 = vmatpush.bf16.msra.mxu0 %v2272
        %3623 = vmatpush.bf16.msra.mxu0 %v2268
        %3624 = vmatmul.bf16.gmra.mxu0 %v1284
        %v3625 = vpop.f32.mrf.mxu0
        %v3626 = vadd.f32 %v3577, %v3625
        %v3627 = vpop.f32.mrf.mxu0
        %v3628 = vadd.f32 %v3579, %v3627
        %3629 = vmatmul.bf16.gmra.mxu0 %v1290
        %v3630 = vpop.f32.mrf.mxu0
        %v3631 = vadd.f32 %v3582, %v3630
        %v3632 = vpop.f32.mrf.mxu0
        %v3633 = vadd.f32 %v3584, %v3632
        %3634 = vmatmul.bf16.gmra.mxu0 %v1296
        %v3635 = vpop.f32.mrf.mxu0
        %v3636 = vadd.f32 %v3587, %v3635
        %v3637 = vpop.f32.mrf.mxu0
        %v3638 = vadd.f32 %v3589, %v3637
        %3639 = vmatmul.bf16.gmra.mxu0 %v1302
        %v3640 = vpop.f32.mrf.mxu0
        %v3641 = vadd.f32 %v3592, %v3640
        %v3642 = vpop.f32.mrf.mxu0
        %v3643 = vadd.f32 %v3594, %v3642
        %3644 = vmatmul.bf16.gmra.mxu0 %v1308
        %v3645 = vpop.f32.mrf.mxu0
        %v3646 = vadd.f32 %v3597, %v3645
        %v3647 = vpop.f32.mrf.mxu0
        %v3648 = vadd.f32 %v3599, %v3647
        %3649 = vmatmul.bf16.gmra.mxu0 %v1314
        %v3650 = vpop.f32.mrf.mxu0
        %v3651 = vadd.f32 %v3602, %v3650
        %v3652 = vpop.f32.mrf.mxu0
        %v3653 = vadd.f32 %v3604, %v3652
        %3654 = vmatmul.bf16.gmra.mxu0 %v1320
        %v3655 = vpop.f32.mrf.mxu0
        %v3656 = vadd.f32 %v3607, %v3655
        %v3657 = vpop.f32.mrf.mxu0
        %v3658 = vadd.f32 %v3609, %v3657
        %3659 = vmatmul.bf16.gmra.mxu0 %v1326
        %v3660 = vpop.f32.mrf.mxu0
        %v3661 = vadd.f32 %v3612, %v3660
        %v3662 = vpop.f32.mrf.mxu0
        %v3663 = vadd.f32 %v3614, %v3662
        %3664 = vdwg.mxu0
        %v3665 = vmax.f32 %v2744, 0.0
        %v3666 = vmax.f32 %v3038, 0.0
        %v3667 = vmax.f32 %v3332, 0.0
        %v3668 = vmax.f32 %v3626, 0.0
        %v3669 = vmax.f32 %v2746, 0.0
        %v3670 = vmax.f32 %v3040, 0.0
        %v3671 = vmax.f32 %v3334, 0.0
        %v3672 = vmax.f32 %v3628, 0.0
        %v3673 = vmax.f32 %v2749, 0.0
        %v3674 = vmax.f32 %v3043, 0.0
        %v3675 = vmax.f32 %v3337, 0.0
        %v3676 = vmax.f32 %v3631, 0.0
        %v3677 = vmax.f32 %v2751, 0.0
        %v3678 = vmax.f32 %v3045, 0.0
        %v3679 = vmax.f32 %v3339, 0.0
        %v3680 = vmax.f32 %v3633, 0.0
        %v3681 = vmax.f32 %v2754, 0.0
        %v3682 = vmax.f32 %v3048, 0.0
        %v3683 = vmax.f32 %v3342, 0.0
        %v3684 = vmax.f32 %v3636, 0.0
        %v3685 = vmax.f32 %v2756, 0.0
        %v3686 = vmax.f32 %v3050, 0.0
        %v3687 = vmax.f32 %v3344, 0.0
        %v3688 = vmax.f32 %v3638, 0.0
        %v3689 = vmax.f32 %v2759, 0.0
        %v3690 = vmax.f32 %v3053, 0.0
        %v3691 = vmax.f32 %v3347, 0.0
        %v3692 = vmax.f32 %v3641, 0.0
        %v3693 = vmax.f32 %v2761, 0.0
        %v3694 = vmax.f32 %v3055, 0.0
        %v3695 = vmax.f32 %v3349, 0.0
        %v3696 = vmax.f32 %v3643, 0.0
        %v3697 = vmax.f32 %v2764, 0.0
        %v3698 = vmax.f32 %v3058, 0.0
        %v3699 = vmax.f32 %v3352, 0.0
        %v3700 = vmax.f32 %v3646, 0.0
        %v3701 = vmax.f32 %v2766, 0.0
        %v3702 = vmax.f32 %v3060, 0.0
        %v3703 = vmax.f32 %v3354, 0.0
        %v3704 = vmax.f32 %v3648, 0.0
        %v3705 = vmax.f32 %v2769, 0.0
        %v3706 = vmax.f32 %v3063, 0.0
        %v3707 = vmax.f32 %v3357, 0.0
        %v3708 = vmax.f32 %v3651, 0.0
        %v3709 = vmax.f32 %v2771, 0.0
        %v3710 = vmax.f32 %v3065, 0.0
        %v3711 = vmax.f32 %v3359, 0.0
        %v3712 = vmax.f32 %v3653, 0.0
        %v3713 = vmax.f32 %v2774, 0.0
        %v3714 = vmax.f32 %v3068, 0.0
        %v3715 = vmax.f32 %v3362, 0.0
        %v3716 = vmax.f32 %v3656, 0.0
        %v3717 = vmax.f32 %v2776, 0.0
        %v3718 = vmax.f32 %v3070, 0.0
        %v3719 = vmax.f32 %v3364, 0.0
        %v3720 = vmax.f32 %v3658, 0.0
        %v3721 = vmax.f32 %v2779, 0.0
        %v3722 = vmax.f32 %v3073, 0.0
        %v3723 = vmax.f32 %v3367, 0.0
        %v3724 = vmax.f32 %v3661, 0.0
        %v3725 = vmax.f32 %v2781, 0.0
        %v3726 = vmax.f32 %v3075, 0.0
        %v3727 = vmax.f32 %v3369, 0.0
        %v3728 = vmax.f32 %v3663, 0.0
        %v3729 = vpack.c.bf16 %v3669, %v3665
        %v3730 = vpack.c.bf16 %v3670, %v3666
        %v3731 = vpack.c.bf16 %v3671, %v3667
        %v3732 = vpack.c.bf16 %v3672, %v3668
        %v3733 = vpack.c.bf16 %v3677, %v3673
        %v3734 = vpack.c.bf16 %v3678, %v3674
        %v3735 = vpack.c.bf16 %v3679, %v3675
        %v3736 = vpack.c.bf16 %v3680, %v3676
        %v3737 = vpack.c.bf16 %v3685, %v3681
        %v3738 = vpack.c.bf16 %v3686, %v3682
        %v3739 = vpack.c.bf16 %v3687, %v3683
        %v3740 = vpack.c.bf16 %v3688, %v3684
        %v3741 = vpack.c.bf16 %v3693, %v3689
        %v3742 = vpack.c.bf16 %v3694, %v3690
        %v3743 = vpack.c.bf16 %v3695, %v3691
        %v3744 = vpack.c.bf16 %v3696, %v3692
        %v3745 = vpack.c.bf16 %v3701, %v3697
        %v3746 = vpack.c.bf16 %v3702, %v3698
        %v3747 = vpack.c.bf16 %v3703, %v3699
        %v3748 = vpack.c.bf16 %v3704, %v3700
        %v3749 = vpack.c.bf16 %v3709, %v3705
        %v3750 = vpack.c.bf16 %v3710, %v3706
        %v3751 = vpack.c.bf16 %v3711, %v3707
        %v3752 = vpack.c.bf16 %v3712, %v3708
        %v3753 = vpack.c.bf16 %v3717, %v3713
        %v3754 = vpack.c.bf16 %v3718, %v3714
        %v3755 = vpack.c.bf16 %v3719, %v3715
        %v3756 = vpack.c.bf16 %v3720, %v3716
        %v3757 = vpack.c.bf16 %v3725, %v3721
        %v3758 = vpack.c.bf16 %v3726, %v3722
        %v3759 = vpack.c.bf16 %v3727, %v3723
        %v3760 = vpack.c.bf16 %v3728, %v3724
        %v3761 = vld [vmem:[#allocation10] sm:$0xf]
        %v3762 = vld [vmem:[#allocation10 + $0x4] sm:$0xf]
        %v3763 = vld [vmem:[#allocation10 + $0x8] sm:$0xf]
        %v3764 = vld [vmem:[#allocation10 + $0xc] sm:$0xf]
        %v3765 = vld [vmem:[#allocation10 + $0x10] sm:$0xf]
        %v3766 = vld [vmem:[#allocation10 + $0x14] sm:$0xf]
        %v3767 = vld [vmem:[#allocation10 + $0x18] sm:$0xf]
        %v3768 = vld [vmem:[#allocation10 + $0x1c] sm:$0xf]
        %v3769 = vld [vmem:[#allocation10 + $0x20] sm:$0xf]
        %v3770 = vld [vmem:[#allocation10 + $0x24] sm:$0xf]
        %v3771 = vld [vmem:[#allocation10 + $0x28] sm:$0xf]
        %v3772 = vld [vmem:[#allocation10 + $0x2c] sm:$0xf]
        %v3773 = vld [vmem:[#allocation10 + $0x30] sm:$0xf]
        %v3774 = vld [vmem:[#allocation10 + $0x34] sm:$0xf]
        %v3775 = vld [vmem:[#allocation10 + $0x38] sm:$0xf]
        %v3776 = vld [vmem:[#allocation10 + $0x3c] sm:$0xf]
        %v3777 = vld [vmem:[#allocation10 + $0x40] sm:$0xf]
        %v3778 = vld [vmem:[#allocation10 + $0x44] sm:$0xf]
        %v3779 = vld [vmem:[#allocation10 + $0x48] sm:$0xf]
        %v3780 = vld [vmem:[#allocation10 + $0x4c] sm:$0xf]
        %v3781 = vld [vmem:[#allocation10 + $0x50] sm:$0xf]
        %v3782 = vld [vmem:[#allocation10 + $0x54] sm:$0xf]
        %v3783 = vld [vmem:[#allocation10 + $0x58] sm:$0xf]
        %v3784 = vld [vmem:[#allocation10 + $0x5c] sm:$0xf]
        %v3785 = vld [vmem:[#allocation10 + $0x60] sm:$0xf]
        %v3786 = vld [vmem:[#allocation10 + $0x64] sm:$0xf]
        %v3787 = vld [vmem:[#allocation10 + $0x68] sm:$0xf]
        %v3788 = vld [vmem:[#allocation10 + $0x6c] sm:$0xf]
        %v3789 = vld [vmem:[#allocation10 + $0x70] sm:$0xf]
        %v3790 = vld [vmem:[#allocation10 + $0x74] sm:$0xf]
        %v3791 = vld [vmem:[#allocation10 + $0x78] sm:$0xf]
        %v3792 = vld [vmem:[#allocation10 + $0x7c] sm:$0xf]
        %v3793 = vld [vmem:[#allocation10 + $0x80] sm:$0xf]
        %v3794 = vld [vmem:[#allocation10 + $0x84] sm:$0xf]
        %v3795 = vld [vmem:[#allocation10 + $0x88] sm:$0xf]
        %v3796 = vld [vmem:[#allocation10 + $0x8c] sm:$0xf]
        %v3797 = vld [vmem:[#allocation10 + $0x90] sm:$0xf]
        %v3798 = vld [vmem:[#allocation10 + $0x94] sm:$0xf]
        %v3799 = vld [vmem:[#allocation10 + $0x98] sm:$0xf]
        %v3800 = vld [vmem:[#allocation10 + $0x9c] sm:$0xf]
        %v3801 = vld [vmem:[#allocation10 + $0xa0] sm:$0xf]
        %v3802 = vld [vmem:[#allocation10 + $0xa4] sm:$0xf]
        %v3803 = vld [vmem:[#allocation10 + $0xa8] sm:$0xf]
        %v3804 = vld [vmem:[#allocation10 + $0xac] sm:$0xf]
        %v3805 = vld [vmem:[#allocation10 + $0xb0] sm:$0xf]
        %v3806 = vld [vmem:[#allocation10 + $0xb4] sm:$0xf]
        %v3807 = vld [vmem:[#allocation10 + $0xb8] sm:$0xf]
        %v3808 = vld [vmem:[#allocation10 + $0xbc] sm:$0xf]
        %v3809 = vld [vmem:[#allocation10 + $0xc0] sm:$0xf]
        %v3810 = vld [vmem:[#allocation10 + $0xc4] sm:$0xf]
        %v3811 = vld [vmem:[#allocation10 + $0xc8] sm:$0xf]
        %v3812 = vld [vmem:[#allocation10 + $0xcc] sm:$0xf]
        %v3813 = vld [vmem:[#allocation10 + $0xd0] sm:$0xf]
        %v3814 = vld [vmem:[#allocation10 + $0xd4] sm:$0xf]
        %v3815 = vld [vmem:[#allocation10 + $0xd8] sm:$0xf]
        %v3816 = vld [vmem:[#allocation10 + $0xdc] sm:$0xf]
        %v3817 = vld [vmem:[#allocation10 + $0xe0] sm:$0xf]
        %v3818 = vld [vmem:[#allocation10 + $0xe4] sm:$0xf]
        %v3819 = vld [vmem:[#allocation10 + $0xe8] sm:$0xf]
        %v3820 = vld [vmem:[#allocation10 + $0xec] sm:$0xf]
        %v3821 = vld [vmem:[#allocation10 + $0xf0] sm:$0xf]
        %v3822 = vld [vmem:[#allocation10 + $0xf4] sm:$0xf]
        %v3823 = vld [vmem:[#allocation10 + $0xf8] sm:$0xf]
        %v3824 = vld [vmem:[#allocation10 + $0xfc] sm:$0xf]
        %v3825 = vld [vmem:[#allocation11] sm:$0x1]
        %v3827 = vperm.slane %v3825, 0
        %v3893 = vunpack.c.l.b16 %v3761
        %v3894 = vunpack.c.l.b16 %v3762
        %v3895 = vunpack.c.l.b16 %v3763
        %v3896 = vunpack.c.l.b16 %v3764
        %v3897 = vunpack.c.l.b16 %v3765
        %v3898 = vunpack.c.l.b16 %v3766
        %v3899 = vunpack.c.l.b16 %v3767
        %v3900 = vunpack.c.l.b16 %v3768
        %v3901 = vunpack.c.l.b16 %v3769
        %v3902 = vunpack.c.l.b16 %v3770
        %v3903 = vunpack.c.l.b16 %v3771
        %v3904 = vunpack.c.l.b16 %v3772
        %v3905 = vunpack.c.l.b16 %v3773
        %v3906 = vunpack.c.l.b16 %v3774
        %v3907 = vunpack.c.l.b16 %v3775
        %v3908 = vunpack.c.l.b16 %v3776
        %v3909 = vunpack.c.l.b16 %v3777
        %v3910 = vunpack.c.l.b16 %v3778
        %v3911 = vunpack.c.l.b16 %v3779
        %v3912 = vunpack.c.l.b16 %v3780
        %v3913 = vunpack.c.l.b16 %v3781
        %v3914 = vunpack.c.l.b16 %v3782
        %v3915 = vunpack.c.l.b16 %v3783
        %v3916 = vunpack.c.l.b16 %v3784
        %v3917 = vunpack.c.l.b16 %v3785
        %v3918 = vunpack.c.l.b16 %v3786
        %v3919 = vunpack.c.l.b16 %v3787
        %v3920 = vunpack.c.l.b16 %v3788
        %v3921 = vunpack.c.l.b16 %v3789
        %v3922 = vunpack.c.l.b16 %v3790
        %v3923 = vunpack.c.l.b16 %v3791
        %v3924 = vunpack.c.l.b16 %v3792
        %v3925 = vunpack.c.l.b16 %v3793
        %v3926 = vunpack.c.l.b16 %v3794
        %v3927 = vunpack.c.l.b16 %v3795
        %v3928 = vunpack.c.l.b16 %v3796
        %v3929 = vunpack.c.l.b16 %v3797
        %v3930 = vunpack.c.l.b16 %v3798
        %v3931 = vunpack.c.l.b16 %v3799
        %v3932 = vunpack.c.l.b16 %v3800
        %v3933 = vunpack.c.l.b16 %v3801
        %v3934 = vunpack.c.l.b16 %v3802
        %v3935 = vunpack.c.l.b16 %v3803
        %v3936 = vunpack.c.l.b16 %v3804
        %v3937 = vunpack.c.l.b16 %v3805
        %v3938 = vunpack.c.l.b16 %v3806
        %v3939 = vunpack.c.l.b16 %v3807
        %v3940 = vunpack.c.l.b16 %v3808
        %v3941 = vunpack.c.l.b16 %v3809
        %v3942 = vunpack.c.l.b16 %v3810
        %v3943 = vunpack.c.l.b16 %v3811
        %v3944 = vunpack.c.l.b16 %v3812
        %v3945 = vunpack.c.l.b16 %v3813
        %v3946 = vunpack.c.l.b16 %v3814
        %v3947 = vunpack.c.l.b16 %v3815
        %v3948 = vunpack.c.l.b16 %v3816
        %v3949 = vunpack.c.l.b16 %v3817
        %v3950 = vunpack.c.l.b16 %v3818
        %v3951 = vunpack.c.l.b16 %v3819
        %v3952 = vunpack.c.l.b16 %v3820
        %v3953 = vunpack.c.l.b16 %v3821
        %v3954 = vunpack.c.l.b16 %v3822
        %v3955 = vunpack.c.l.b16 %v3823
        %v3956 = vunpack.c.l.b16 %v3824
        %v3957 = vpack.c.b16 %v3894, %v3893
        %v3958 = vpack.c.b16 %v3896, %v3895
        %v3959 = vpack.c.b16 %v3898, %v3897
        %v3960 = vpack.c.b16 %v3900, %v3899
        %v3961 = vpack.c.b16 %v3902, %v3901
        %v3962 = vpack.c.b16 %v3904, %v3903
        %v3963 = vpack.c.b16 %v3906, %v3905
        %v3964 = vpack.c.b16 %v3908, %v3907
        %v3965 = vpack.c.b16 %v3910, %v3909
        %v3966 = vpack.c.b16 %v3912, %v3911
        %v3967 = vpack.c.b16 %v3914, %v3913
        %v3968 = vpack.c.b16 %v3916, %v3915
        %v3969 = vpack.c.b16 %v3918, %v3917
        %v3970 = vpack.c.b16 %v3920, %v3919
        %v3971 = vpack.c.b16 %v3922, %v3921
        %v3972 = vpack.c.b16 %v3924, %v3923
        %v3973 = vpack.c.b16 %v3926, %v3925
        %v3974 = vpack.c.b16 %v3928, %v3927
        %v3975 = vpack.c.b16 %v3930, %v3929
        %v3976 = vpack.c.b16 %v3932, %v3931
        %v3977 = vpack.c.b16 %v3934, %v3933
        %v3978 = vpack.c.b16 %v3936, %v3935
        %v3979 = vpack.c.b16 %v3938, %v3937
        %v3980 = vpack.c.b16 %v3940, %v3939
        %v3981 = vpack.c.b16 %v3942, %v3941
        %v3982 = vpack.c.b16 %v3944, %v3943
        %v3983 = vpack.c.b16 %v3946, %v3945
        %v3984 = vpack.c.b16 %v3948, %v3947
        %v3985 = vpack.c.b16 %v3950, %v3949
        %v3986 = vpack.c.b16 %v3952, %v3951
        %v3987 = vpack.c.b16 %v3954, %v3953
        %v3988 = vpack.c.b16 %v3956, %v3955
        %4021 = vmatpush.bf16.msra.mxu0 %v3964
        %4022 = vmatpush.bf16.msra.mxu0 %v3963
        %4023 = vmatpush.bf16.msra.mxu0 %v3962
        %4024 = vmatpush.bf16.msra.mxu0 %v3961
        %4025 = vmatpush.bf16.msra.mxu0 %v3960
        %4026 = vmatpush.bf16.msra.mxu0 %v3959
        %4027 = vmatpush.bf16.msra.mxu0 %v3958
        %4028 = vmatpush.bf16.msra.mxu0 %v3957
        %4029 = vmatmul.bf16.gmra.mxu0 %v3729
        %v4030 = vpop.f32.mrf.mxu0
        %v4031 = vadd.f32 %v3827, %v4030
        %v4032 = vpop.f32.mrf.mxu0
        %v4033 = vadd.f32 %v3827, %v4032
        %4034 = vmatmul.bf16.gmra.mxu0 %v3733
        %v4035 = vpop.f32.mrf.mxu0
        %v4036 = vadd.f32 %v3827, %v4035
        %v4037 = vpop.f32.mrf.mxu0
        %v4038 = vadd.f32 %v3827, %v4037
        %4039 = vmatmul.bf16.gmra.mxu0 %v3737
        %v4040 = vpop.f32.mrf.mxu0
        %v4041 = vadd.f32 %v3827, %v4040
        %v4042 = vpop.f32.mrf.mxu0
        %v4043 = vadd.f32 %v3827, %v4042
        %4044 = vmatmul.bf16.gmra.mxu0 %v3741
        %v4045 = vpop.f32.mrf.mxu0
        %v4046 = vadd.f32 %v3827, %v4045
        %v4047 = vpop.f32.mrf.mxu0
        %v4048 = vadd.f32 %v3827, %v4047
        %4049 = vmatmul.bf16.gmra.mxu0 %v3745
        %v4050 = vpop.f32.mrf.mxu0
        %v4051 = vadd.f32 %v3827, %v4050
        %v4052 = vpop.f32.mrf.mxu0
        %v4053 = vadd.f32 %v3827, %v4052
        %4054 = vmatmul.bf16.gmra.mxu0 %v3749
        %v4055 = vpop.f32.mrf.mxu0
        %v4056 = vadd.f32 %v3827, %v4055
        %v4057 = vpop.f32.mrf.mxu0
        %v4058 = vadd.f32 %v3827, %v4057
        %4059 = vmatmul.bf16.gmra.mxu0 %v3753
        %v4060 = vpop.f32.mrf.mxu0
        %v4061 = vadd.f32 %v3827, %v4060
        %v4062 = vpop.f32.mrf.mxu0
        %v4063 = vadd.f32 %v3827, %v4062
        %4064 = vmatmul.bf16.gmra.mxu0 %v3757
        %v4065 = vpop.f32.mrf.mxu0
        %v4066 = vadd.f32 %v3827, %v4065
        %v4067 = vpop.f32.mrf.mxu0
        %v4068 = vadd.f32 %v3827, %v4067
        %4069 = vdwg.mxu0
        %4070 = vmatpush.bf16.msra.mxu0 %v3972
        %4071 = vmatpush.bf16.msra.mxu0 %v3971
        %4072 = vmatpush.bf16.msra.mxu0 %v3970
        %4073 = vmatpush.bf16.msra.mxu0 %v3969
        %4074 = vmatpush.bf16.msra.mxu0 %v3968
        %4075 = vmatpush.bf16.msra.mxu0 %v3967
        %4076 = vmatpush.bf16.msra.mxu0 %v3966
        %4077 = vmatpush.bf16.msra.mxu0 %v3965
        %4078 = vmatmul.bf16.gmra.mxu0 %v3730
        %v4079 = vpop.f32.mrf.mxu0
        %v4080 = vadd.f32 %v4031, %v4079
        %v4081 = vpop.f32.mrf.mxu0
        %v4082 = vadd.f32 %v4033, %v4081
        %4083 = vmatmul.bf16.gmra.mxu0 %v3734
        %v4084 = vpop.f32.mrf.mxu0
        %v4085 = vadd.f32 %v4036, %v4084
        %v4086 = vpop.f32.mrf.mxu0
        %v4087 = vadd.f32 %v4038, %v4086
        %4088 = vmatmul.bf16.gmra.mxu0 %v3738
        %v4089 = vpop.f32.mrf.mxu0
        %v4090 = vadd.f32 %v4041, %v4089
        %v4091 = vpop.f32.mrf.mxu0
        %v4092 = vadd.f32 %v4043, %v4091
        %4093 = vmatmul.bf16.gmra.mxu0 %v3742
        %v4094 = vpop.f32.mrf.mxu0
        %v4095 = vadd.f32 %v4046, %v4094
        %v4096 = vpop.f32.mrf.mxu0
        %v4097 = vadd.f32 %v4048, %v4096
        %4098 = vmatmul.bf16.gmra.mxu0 %v3746
        %v4099 = vpop.f32.mrf.mxu0
        %v4100 = vadd.f32 %v4051, %v4099
        %v4101 = vpop.f32.mrf.mxu0
        %v4102 = vadd.f32 %v4053, %v4101
        %4103 = vmatmul.bf16.gmra.mxu0 %v3750
        %v4104 = vpop.f32.mrf.mxu0
        %v4105 = vadd.f32 %v4056, %v4104
        %v4106 = vpop.f32.mrf.mxu0
        %v4107 = vadd.f32 %v4058, %v4106
        %4108 = vmatmul.bf16.gmra.mxu0 %v3754
        %v4109 = vpop.f32.mrf.mxu0
        %v4110 = vadd.f32 %v4061, %v4109
        %v4111 = vpop.f32.mrf.mxu0
        %v4112 = vadd.f32 %v4063, %v4111
        %4113 = vmatmul.bf16.gmra.mxu0 %v3758
        %v4114 = vpop.f32.mrf.mxu0
        %v4115 = vadd.f32 %v4066, %v4114
        %v4116 = vpop.f32.mrf.mxu0
        %v4117 = vadd.f32 %v4068, %v4116
        %4118 = vdwg.mxu0
        %4119 = vmatpush.bf16.msra.mxu0 %v3980
        %4120 = vmatpush.bf16.msra.mxu0 %v3979
        %4121 = vmatpush.bf16.msra.mxu0 %v3978
        %4122 = vmatpush.bf16.msra.mxu0 %v3977
        %4123 = vmatpush.bf16.msra.mxu0 %v3976
        %4124 = vmatpush.bf16.msra.mxu0 %v3975
        %4125 = vmatpush.bf16.msra.mxu0 %v3974
        %4126 = vmatpush.bf16.msra.mxu0 %v3973
        %4127 = vmatmul.bf16.gmra.mxu0 %v3731
        %v4128 = vpop.f32.mrf.mxu0
        %v4129 = vadd.f32 %v4080, %v4128
        %v4130 = vpop.f32.mrf.mxu0
        %v4131 = vadd.f32 %v4082, %v4130
        %4132 = vmatmul.bf16.gmra.mxu0 %v3735
        %v4133 = vpop.f32.mrf.mxu0
        %v4134 = vadd.f32 %v4085, %v4133
        %v4135 = vpop.f32.mrf.mxu0
        %v4136 = vadd.f32 %v4087, %v4135
        %4137 = vmatmul.bf16.gmra.mxu0 %v3739
        %v4138 = vpop.f32.mrf.mxu0
        %v4139 = vadd.f32 %v4090, %v4138
        %v4140 = vpop.f32.mrf.mxu0
        %v4141 = vadd.f32 %v4092, %v4140
        %4142 = vmatmul.bf16.gmra.mxu0 %v3743
        %v4143 = vpop.f32.mrf.mxu0
        %v4144 = vadd.f32 %v4095, %v4143
        %v4145 = vpop.f32.mrf.mxu0
        %v4146 = vadd.f32 %v4097, %v4145
        %4147 = vmatmul.bf16.gmra.mxu0 %v3747
        %v4148 = vpop.f32.mrf.mxu0
        %v4149 = vadd.f32 %v4100, %v4148
        %v4150 = vpop.f32.mrf.mxu0
        %v4151 = vadd.f32 %v4102, %v4150
        %4152 = vmatmul.bf16.gmra.mxu0 %v3751
        %v4153 = vpop.f32.mrf.mxu0
        %v4154 = vadd.f32 %v4105, %v4153
        %v4155 = vpop.f32.mrf.mxu0
        %v4156 = vadd.f32 %v4107, %v4155
        %4157 = vmatmul.bf16.gmra.mxu0 %v3755
        %v4158 = vpop.f32.mrf.mxu0
        %v4159 = vadd.f32 %v4110, %v4158
        %v4160 = vpop.f32.mrf.mxu0
        %v4161 = vadd.f32 %v4112, %v4160
        %4162 = vmatmul.bf16.gmra.mxu0 %v3759
        %v4163 = vpop.f32.mrf.mxu0
        %v4164 = vadd.f32 %v4115, %v4163
        %v4165 = vpop.f32.mrf.mxu0
        %v4166 = vadd.f32 %v4117, %v4165
        %4167 = vdwg.mxu0
        %4168 = vmatpush.bf16.msra.mxu0 %v3988
        %4169 = vmatpush.bf16.msra.mxu0 %v3987
        %4170 = vmatpush.bf16.msra.mxu0 %v3986
        %4171 = vmatpush.bf16.msra.mxu0 %v3985
        %4172 = vmatpush.bf16.msra.mxu0 %v3984
        %4173 = vmatpush.bf16.msra.mxu0 %v3983
        %4174 = vmatpush.bf16.msra.mxu0 %v3982
        %4175 = vmatpush.bf16.msra.mxu0 %v3981
        %4176 = vmatmul.bf16.gmra.mxu0 %v3732
        %v4177 = vpop.f32.mrf.mxu0
        %v4178 = vadd.f32 %v4129, %v4177
        %v4179 = vpop.f32.mrf.mxu0
        %v4180 = vadd.f32 %v4131, %v4179
        %4181 = vmatmul.bf16.gmra.mxu0 %v3736
        %v4182 = vpop.f32.mrf.mxu0
        %v4183 = vadd.f32 %v4134, %v4182
        %v4184 = vpop.f32.mrf.mxu0
        %v4185 = vadd.f32 %v4136, %v4184
        %4186 = vmatmul.bf16.gmra.mxu0 %v3740
        %v4187 = vpop.f32.mrf.mxu0
        %v4188 = vadd.f32 %v4139, %v4187
        %v4189 = vpop.f32.mrf.mxu0
        %v4190 = vadd.f32 %v4141, %v4189
        %4191 = vmatmul.bf16.gmra.mxu0 %v3744
        %v4192 = vpop.f32.mrf.mxu0
        %v4193 = vadd.f32 %v4144, %v4192
        %v4194 = vpop.f32.mrf.mxu0
        %v4195 = vadd.f32 %v4146, %v4194
        %4196 = vmatmul.bf16.gmra.mxu0 %v3748
        %v4197 = vpop.f32.mrf.mxu0
        %v4198 = vadd.f32 %v4149, %v4197
        %v4199 = vpop.f32.mrf.mxu0
        %v4200 = vadd.f32 %v4151, %v4199
        %4201 = vmatmul.bf16.gmra.mxu0 %v3752
        %v4202 = vpop.f32.mrf.mxu0
        %v4203 = vadd.f32 %v4154, %v4202
        %v4204 = vpop.f32.mrf.mxu0
        %v4205 = vadd.f32 %v4156, %v4204
        %4206 = vmatmul.bf16.gmra.mxu0 %v3756
        %v4207 = vpop.f32.mrf.mxu0
        %v4208 = vadd.f32 %v4159, %v4207
        %v4209 = vpop.f32.mrf.mxu0
        %v4210 = vadd.f32 %v4161, %v4209
        %4211 = vmatmul.bf16.gmra.mxu0 %v3760
        %v4212 = vpop.f32.mrf.mxu0
        %v4213 = vadd.f32 %v4164, %v4212
        %v4214 = vpop.f32.mrf.mxu0
        %v4215 = vadd.f32 %v4166, %v4214
        %4216 = vdwg.mxu0
        %4217 = vst [vmem:[%s420] sm:$0xff] %v4178
        %4218 = vst [vmem:[%s420 + $0x8] sm:$0xff] %v4180
        %4219 = vst [vmem:[%s420 + $0x10] sm:$0xff] %v4183
        %4220 = vst [vmem:[%s420 + $0x18] sm:$0xff] %v4185
        %4221 = vst [vmem:[%s420 + $0x20] sm:$0xff] %v4188
        %4222 = vst [vmem:[%s420 + $0x28] sm:$0xff] %v4190
        %4223 = vst [vmem:[%s420 + $0x30] sm:$0xff] %v4193
        %4224 = vst [vmem:[%s420 + $0x38] sm:$0xff] %v4195
        %4225 = vst [vmem:[%s420 + $0x40] sm:$0xff] %v4198
        %4226 = vst [vmem:[%s420 + $0x48] sm:$0xff] %v4200
        %4227 = vst [vmem:[%s420 + $0x50] sm:$0xff] %v4203
        %4228 = vst [vmem:[%s420 + $0x58] sm:$0xff] %v4205
        %4229 = vst [vmem:[%s420 + $0x60] sm:$0xff] %v4208
        %4230 = vst [vmem:[%s420 + $0x68] sm:$0xff] %v4210
        %4231 = vst [vmem:[%s420 + $0x70] sm:$0xff] %v4213
        %4232 = vst [vmem:[%s420 + $0x78] sm:$0xff] %v4215
        %s4233 = sand.u32 %s229, 1
        %s4234 = scalar_lea.sflag [#allocation4], %s4233
        %s4235 = sand.u32 %s229, 1
        %s4236 = smul.addr %s4235, 128
        %s4237 = scalar_lea.vmem [#allocation13], %s4236
        // Predicated region
        $region81: #{tpu_custom_call.1} parent=55 // pred_check
          %p4238 = pneg %p239
        $region82: #{tpu_custom_call.1} parent=55 // pred_check_branch
          %4240 = sbr.rel (%p4238) target = $region84
        $region83: #{tpu_custom_call.1} parent=55 // pred_region
          %s4241 = smul.u32 16, %s27
          %4243 = vsyncadd %s4234, 0
          %s4244 = smul.addr %s4241, 8
          %s4245 = scalar_lea.hbm %s9, %s4244
          %s4246 = sshll.u32 %s4237, 4
          %s4247 = int_to_ptr.vmem [resolvable:$true] %s4246
          %s4248 = sshll.u32 %s4245, 4
          %s4249 = int_to_ptr.hbm [resolvable:$true] %s4248
          %4254 = dma.vmem_to_hbm [thread:$0]  %s4247, 2048, %s4249, %s4234, 128, 128, 8
        $region84: #{tpu_custom_call.1} parent=55 // pred_fallthru
          _
      $region56: #{tpu_custom_call.1} parent=5 // pred_fallthru
        _
      %p4255 = scmp.le.s32.totalorder 2, %s22
      // Predicated region
      $region85: #{tpu_custom_call.1} parent=5 // pred_check
        %p4256 = pneg %p4255
      $region86: #{tpu_custom_call.1} parent=5 // pred_check_branch
        %4258 = sbr.rel (%p4256) target = $region88
      $region87: #{tpu_custom_call.1} parent=5 // pred_region
        %s4259 = ssub.s32 %s22, 2
        // Predicated region
        $region89: #{tpu_custom_call.1} parent=87 // pred_check
          %p4260 = pneg %p245
        $region90: #{tpu_custom_call.1} parent=87 // pred_check_branch
          %4262 = sbr.rel (%p4260) target = $region92
        $region91: #{tpu_custom_call.1} parent=87 // pred_region
          %s4263 = sand.u32 %s230, 1
          %s4264 = scalar_lea.sflag [#allocation4], %s4263
          %s4265 = sand.u32 %s230, 1
          %s4266 = smul.addr %s4265, 128
          %s4267 = scalar_lea.vmem [#allocation13], %s4266
          %4269 = dma.done %s4264, 2048
        $region92: #{tpu_custom_call.1} parent=87 // pred_fallthru
          _
      $region88: #{tpu_custom_call.1} parent=5 // pred_fallthru
        _
    $region6: #{tpu_custom_call.1} parent=1 // loop_footer
      %s26 = sadd.s32 1, %s22
    $region7: #{tpu_custom_call.1} parent=1 // loop_footer_branch
      %21 = sbr.rel target = $region3
    $region8: #{tpu_custom_call.1} parent=1 // loop_exit
      _
    %4270 = vsyncpa [#allocation3], 1
    %s4271 = scalar_lea.sflag [#allocation3], 1
    %4272 = vsyncpa %s4271, 1
    %4273 = vsyncpa [#allocation6], 1
    %4274 = vsyncpa [#allocation9], 1
    %4275 = vsyncpa [#allocation12], 1
    %4276 = vsyncpa [#allocation4], 1
    %s4277 = scalar_lea.sflag [#allocation4], 1
    %4278 = vsyncpa %s4277, 1

</llo_original>
